<compile_context>
chip_gen: v6e
topology: v6e:2x2x1
jax: 0.10.0
libtpu: 0.0.40
codegen_flags: <defaults>
</compile_context>

<pallas_src>
import jax
import jax.numpy as jnp
import numpy as np
from jax import lax
from jax.experimental import pallas as pl
from jax.experimental.pallas import tpu as pltpu

_MXU_DTYPE = jnp.bfloat16  # MXU operand dtype; accumulation + epilogues stay f32.


# ----------------------------- fused Pallas kernel -----------------------------

def _mymodel_kernel(xp_ref, w1_ref, b1_ref, w2_ref, b2_ref, w3_ref, b3_ref,
                    fw1_ref, fb1_ref, fw2_ref, fb2_ref,
                    out_ref, p1_ref, p2_ref):
    """Fused forward pass for one batch element.

    xp_ref : (1, H+2, W+2, 1)  zero-padded input (NHWC, halo included)
    wX_ref : (9*Cin, Cout)     conv weights, row index = (kh*3 + kw)*Cin + cin
    bX_ref : (1, Cout)
    fw1_ref: (64, 128) = fc1.weight (torch layout),  fb1_ref: (64, 1)
    fw2_ref: (128, 64) = fc2.weight (torch layout),  fb2_ref: (128, 1)
    out_ref: (1, H*W, 1)
    p1_ref : (H+2, W+2, 32) VMEM scratch (padded conv1 activation)
    p2_ref : (H+2, W+2, 64) VMEM scratch (padded conv2 activation)
    """
    _, hp, wp, _ = xp_ref.shape
    h, w = hp - 2, wp - 2
    s = h * w

    def conv3x3_relu(a, w_ref, b_ref):
        # a: (H+2, W+2, Cin) padded activation already resident in VMEM/vregs.
        cin = a.shape[-1]
        # 9 shifted views (in-register static slices, no HBM traffic), concatenated
        # along the channel/lane axis -> one im2col patch, then ONE fused MXU matmul.
        taps = [a[kh:kh + h, kw:kw + w, :] for kh in range(3) for kw in range(3)]
        patch = jnp.concatenate(taps, axis=-1).reshape(s, 9 * cin)
        y = jnp.dot(patch.astype(_MXU_DTYPE), w_ref[...].astype(_MXU_DTYPE),
                    preferred_element_type=jnp.float32)
        return jnp.maximum(y + b_ref[...], 0.0)  # f32 bias + ReLU epilogue

    # ----------------------------- MainNet -----------------------------
    f1 = conv3x3_relu(xp_ref[0], w1_ref, b1_ref)                 # (S, 32)
    p1_ref[...] = jnp.zeros_like(p1_ref)                         # zero halo border
    p1_ref[1:h + 1, 1:w + 1, :] = f1.reshape(h, w, f1.shape[-1])
    f2 = conv3x3_relu(p1_ref[...], w2_ref, b2_ref)               # (S, 64)
    p2_ref[...] = jnp.zeros_like(p2_ref)
    p2_ref[1:h + 1, 1:w + 1, :] = f2.reshape(h, w, f2.shape[-1])
    feat = conv3x3_relu(p2_ref[...], w3_ref, b3_ref)             # (S=128, C=128), f32

    # ----------------------------- CoeffNet -----------------------------
    # torch: a = features.view(B, 128, S);  h = relu(a @ fc1.w.T + b1);
    #        g = h @ fc2.w.T + b2;  coeffs = softmax(g, dim=1  (= channels))
    # Computed here in transposed layout (rows = fc output unit, cols = channel) so the
    # channel axis stays on the lanes throughout.
    fb16 = feat.astype(_MXU_DTYPE)
    hkc = jnp.dot(fw1_ref[...].astype(_MXU_DTYPE), fb16,
                  preferred_element_type=jnp.float32) + fb1_ref[...]      # (64, 128ch)
    hkc = jnp.maximum(hkc, 0.0)
    gjc = jnp.dot(fw2_ref[...].astype(_MXU_DTYPE), hkc.astype(_MXU_DTYPE),
                  preferred_element_type=jnp.float32) + fb2_ref[...]      # (128sp, 128ch)
    gjc = gjc - jnp.max(gjc, axis=-1, keepdims=True)   # softmax over channels (lanes)
    e = jnp.exp(gjc)
    coeff = e / jnp.sum(e, axis=-1, keepdims=True)                         # (S, C)

    # ------------------- out = sum_c(features * coeffs) -------------------
    # TODO(synk): the original `coeffs.view(B, 128, 1, 1)` is shape-inconsistent with the
    # (B, 128, 128) tensor produced by fc2; interpreted as (B, 128, H, W) coefficients.
    out_ref[...] = jnp.sum(feat * coeff, axis=-1, keepdims=True).reshape(1, s, 1)


# ----------------------------- wrapper -----------------------------

def _prepare_params(params):
    """Convert native-PyTorch-layout params to the kernel layout.

    Conv2d weight (Cout, Cin, 3, 3) -> (9*Cin, Cout), row = (kh*3 + kw)*Cin + cin.
    Linear weights stay (out, in); biases become broadcast-ready 2-D.
    """
    def conv(wb):
        wt, b = wb
        cout, cin = wt.shape[0], wt.shape[1]
        wm = jnp.transpose(wt, (2, 3, 1, 0)).reshape(9 * cin, cout)
        return wm, b.reshape(1, cout)

    w1, b1 = conv(params["conv1"])
    w2, b2 = conv(params["conv2"])
    w3, b3 = conv(params["conv3"])
    fw1, fb1 = params["fc1"]
    fw2, fb2 = params["fc2"]
    return (w1, b1, w2, b2, w3, b3,
            fw1, fb1.reshape(-1, 1), fw2, fb2.reshape(-1, 1))


def my_model_forward(x_nchw, params):
    n, cin, h, w = x_nchw.shape
    assert cin == 1, "MainNet.conv1 expects a single input channel"
    assert h * w == 128, "CoeffNet.fc1 = Linear(128, 64) requires H*W == 128"
    s = h * w
    hp, wp = h + 2, w + 2

    x = jnp.transpose(x_nchw, (0, 2, 3, 1)).astype(jnp.float32)   # NHWC
    xp = jnp.pad(x, ((0, 0), (1, 1), (1, 1), (0, 0)))             # halo for conv1 only

    (w1, b1, w2, b2, w3, b3, fw1, fb1, fw2, fb2) = _prepare_params(params)

    def full(arr):  # whole-array block, re-used every grid step
        r = arr.ndim
        return pl.BlockSpec(arr.shape, lambda i, r=r: (0,) * r)

    out = pl.pallas_call(
        _mymodel_kernel,
        out_shape=jax.ShapeDtypeStruct((n, s, 1), jnp.float32),
        grid=(n,),
        in_specs=[
            pl.BlockSpec((1, hp, wp, 1), lambda i: (i, 0, 0, 0)),
            full(w1), full(b1), full(w2), full(b2), full(w3), full(b3),
            full(fw1), full(fb1), full(fw2), full(fb2),
        ],
        out_specs=pl.BlockSpec((1, s, 1), lambda i: (i, 0, 0)),
        scratch_shapes=[
            pltpu.VMEM((hp, wp, 32), jnp.float32),
            pltpu.VMEM((hp, wp, 64), jnp.float32),
        ],
        compiler_params=pltpu.CompilerParams(
            dimension_semantics=("parallel",),
        ),
    )(xp, w1, b1, w2, b2, w3, b3, fw1, fb1, fw2, fb2)

    return out.reshape(n, 1, h, w)


# ----------------------------- parameters -----------------------------

def make_params(key):
    """Parameters in native PyTorch layouts (Conv2d: (Cout, Cin, 3, 3); Linear: (out, in)),
    initialized like PyTorch's default U(-1/sqrt(fan_in), 1/sqrt(fan_in))."""
    def uniform(k, shape, fan_in):
        bound = 1.0 / np.sqrt(fan_in)
        return jax.random.uniform(k, shape, jnp.float32, -bound, bound)

    keys = jax.random.split(key, 10)
    return {
        "conv1": (uniform(keys[0], (32, 1, 3, 3), 1 * 9),   uniform(keys[1], (32,), 1 * 9)),
        "conv2": (uniform(keys[2], (64, 32, 3, 3), 32 * 9),  uniform(keys[3], (64,), 32 * 9)),
        "conv3": (uniform(keys[4], (128, 64, 3, 3), 64 * 9), uniform(keys[5], (128,), 64 * 9)),
        "fc1":   (uniform(keys[6], (64, 128), 128),          uniform(keys[7], (64,), 128)),
        "fc2":   (uniform(keys[8], (128, 64), 64),           uniform(keys[9], (128,), 64)),
    }


# ----------------------------- pure-XLA reference -----------------------------

def _reference_forward(x_nchw, params):
    """Reference forward; matmul operands are rounded to the same MXU dtype as the kernel
    so the comparison only measures lowering correctness, not bf16 vs f32."""
    r = lambda t: t.astype(_MXU_DTYPE).astype(jnp.float32)

    def conv(x, wb):
        wt, b = wb
        y = lax.conv_general_dilated(r(x), r(wt), (1, 1), ((1, 1), (1, 1)),
                                     dimension_numbers=("NCHW", "OIHW", "NCHW"))
        return jax.nn.relu(y + b.reshape(1, -1, 1, 1))

    f = conv(conv(conv(x_nchw.astype(jnp.float32), params["conv1"]),
                  params["conv2"]), params["conv3"])                      # (N, 128, H, W)
    n, c, h, w = f.shape
    a = f.reshape(n, c, h * w)                                            # (N, 128, 128)
    fw1, fb1 = params["fc1"]
    fw2, fb2 = params["fc2"]
    hh = jax.nn.relu(jnp.einsum("ncs,ks->nck", r(a), r(fw1)) + fb1)       # (N, 128, 64)
    g = jnp.einsum("nck,jk->ncj", r(hh), r(fw2)) + fb2                    # (N, 128, 128)
    coeff = jax.nn.softmax(g, axis=1)                                     # over channels
    # TODO(synk): original `.view(B, 128, 1, 1)` is shape-inconsistent with fc2's
    # (B, 128, 128) output; interpreted as a reshape back to (B, 128, H, W).
    coeff = coeff.reshape(n, c, h, w)
    return (f * coeff).sum(axis=1, keepdims=True)                         # (N, 1, H, W)


# ----------------------------- main -----------------------------

if __name__ == "__main__":
    N, C, H, W = 2, 1, 16, 8          # H*W = 128, required by CoeffNet.fc1
    key = jax.random.PRNGKey(0)
    kx, kp = jax.random.split(key)
    x = jax.random.normal(kx, (N, C, H, W), dtype=jnp.float32)
    params = make_params(kp)

    fwd = jax.jit(my_model_forward)
    out = jax.block_until_ready(fwd(x, params))

    assert out.shape == (N, 1, H, W), out.shape
    assert bool(jnp.all(jnp.isfinite(out)))

    ref = jax.block_until_ready(jax.jit(_reference_forward)(x, params))
    np.testing.assert_allclose(np.asarray(out), np.asarray(ref), rtol=1e-2, atol=1e-3)

    print("KERNEL_OK")
</pallas_src>

<mosaic_0001>
module attributes {stable_mosaic.version = 11 : i64} {
  func.func @_mymodel_kernel(%arg0: i32, %arg1: memref<1x18x10x1xf32, #tpu.memory_space<vmem>>, %arg2: memref<9x32xf32, #tpu.memory_space<vmem>>, %arg3: memref<1x32xf32, #tpu.memory_space<vmem>>, %arg4: memref<288x64xf32, #tpu.memory_space<vmem>>, %arg5: memref<1x64xf32, #tpu.memory_space<vmem>>, %arg6: memref<576x128xf32, #tpu.memory_space<vmem>>, %arg7: memref<1x128xf32, #tpu.memory_space<vmem>>, %arg8: memref<64x128xf32, #tpu.memory_space<vmem>>, %arg9: memref<64x1xf32, #tpu.memory_space<vmem>>, %arg10: memref<128x64xf32, #tpu.memory_space<vmem>>, %arg11: memref<128x1xf32, #tpu.memory_space<vmem>>, %arg12: memref<1x128x1xf32, #tpu.memory_space<vmem>>, %arg13: memref<18x10x32xf32, #tpu.memory_space<vmem>>, %arg14: memref<18x10x64xf32, #tpu.memory_space<vmem>>) attributes {dimension_semantics = [#tpu.dimension_semantics<parallel>], iteration_bounds = array<i64: 2>, scalar_prefetch = 0 : i64, scratch_operands = 2 : i64, tpu.core_type = #tpu.core_type<tc>, window_params = [{transform_indices = @transform_0, window_bounds = array<i64: 1, 18, 10, 1>}, {pipeline_mode = #tpu.pipeline_mode<synchronous>, transform_indices = @transform_1, window_bounds = array<i64: 9, 32>}, {pipeline_mode = #tpu.pipeline_mode<synchronous>, transform_indices = @transform_2, window_bounds = array<i64: 1, 32>}, {pipeline_mode = #tpu.pipeline_mode<synchronous>, transform_indices = @transform_3, window_bounds = array<i64: 288, 64>}, {pipeline_mode = #tpu.pipeline_mode<synchronous>, transform_indices = @transform_4, window_bounds = array<i64: 1, 64>}, {pipeline_mode = #tpu.pipeline_mode<synchronous>, transform_indices = @transform_5, window_bounds = array<i64: 576, 128>}, {pipeline_mode = #tpu.pipeline_mode<synchronous>, transform_indices = @transform_6, window_bounds = array<i64: 1, 128>}, {pipeline_mode = #tpu.pipeline_mode<synchronous>, transform_indices = @transform_7, window_bounds = array<i64: 64, 128>}, {pipeline_mode = #tpu.pipeline_mode<synchronous>, transform_indices = @transform_8, window_bounds = array<i64: 64, 1>}, {pipeline_mode = #tpu.pipeline_mode<synchronous>, transform_indices = @transform_9, window_bounds = array<i64: 128, 64>}, {pipeline_mode = #tpu.pipeline_mode<synchronous>, transform_indices = @transform_10, window_bounds = array<i64: 128, 1>}, {transform_indices = @transform_11, window_bounds = array<i64: 1, 128, 1>}]} {
    %c0 = arith.constant 0 : index
    %c0_0 = arith.constant 0 : index
    %c0_1 = arith.constant 0 : index
    %c0_2 = arith.constant 0 : index
    %0 = vector.load %arg1[%c0, %c0_0, %c0_1, %c0_2] : memref<1x18x10x1xf32, #tpu.memory_space<vmem>>, vector<1x18x10x1xf32>
    %1 = vector.shape_cast %0 : vector<1x18x10x1xf32> to vector<18x10x1xf32>
    %2 = vector.extract_strided_slice %1 {offsets = [0, 0, 0], sizes = [16, 8, 1], strides = [1, 1, 1]} : vector<18x10x1xf32> to vector<16x8x1xf32>
    %3 = vector.extract_strided_slice %1 {offsets = [0, 1, 0], sizes = [16, 8, 1], strides = [1, 1, 1]} : vector<18x10x1xf32> to vector<16x8x1xf32>
    %4 = vector.extract_strided_slice %1 {offsets = [0, 2, 0], sizes = [16, 8, 1], strides = [1, 1, 1]} : vector<18x10x1xf32> to vector<16x8x1xf32>
    %5 = vector.extract_strided_slice %1 {offsets = [1, 0, 0], sizes = [16, 8, 1], strides = [1, 1, 1]} : vector<18x10x1xf32> to vector<16x8x1xf32>
    %6 = vector.extract_strided_slice %1 {offsets = [1, 1, 0], sizes = [16, 8, 1], strides = [1, 1, 1]} : vector<18x10x1xf32> to vector<16x8x1xf32>
    %7 = vector.extract_strided_slice %1 {offsets = [1, 2, 0], sizes = [16, 8, 1], strides = [1, 1, 1]} : vector<18x10x1xf32> to vector<16x8x1xf32>
    %8 = vector.extract_strided_slice %1 {offsets = [2, 0, 0], sizes = [16, 8, 1], strides = [1, 1, 1]} : vector<18x10x1xf32> to vector<16x8x1xf32>
    %9 = vector.extract_strided_slice %1 {offsets = [2, 1, 0], sizes = [16, 8, 1], strides = [1, 1, 1]} : vector<18x10x1xf32> to vector<16x8x1xf32>
    %10 = vector.extract_strided_slice %1 {offsets = [2, 2, 0], sizes = [16, 8, 1], strides = [1, 1, 1]} : vector<18x10x1xf32> to vector<16x8x1xf32>
    %11 = tpu.concatenate %2, %3, %4, %5, %6, %7, %8, %9, %10 in 2 : vector<16x8x1xf32>, vector<16x8x1xf32>, vector<16x8x1xf32>, vector<16x8x1xf32>, vector<16x8x1xf32>, vector<16x8x1xf32>, vector<16x8x1xf32>, vector<16x8x1xf32>, vector<16x8x1xf32> -> vector<16x8x9xf32>
    %12 = vector.shape_cast %11 : vector<16x8x9xf32> to vector<128x9xf32>
    %13 = arith.truncf %12 : vector<128x9xf32> to vector<128x9xbf16>
    %c0_3 = arith.constant 0 : index
    %c0_4 = arith.constant 0 : index
    %14 = vector.load %arg2[%c0_3, %c0_4] : memref<9x32xf32, #tpu.memory_space<vmem>>, vector<9x32xf32>
    %15 = arith.truncf %14 : vector<9x32xf32> to vector<9x32xbf16>
    %cst = arith.constant dense<0.000000e+00> : vector<128x32xf32>
    %16 = tpu.matmul %13, %15, %cst {dimension_numbers = #tpu.dot_dimension_numbers<[1], [0], [0], [1], [0, 0, 1, 1], [], []>} : vector<128x9xbf16>, vector<9x32xbf16>, vector<128x32xf32> -> vector<128x32xf32>
    %c0_5 = arith.constant 0 : index
    %c0_6 = arith.constant 0 : index
    %17 = vector.load %arg3[%c0_5, %c0_6] : memref<1x32xf32, #tpu.memory_space<vmem>>, vector<1x32xf32>
    %18 = vector.broadcast %17 : vector<1x32xf32> to vector<128x32xf32>
    %19 = arith.addf %16, %18 : vector<128x32xf32>
    %cst_7 = arith.constant 0.000000e+00 : f32
    %20 = vector.broadcast %cst_7 : f32 to vector<128x32xf32>
    %21 = arith.maximumf %19, %20 : vector<128x32xf32>
    %cst_8 = arith.constant 0.000000e+00 : f32
    %22 = vector.broadcast %cst_8 : f32 to vector<18x10x32xf32>
    %c0_9 = arith.constant 0 : index
    %c0_10 = arith.constant 0 : index
    %c0_11 = arith.constant 0 : index
    %23 = vector.load %arg13[%c0_9, %c0_10, %c0_11] : memref<18x10x32xf32, #tpu.memory_space<vmem>>, vector<18x10x32xf32>
    tpu.vector_store %arg13[%c0_9, %c0_10, %c0_11], %22 {strides = array<i32>} : memref<18x10x32xf32, #tpu.memory_space<vmem>>, vector<18x10x32xf32>,
    %24 = vector.shape_cast %21 : vector<128x32xf32> to vector<16x8x32xf32>
    %c1 = arith.constant 1 : index
    %c1_12 = arith.constant 1 : index
    %c0_13 = arith.constant 0 : index
    %25 = vector.load %arg13[%c1, %c1_12, %c0_13] : memref<18x10x32xf32, #tpu.memory_space<vmem>>, vector<16x8x32xf32>
    tpu.vector_store %arg13[%c1, %c1_12, %c0_13], %24 {strides = array<i32>} : memref<18x10x32xf32, #tpu.memory_space<vmem>>, vector<16x8x32xf32>,
    %c0_14 = arith.constant 0 : index
    %c0_15 = arith.constant 0 : index
    %c0_16 = arith.constant 0 : index
    %26 = vector.load %arg13[%c0_14, %c0_15, %c0_16] : memref<18x10x32xf32, #tpu.memory_space<vmem>>, vector<18x10x32xf32>
    %27 = vector.extract_strided_slice %26 {offsets = [0, 0, 0], sizes = [16, 8, 32], strides = [1, 1, 1]} : vector<18x10x32xf32> to vector<16x8x32xf32>
    %28 = vector.extract_strided_slice %26 {offsets = [0, 1, 0], sizes = [16, 8, 32], strides = [1, 1, 1]} : vector<18x10x32xf32> to vector<16x8x32xf32>
    %29 = vector.extract_strided_slice %26 {offsets = [0, 2, 0], sizes = [16, 8, 32], strides = [1, 1, 1]} : vector<18x10x32xf32> to vector<16x8x32xf32>
    %30 = vector.extract_strided_slice %26 {offsets = [1, 0, 0], sizes = [16, 8, 32], strides = [1, 1, 1]} : vector<18x10x32xf32> to vector<16x8x32xf32>
    %31 = vector.extract_strided_slice %26 {offsets = [1, 1, 0], sizes = [16, 8, 32], strides = [1, 1, 1]} : vector<18x10x32xf32> to vector<16x8x32xf32>
    %32 = vector.extract_strided_slice %26 {offsets = [1, 2, 0], sizes = [16, 8, 32], strides = [1, 1, 1]} : vector<18x10x32xf32> to vector<16x8x32xf32>
    %33 = vector.extract_strided_slice %26 {offsets = [2, 0, 0], sizes = [16, 8, 32], strides = [1, 1, 1]} : vector<18x10x32xf32> to vector<16x8x32xf32>
    %34 = vector.extract_strided_slice %26 {offsets = [2, 1, 0], sizes = [16, 8, 32], strides = [1, 1, 1]} : vector<18x10x32xf32> to vector<16x8x32xf32>
    %35 = vector.extract_strided_slice %26 {offsets = [2, 2, 0], sizes = [16, 8, 32], strides = [1, 1, 1]} : vector<18x10x32xf32> to vector<16x8x32xf32>
    %36 = tpu.concatenate %27, %28, %29, %30, %31, %32, %33, %34, %35 in 2 : vector<16x8x32xf32>, vector<16x8x32xf32>, vector<16x8x32xf32>, vector<16x8x32xf32>, vector<16x8x32xf32>, vector<16x8x32xf32>, vector<16x8x32xf32>, vector<16x8x32xf32>, vector<16x8x32xf32> -> vector<16x8x288xf32>
    %37 = vector.shape_cast %36 : vector<16x8x288xf32> to vector<128x288xf32>
    %38 = arith.truncf %37 : vector<128x288xf32> to vector<128x288xbf16>
    %c0_17 = arith.constant 0 : index
    %c0_18 = arith.constant 0 : index
    %39 = vector.load %arg4[%c0_17, %c0_18] : memref<288x64xf32, #tpu.memory_space<vmem>>, vector<288x64xf32>
    %40 = arith.truncf %39 : vector<288x64xf32> to vector<288x64xbf16>
    %cst_19 = arith.constant dense<0.000000e+00> : vector<128x64xf32>
    %41 = tpu.matmul %38, %40, %cst_19 {dimension_numbers = #tpu.dot_dimension_numbers<[1], [0], [0], [1], [0, 0, 1, 1], [], []>} : vector<128x288xbf16>, vector<288x64xbf16>, vector<128x64xf32> -> vector<128x64xf32>
    %c0_20 = arith.constant 0 : index
    %c0_21 = arith.constant 0 : index
    %42 = vector.load %arg5[%c0_20, %c0_21] : memref<1x64xf32, #tpu.memory_space<vmem>>, vector<1x64xf32>
    %43 = vector.broadcast %42 : vector<1x64xf32> to vector<128x64xf32>
    %44 = arith.addf %41, %43 : vector<128x64xf32>
    %cst_22 = arith.constant 0.000000e+00 : f32
    %45 = vector.broadcast %cst_22 : f32 to vector<128x64xf32>
    %46 = arith.maximumf %44, %45 : vector<128x64xf32>
    %cst_23 = arith.constant 0.000000e+00 : f32
    %47 = vector.broadcast %cst_23 : f32 to vector<18x10x64xf32>
    %c0_24 = arith.constant 0 : index
    %c0_25 = arith.constant 0 : index
    %c0_26 = arith.constant 0 : index
    %48 = vector.load %arg14[%c0_24, %c0_25, %c0_26] : memref<18x10x64xf32, #tpu.memory_space<vmem>>, vector<18x10x64xf32>
    tpu.vector_store %arg14[%c0_24, %c0_25, %c0_26], %47 {strides = array<i32>} : memref<18x10x64xf32, #tpu.memory_space<vmem>>, vector<18x10x64xf32>,
    %49 = vector.shape_cast %46 : vector<128x64xf32> to vector<16x8x64xf32>
    %c1_27 = arith.constant 1 : index
    %c1_28 = arith.constant 1 : index
    %c0_29 = arith.constant 0 : index
    %50 = vector.load %arg14[%c1_27, %c1_28, %c0_29] : memref<18x10x64xf32, #tpu.memory_space<vmem>>, vector<16x8x64xf32>
    tpu.vector_store %arg14[%c1_27, %c1_28, %c0_29], %49 {strides = array<i32>} : memref<18x10x64xf32, #tpu.memory_space<vmem>>, vector<16x8x64xf32>,
    %c0_30 = arith.constant 0 : index
    %c0_31 = arith.constant 0 : index
    %c0_32 = arith.constant 0 : index
    %51 = vector.load %arg14[%c0_30, %c0_31, %c0_32] : memref<18x10x64xf32, #tpu.memory_space<vmem>>, vector<18x10x64xf32>
    %52 = vector.extract_strided_slice %51 {offsets = [0, 0, 0], sizes = [16, 8, 64], strides = [1, 1, 1]} : vector<18x10x64xf32> to vector<16x8x64xf32>
    %53 = vector.extract_strided_slice %51 {offsets = [0, 1, 0], sizes = [16, 8, 64], strides = [1, 1, 1]} : vector<18x10x64xf32> to vector<16x8x64xf32>
    %54 = vector.extract_strided_slice %51 {offsets = [0, 2, 0], sizes = [16, 8, 64], strides = [1, 1, 1]} : vector<18x10x64xf32> to vector<16x8x64xf32>
    %55 = vector.extract_strided_slice %51 {offsets = [1, 0, 0], sizes = [16, 8, 64], strides = [1, 1, 1]} : vector<18x10x64xf32> to vector<16x8x64xf32>
    %56 = vector.extract_strided_slice %51 {offsets = [1, 1, 0], sizes = [16, 8, 64], strides = [1, 1, 1]} : vector<18x10x64xf32> to vector<16x8x64xf32>
    %57 = vector.extract_strided_slice %51 {offsets = [1, 2, 0], sizes = [16, 8, 64], strides = [1, 1, 1]} : vector<18x10x64xf32> to vector<16x8x64xf32>
    %58 = vector.extract_strided_slice %51 {offsets = [2, 0, 0], sizes = [16, 8, 64], strides = [1, 1, 1]} : vector<18x10x64xf32> to vector<16x8x64xf32>
    %59 = vector.extract_strided_slice %51 {offsets = [2, 1, 0], sizes = [16, 8, 64], strides = [1, 1, 1]} : vector<18x10x64xf32> to vector<16x8x64xf32>
    %60 = vector.extract_strided_slice %51 {offsets = [2, 2, 0], sizes = [16, 8, 64], strides = [1, 1, 1]} : vector<18x10x64xf32> to vector<16x8x64xf32>
    %61 = tpu.concatenate %52, %53, %54, %55, %56, %57, %58, %59, %60 in 2 : vector<16x8x64xf32>, vector<16x8x64xf32>, vector<16x8x64xf32>, vector<16x8x64xf32>, vector<16x8x64xf32>, vector<16x8x64xf32>, vector<16x8x64xf32>, vector<16x8x64xf32>, vector<16x8x64xf32> -> vector<16x8x576xf32>
    %62 = vector.shape_cast %61 : vector<16x8x576xf32> to vector<128x576xf32>
    %63 = arith.truncf %62 : vector<128x576xf32> to vector<128x576xbf16>
    %c0_33 = arith.constant 0 : index
    %c0_34 = arith.constant 0 : index
    %64 = vector.load %arg6[%c0_33, %c0_34] : memref<576x128xf32, #tpu.memory_space<vmem>>, vector<576x128xf32>
    %65 = arith.truncf %64 : vector<576x128xf32> to vector<576x128xbf16>
    %cst_35 = arith.constant dense<0.000000e+00> : vector<128x128xf32>
    %66 = tpu.matmul %63, %65, %cst_35 {dimension_numbers = #tpu.dot_dimension_numbers<[1], [0], [0], [1], [0, 0, 1, 1], [], []>} : vector<128x576xbf16>, vector<576x128xbf16>, vector<128x128xf32> -> vector<128x128xf32>
    %c0_36 = arith.constant 0 : index
    %c0_37 = arith.constant 0 : index
    %67 = vector.load %arg7[%c0_36, %c0_37] : memref<1x128xf32, #tpu.memory_space<vmem>>, vector<1x128xf32>
    %68 = vector.broadcast %67 : vector<1x128xf32> to vector<128x128xf32>
    %69 = arith.addf %66, %68 : vector<128x128xf32>
    %cst_38 = arith.constant 0.000000e+00 : f32
    %70 = vector.broadcast %cst_38 : f32 to vector<128x128xf32>
    %71 = arith.maximumf %69, %70 : vector<128x128xf32>
    %72 = arith.truncf %71 : vector<128x128xf32> to vector<128x128xbf16>
    %c0_39 = arith.constant 0 : index
    %c0_40 = arith.constant 0 : index
    %73 = vector.load %arg8[%c0_39, %c0_40] : memref<64x128xf32, #tpu.memory_space<vmem>>, vector<64x128xf32>
    %74 = arith.truncf %73 : vector<64x128xf32> to vector<64x128xbf16>
    %cst_41 = arith.constant dense<0.000000e+00> : vector<64x128xf32>
    %75 = tpu.matmul %74, %72, %cst_41 {dimension_numbers = #tpu.dot_dimension_numbers<[1], [0], [0], [1], [0, 0, 1, 1], [], []>} : vector<64x128xbf16>, vector<128x128xbf16>, vector<64x128xf32> -> vector<64x128xf32>
    %c0_42 = arith.constant 0 : index
    %c0_43 = arith.constant 0 : index
    %76 = vector.load %arg9[%c0_42, %c0_43] : memref<64x1xf32, #tpu.memory_space<vmem>>, vector<64x1xf32>
    %77 = vector.broadcast %76 : vector<64x1xf32> to vector<64x128xf32>
    %78 = arith.addf %75, %77 : vector<64x128xf32>
    %cst_44 = arith.constant 0.000000e+00 : f32
    %79 = vector.broadcast %cst_44 : f32 to vector<64x128xf32>
    %80 = arith.maximumf %78, %79 : vector<64x128xf32>
    %c0_45 = arith.constant 0 : index
    %c0_46 = arith.constant 0 : index
    %81 = vector.load %arg10[%c0_45, %c0_46] : memref<128x64xf32, #tpu.memory_space<vmem>>, vector<128x64xf32>
    %82 = arith.truncf %81 : vector<128x64xf32> to vector<128x64xbf16>
    %83 = arith.truncf %80 : vector<64x128xf32> to vector<64x128xbf16>
    %cst_47 = arith.constant dense<0.000000e+00> : vector<128x128xf32>
    %84 = tpu.matmul %82, %83, %cst_47 {dimension_numbers = #tpu.dot_dimension_numbers<[1], [0], [0], [1], [0, 0, 1, 1], [], []>} : vector<128x64xbf16>, vector<64x128xbf16>, vector<128x128xf32> -> vector<128x128xf32>
    %c0_48 = arith.constant 0 : index
    %c0_49 = arith.constant 0 : index
    %85 = vector.load %arg11[%c0_48, %c0_49] : memref<128x1xf32, #tpu.memory_space<vmem>>, vector<128x1xf32>
    %86 = vector.broadcast %85 : vector<128x1xf32> to vector<128x128xf32>
    %87 = arith.addf %84, %86 : vector<128x128xf32>
    %cst_50 = arith.constant dense<0xFF800000> : vector<128xf32>
    %88 = vector.multi_reduction <maximumf>, %87, %cst_50 [1] : vector<128x128xf32> to vector<128xf32>
    %89 = vector.shape_cast %88 : vector<128xf32> to vector<128x1xf32>
    %90 = vector.broadcast %89 : vector<128x1xf32> to vector<128x128xf32>
    %91 = arith.subf %87, %90 : vector<128x128xf32>
    %92 = math.exp %91 : vector<128x128xf32>
    %cst_51 = arith.constant dense<0.000000e+00> : vector<128xf32>
    %93 = vector.multi_reduction <add>, %92, %cst_51 [1] : vector<128x128xf32> to vector<128xf32>
    %94 = vector.shape_cast %93 : vector<128xf32> to vector<128x1xf32>
    %95 = vector.broadcast %94 : vector<128x1xf32> to vector<128x128xf32>
    %96 = arith.divf %92, %95 : vector<128x128xf32>
    %97 = arith.mulf %71, %96 : vector<128x128xf32>
    %cst_52 = arith.constant dense<0.000000e+00> : vector<128xf32>
    %98 = vector.multi_reduction <add>, %97, %cst_52 [1] : vector<128x128xf32> to vector<128xf32>
    %99 = vector.shape_cast %98 : vector<128xf32> to vector<128x1xf32>
    %100 = vector.shape_cast %99 : vector<128x1xf32> to vector<1x128x1xf32>
    %c0_53 = arith.constant 0 : index
    %c0_54 = arith.constant 0 : index
    %c0_55 = arith.constant 0 : index
    %101 = vector.load %arg12[%c0_53, %c0_54, %c0_55] : memref<1x128x1xf32, #tpu.memory_space<vmem>>, vector<1x128x1xf32>
    tpu.vector_store %arg12[%c0_53, %c0_54, %c0_55], %100 {strides = array<i32>} : memref<1x128x1xf32, #tpu.memory_space<vmem>>, vector<1x128x1xf32>,
    return
  }
  func.func @transform_0(%arg0: i32) -> (i32, i32, i32, i32) {
    %c0_i32 = arith.constant 0 : i32
    %c0_i32_0 = arith.constant 0 : i32
    %c0_i32_1 = arith.constant 0 : i32
    %c0_i32_2 = arith.constant 0 : i32
    return %arg0, %c0_i32, %c0_i32_0, %c0_i32_1 : i32, i32, i32, i32
  }
  func.func @transform_1(%arg0: i32) -> (i32, i32) {
    %c0_i32 = arith.constant 0 : i32
    %c0_i32_0 = arith.constant 0 : i32
    %c0_i32_1 = arith.constant 0 : i32
    return %c0_i32, %c0_i32_0 : i32, i32
  }
  func.func @transform_2(%arg0: i32) -> (i32, i32) {
    %c0_i32 = arith.constant 0 : i32
    %c0_i32_0 = arith.constant 0 : i32
    %c0_i32_1 = arith.constant 0 : i32
    return %c0_i32, %c0_i32_0 : i32, i32
  }
  func.func @transform_3(%arg0: i32) -> (i32, i32) {
    %c0_i32 = arith.constant 0 : i32
    %c0_i32_0 = arith.constant 0 : i32
    %c0_i32_1 = arith.constant 0 : i32
    return %c0_i32, %c0_i32_0 : i32, i32
  }
  func.func @transform_4(%arg0: i32) -> (i32, i32) {
    %c0_i32 = arith.constant 0 : i32
    %c0_i32_0 = arith.constant 0 : i32
    %c0_i32_1 = arith.constant 0 : i32
    return %c0_i32, %c0_i32_0 : i32, i32
  }
  func.func @transform_5(%arg0: i32) -> (i32, i32) {
    %c0_i32 = arith.constant 0 : i32
    %c0_i32_0 = arith.constant 0 : i32
    %c0_i32_1 = arith.constant 0 : i32
    return %c0_i32, %c0_i32_0 : i32, i32
  }
  func.func @transform_6(%arg0: i32) -> (i32, i32) {
    %c0_i32 = arith.constant 0 : i32
    %c0_i32_0 = arith.constant 0 : i32
    %c0_i32_1 = arith.constant 0 : i32
    return %c0_i32, %c0_i32_0 : i32, i32
  }
  func.func @transform_7(%arg0: i32) -> (i32, i32) {
    %c0_i32 = arith.constant 0 : i32
    %c0_i32_0 = arith.constant 0 : i32
    %c0_i32_1 = arith.constant 0 : i32
    return %c0_i32, %c0_i32_0 : i32, i32
  }
  func.func @transform_8(%arg0: i32) -> (i32, i32) {
    %c0_i32 = arith.constant 0 : i32
    %c0_i32_0 = arith.constant 0 : i32
    %c0_i32_1 = arith.constant 0 : i32
    return %c0_i32, %c0_i32_0 : i32, i32
  }
  func.func @transform_9(%arg0: i32) -> (i32, i32) {
    %c0_i32 = arith.constant 0 : i32
    %c0_i32_0 = arith.constant 0 : i32
    %c0_i32_1 = arith.constant 0 : i32
    return %c0_i32, %c0_i32_0 : i32, i32
  }
  func.func @transform_10(%arg0: i32) -> (i32, i32) {
    %c0_i32 = arith.constant 0 : i32
    %c0_i32_0 = arith.constant 0 : i32
    %c0_i32_1 = arith.constant 0 : i32
    return %c0_i32, %c0_i32_0 : i32, i32
  }
  func.func @transform_11(%arg0: i32) -> (i32, i32, i32) {
    %c0_i32 = arith.constant 0 : i32
    %c0_i32_0 = arith.constant 0 : i32
    %c0_i32_1 = arith.constant 0 : i32
    return %arg0, %c0_i32, %c0_i32_0 : i32, i32, i32
  }
}

</mosaic_0001>

<llo_original>
// kernel: my_model_forward.1
$region0: #{my_model_forward.1}
  #allocation0 [shape = 'u32[]', space=smem, size = 0x4, offset = 0x4, fixed_abs, tag = 'smem constant byte address 0x4 - core index']
  #allocation1 [shape = 'u32[144,128]{1,0:T(1,128)}', space=vmem, size = 0x12000, scoped, tag = 'internal scratch']
  #allocation2 [shape = 'f32[18,10,32]{2,1,0:T(8,128)}', space=vmem, size = 0x24000, scoped, tag = 'scratch operand']
  #allocation3 [shape = 'f32[18,10,64]{2,1,0:T(8,128)}', space=vmem, size = 0x24000, scoped, tag = 'scratch operand']
  %s0 = inlined_call_operand.vmem [shape: f32[2,18,10,1], index: 0, kind: input, shape index: {}]
  %s1 = inlined_call_operand.vmem [shape: f32[9,32], index: 1, kind: input, shape index: {}]
  %s2 = inlined_call_operand.vmem [shape: f32[1,32], index: 2, kind: input, shape index: {}]
  %s3 = inlined_call_operand.vmem [shape: f32[288,64], index: 3, kind: input, shape index: {}]
  %s4 = inlined_call_operand.vmem [shape: f32[1,64], index: 4, kind: input, shape index: {}]
  %s5 = inlined_call_operand.vmem [shape: f32[576,128], index: 5, kind: input, shape index: {}]
  %s6 = inlined_call_operand.vmem [shape: f32[1,128], index: 6, kind: input, shape index: {}]
  %s7 = inlined_call_operand.vmem [shape: f32[64,128], index: 7, kind: input, shape index: {}]
  %s8 = inlined_call_operand.vmem [shape: f32[64,1], index: 8, kind: input, shape index: {}]
  %s9 = inlined_call_operand.vmem [shape: f32[128,64], index: 9, kind: input, shape index: {}]
  %s10 = inlined_call_operand.vmem [shape: f32[128,1], index: 10, kind: input, shape index: {}]
  %s11 = inlined_call_operand.vmem [shape: f32[2,128,1], index: 11, kind: output, shape index: {}]
  %s12 = sld [smem:[#allocation0]]
  $region77: #{my_model_forward.1} parent=0
    _
  %s14 = ssub.s32 1, %s12
  %s15 = scalar_select 0, %s14, %s12
  loop: start=0, step=1, limit=4
  $region2: #{my_model_forward.1} parent=0 // loop_pre_header
    _
  $region3: #{my_model_forward.1} parent=0 // loop_header
    %s17 = sphi 0, %s21
    %p18 = scmp.ge.s32.totalorder %s17, 4
    %s27 = sphi 0, %s29
    %s30 = sphi 0, %s27
    %s31 = sphi 0, %s30
    %s47 = sphi 0, %s31
    %s51 = sphi 0, %s51
    %s53 = sphi 0, %s51
    %s54 = sphi 0, %s53
    %s68 = sphi 0, %s54
    %s72 = sphi 0, %s72
    %s74 = sphi 0, %s72
    %s75 = sphi 0, %s74
    %s89 = sphi 0, %s75
    %s93 = sphi 0, %s93
    %s95 = sphi 0, %s93
    %s96 = sphi 0, %s95
    %s110 = sphi 0, %s96
    %s114 = sphi 0, %s114
    %s116 = sphi 0, %s114
    %s117 = sphi 0, %s116
    %s131 = sphi 0, %s117
    %s135 = sphi 0, %s135
    %s137 = sphi 0, %s135
    %s138 = sphi 0, %s137
    %s152 = sphi 0, %s138
    %s156 = sphi 0, %s156
    %s158 = sphi 0, %s156
    %s159 = sphi 0, %s158
    %s173 = sphi 0, %s159
    %s177 = sphi 0, %s177
    %s179 = sphi 0, %s177
    %s180 = sphi 0, %s179
    %s194 = sphi 0, %s180
    %s198 = sphi 0, %s198
    %s200 = sphi 0, %s198
    %s201 = sphi 0, %s200
    %s215 = sphi 0, %s201
    %s219 = sphi 0, %s219
    %s221 = sphi 0, %s219
    %s222 = sphi 0, %s221
    %s236 = sphi 0, %s222
    %s240 = sphi 0, %s240
    %s242 = sphi 0, %s240
    %s243 = sphi 0, %s242
    %s257 = sphi 0, %s243
    %s263 = sphi 0, %s265
    %s266 = sphi 0, %s263
    %s267 = sphi 0, %s266
    %s283 = sphi 0, %s267
  $region4: #{my_model_forward.1} parent=0 // loop_header_branch
    %20 = sbr.rel (%p18) target = $region8
  $region5: #{my_model_forward.1} parent=0 // loop_body
    %s22 = ssub.s32 %s17, 1
    %s23 = ssub.s32 %s17, 2
    %s24 = sadd.s32 %s17, 1
    %s25 = ssub.s32 %s17, %s24
    %p26 = scmp.eq.s32.totalorder %s25, 0
    %s28 = sadd.s32 %s27, 1
    %s29 = scalar_select %p26, %s27, %s28
    %p32 = pneg %p26
    %p33 = scmp.eq.s32.totalorder %s17, 1
    %p34 = por %p32, %p33
    %p35 = scmp.ne.s32.totalorder %s27, %s30
    %p36 = scmp.eq.s32.totalorder %s17, 0
    %p37 = por %p35, %p36
    %p38 = scmp.ne.s32.totalorder %s27, %s30
    %p39 = scmp.eq.s32.totalorder %s22, 1
    %p40 = por %p38, %p39
    %p41 = scmp.ne.s32.totalorder %s30, %s31
    %p42 = scmp.eq.s32.totalorder %s22, 0
    %p43 = por %p41, %p42
    %p44 = scmp.ne.s32.totalorder %s30, %s31
    %p45 = scmp.eq.s32.totalorder %s23, 1
    %p46 = por %p44, %p45
    %p48 = scmp.ne.s32.totalorder %s31, %s47
    %p49 = scmp.eq.s32.totalorder %s23, 0
    %p50 = por %p48, %p49
    %s52 = sadd.s32 %s51, 1
    %p55 = scmp.eq.s32.totalorder %s17, 1
    %p56 = scmp.ne.s32.totalorder %s51, %s53
    %p57 = scmp.eq.s32.totalorder %s17, 0
    %p58 = por %p56, %p57
    %p59 = scmp.ne.s32.totalorder %s51, %s53
    %p60 = scmp.eq.s32.totalorder %s22, 1
    %p61 = por %p59, %p60
    %p62 = scmp.ne.s32.totalorder %s53, %s54
    %p63 = scmp.eq.s32.totalorder %s22, 0
    %p64 = por %p62, %p63
    %p65 = scmp.ne.s32.totalorder %s53, %s54
    %p66 = scmp.eq.s32.totalorder %s23, 1
    %p67 = por %p65, %p66
    %p69 = scmp.ne.s32.totalorder %s54, %s68
    %p70 = scmp.eq.s32.totalorder %s23, 0
    %p71 = por %p69, %p70
    %s73 = sadd.s32 %s72, 1
    %p76 = scmp.eq.s32.totalorder %s17, 1
    %p77 = scmp.ne.s32.totalorder %s72, %s74
    %p78 = scmp.eq.s32.totalorder %s17, 0
    %p79 = por %p77, %p78
    %p80 = scmp.ne.s32.totalorder %s72, %s74
    %p81 = scmp.eq.s32.totalorder %s22, 1
    %p82 = por %p80, %p81
    %p83 = scmp.ne.s32.totalorder %s74, %s75
    %p84 = scmp.eq.s32.totalorder %s22, 0
    %p85 = por %p83, %p84
    %p86 = scmp.ne.s32.totalorder %s74, %s75
    %p87 = scmp.eq.s32.totalorder %s23, 1
    %p88 = por %p86, %p87
    %p90 = scmp.ne.s32.totalorder %s75, %s89
    %p91 = scmp.eq.s32.totalorder %s23, 0
    %p92 = por %p90, %p91
    %s94 = sadd.s32 %s93, 1
    %p97 = scmp.eq.s32.totalorder %s17, 1
    %p98 = scmp.ne.s32.totalorder %s93, %s95
    %p99 = scmp.eq.s32.totalorder %s17, 0
    %p100 = por %p98, %p99
    %p101 = scmp.ne.s32.totalorder %s93, %s95
    %p102 = scmp.eq.s32.totalorder %s22, 1
    %p103 = por %p101, %p102
    %p104 = scmp.ne.s32.totalorder %s95, %s96
    %p105 = scmp.eq.s32.totalorder %s22, 0
    %p106 = por %p104, %p105
    %p107 = scmp.ne.s32.totalorder %s95, %s96
    %p108 = scmp.eq.s32.totalorder %s23, 1
    %p109 = por %p107, %p108
    %p111 = scmp.ne.s32.totalorder %s96, %s110
    %p112 = scmp.eq.s32.totalorder %s23, 0
    %p113 = por %p111, %p112
    %s115 = sadd.s32 %s114, 1
    %p118 = scmp.eq.s32.totalorder %s17, 1
    %p119 = scmp.ne.s32.totalorder %s114, %s116
    %p120 = scmp.eq.s32.totalorder %s17, 0
    %p121 = por %p119, %p120
    %p122 = scmp.ne.s32.totalorder %s114, %s116
    %p123 = scmp.eq.s32.totalorder %s22, 1
    %p124 = por %p122, %p123
    %p125 = scmp.ne.s32.totalorder %s116, %s117
    %p126 = scmp.eq.s32.totalorder %s22, 0
    %p127 = por %p125, %p126
    %p128 = scmp.ne.s32.totalorder %s116, %s117
    %p129 = scmp.eq.s32.totalorder %s23, 1
    %p130 = por %p128, %p129
    %p132 = scmp.ne.s32.totalorder %s117, %s131
    %p133 = scmp.eq.s32.totalorder %s23, 0
    %p134 = por %p132, %p133
    %s136 = sadd.s32 %s135, 1
    %p139 = scmp.eq.s32.totalorder %s17, 1
    %p140 = scmp.ne.s32.totalorder %s135, %s137
    %p141 = scmp.eq.s32.totalorder %s17, 0
    %p142 = por %p140, %p141
    %p143 = scmp.ne.s32.totalorder %s135, %s137
    %p144 = scmp.eq.s32.totalorder %s22, 1
    %p145 = por %p143, %p144
    %p146 = scmp.ne.s32.totalorder %s137, %s138
    %p147 = scmp.eq.s32.totalorder %s22, 0
    %p148 = por %p146, %p147
    %p149 = scmp.ne.s32.totalorder %s137, %s138
    %p150 = scmp.eq.s32.totalorder %s23, 1
    %p151 = por %p149, %p150
    %p153 = scmp.ne.s32.totalorder %s138, %s152
    %p154 = scmp.eq.s32.totalorder %s23, 0
    %p155 = por %p153, %p154
    %s157 = sadd.s32 %s156, 1
    %p160 = scmp.eq.s32.totalorder %s17, 1
    %p161 = scmp.ne.s32.totalorder %s156, %s158
    %p162 = scmp.eq.s32.totalorder %s17, 0
    %p163 = por %p161, %p162
    %p164 = scmp.ne.s32.totalorder %s156, %s158
    %p165 = scmp.eq.s32.totalorder %s22, 1
    %p166 = por %p164, %p165
    %p167 = scmp.ne.s32.totalorder %s158, %s159
    %p168 = scmp.eq.s32.totalorder %s22, 0
    %p169 = por %p167, %p168
    %p170 = scmp.ne.s32.totalorder %s158, %s159
    %p171 = scmp.eq.s32.totalorder %s23, 1
    %p172 = por %p170, %p171
    %p174 = scmp.ne.s32.totalorder %s159, %s173
    %p175 = scmp.eq.s32.totalorder %s23, 0
    %p176 = por %p174, %p175
    %s178 = sadd.s32 %s177, 1
    %p181 = scmp.eq.s32.totalorder %s17, 1
    %p182 = scmp.ne.s32.totalorder %s177, %s179
    %p183 = scmp.eq.s32.totalorder %s17, 0
    %p184 = por %p182, %p183
    %p185 = scmp.ne.s32.totalorder %s177, %s179
    %p186 = scmp.eq.s32.totalorder %s22, 1
    %p187 = por %p185, %p186
    %p188 = scmp.ne.s32.totalorder %s179, %s180
    %p189 = scmp.eq.s32.totalorder %s22, 0
    %p190 = por %p188, %p189
    %p191 = scmp.ne.s32.totalorder %s179, %s180
    %p192 = scmp.eq.s32.totalorder %s23, 1
    %p193 = por %p191, %p192
    %p195 = scmp.ne.s32.totalorder %s180, %s194
    %p196 = scmp.eq.s32.totalorder %s23, 0
    %p197 = por %p195, %p196
    %s199 = sadd.s32 %s198, 1
    %p202 = scmp.eq.s32.totalorder %s17, 1
    %p203 = scmp.ne.s32.totalorder %s198, %s200
    %p204 = scmp.eq.s32.totalorder %s17, 0
    %p205 = por %p203, %p204
    %p206 = scmp.ne.s32.totalorder %s198, %s200
    %p207 = scmp.eq.s32.totalorder %s22, 1
    %p208 = por %p206, %p207
    %p209 = scmp.ne.s32.totalorder %s200, %s201
    %p210 = scmp.eq.s32.totalorder %s22, 0
    %p211 = por %p209, %p210
    %p212 = scmp.ne.s32.totalorder %s200, %s201
    %p213 = scmp.eq.s32.totalorder %s23, 1
    %p214 = por %p212, %p213
    %p216 = scmp.ne.s32.totalorder %s201, %s215
    %p217 = scmp.eq.s32.totalorder %s23, 0
    %p218 = por %p216, %p217
    %s220 = sadd.s32 %s219, 1
    %p223 = scmp.eq.s32.totalorder %s17, 1
    %p224 = scmp.ne.s32.totalorder %s219, %s221
    %p225 = scmp.eq.s32.totalorder %s17, 0
    %p226 = por %p224, %p225
    %p227 = scmp.ne.s32.totalorder %s219, %s221
    %p228 = scmp.eq.s32.totalorder %s22, 1
    %p229 = por %p227, %p228
    %p230 = scmp.ne.s32.totalorder %s221, %s222
    %p231 = scmp.eq.s32.totalorder %s22, 0
    %p232 = por %p230, %p231
    %p233 = scmp.ne.s32.totalorder %s221, %s222
    %p234 = scmp.eq.s32.totalorder %s23, 1
    %p235 = por %p233, %p234
    %p237 = scmp.ne.s32.totalorder %s222, %s236
    %p238 = scmp.eq.s32.totalorder %s23, 0
    %p239 = por %p237, %p238
    %s241 = sadd.s32 %s240, 1
    %p244 = scmp.eq.s32.totalorder %s17, 1
    %p245 = scmp.ne.s32.totalorder %s240, %s242
    %p246 = scmp.eq.s32.totalorder %s17, 0
    %p247 = por %p245, %p246
    %p248 = scmp.ne.s32.totalorder %s240, %s242
    %p249 = scmp.eq.s32.totalorder %s22, 1
    %p250 = por %p248, %p249
    %p251 = scmp.ne.s32.totalorder %s242, %s243
    %p252 = scmp.eq.s32.totalorder %s22, 0
    %p253 = por %p251, %p252
    %p254 = scmp.ne.s32.totalorder %s242, %s243
    %p255 = scmp.eq.s32.totalorder %s23, 1
    %p256 = por %p254, %p255
    %p258 = scmp.ne.s32.totalorder %s243, %s257
    %p259 = scmp.eq.s32.totalorder %s23, 0
    %p260 = por %p258, %p259
    %s261 = ssub.s32 %s17, %s24
    %p262 = scmp.eq.s32.totalorder %s261, 0
    %s264 = sadd.s32 %s263, 1
    %s265 = scalar_select %p262, %s263, %s264
    %p268 = pneg %p262
    %p269 = scmp.eq.s32.totalorder %s17, 1
    %p270 = por %p268, %p269
    %p271 = scmp.ne.s32.totalorder %s263, %s266
    %p272 = scmp.eq.s32.totalorder %s17, 0
    %p273 = por %p271, %p272
    %p274 = scmp.ne.s32.totalorder %s263, %s266
    %p275 = scmp.eq.s32.totalorder %s22, 1
    %p276 = por %p274, %p275
    %p277 = scmp.ne.s32.totalorder %s266, %s267
    %p278 = scmp.eq.s32.totalorder %s22, 0
    %p279 = por %p277, %p278
    %p280 = scmp.ne.s32.totalorder %s266, %s267
    %p281 = scmp.eq.s32.totalorder %s23, 1
    %p282 = por %p280, %p281
    %p284 = scmp.ne.s32.totalorder %s267, %s283
    %p285 = scmp.eq.s32.totalorder %s23, 0
    %p286 = por %p284, %p285
    %p287 = scmp.le.s32.totalorder 1, %s17
    %p288 = scmp.lt.s32.totalorder %s17, 3
    %p289 = pnand %p287, %p288
    %p290 = pneg %p289
    // Predicated region
    $region9: #{my_model_forward.1} parent=5 // pred_check
      _
    $region10: #{my_model_forward.1} parent=5 // pred_check_branch
      %292 = sbr.rel (%p289) target = $region12
    $region11: #{my_model_forward.1} parent=5 // pred_region
      %s293 = ssub.s32 %s17, 1
      // Predicated region
      $region13: #{my_model_forward.1} parent=11 // pred_check
        %p294 = pneg %p64
      $region14: #{my_model_forward.1} parent=11 // pred_check_branch
        %296 = sbr.rel (%p294) target = $region16
      $region15: #{my_model_forward.1} parent=11 // pred_region
        _
      $region16: #{my_model_forward.1} parent=11 // pred_fallthru
        _
      // Predicated region
      $region17: #{my_model_forward.1} parent=11 // pred_check
        %p297 = pneg %p85
      $region18: #{my_model_forward.1} parent=11 // pred_check_branch
        %299 = sbr.rel (%p297) target = $region20
      $region19: #{my_model_forward.1} parent=11 // pred_region
        _
      $region20: #{my_model_forward.1} parent=11 // pred_fallthru
        _
      // Predicated region
      $region21: #{my_model_forward.1} parent=11 // pred_check
        %p300 = pneg %p106
      $region22: #{my_model_forward.1} parent=11 // pred_check_branch
        %302 = sbr.rel (%p300) target = $region24
      $region23: #{my_model_forward.1} parent=11 // pred_region
        _
      $region24: #{my_model_forward.1} parent=11 // pred_fallthru
        _
      // Predicated region
      $region25: #{my_model_forward.1} parent=11 // pred_check
        %p303 = pneg %p127
      $region26: #{my_model_forward.1} parent=11 // pred_check_branch
        %305 = sbr.rel (%p303) target = $region28
      $region27: #{my_model_forward.1} parent=11 // pred_region
        _
      $region28: #{my_model_forward.1} parent=11 // pred_fallthru
        _
      // Predicated region
      $region29: #{my_model_forward.1} parent=11 // pred_check
        %p306 = pneg %p148
      $region30: #{my_model_forward.1} parent=11 // pred_check_branch
        %308 = sbr.rel (%p306) target = $region32
      $region31: #{my_model_forward.1} parent=11 // pred_region
        _
      $region32: #{my_model_forward.1} parent=11 // pred_fallthru
        _
      // Predicated region
      $region33: #{my_model_forward.1} parent=11 // pred_check
        %p309 = pneg %p169
      $region34: #{my_model_forward.1} parent=11 // pred_check_branch
        %311 = sbr.rel (%p309) target = $region36
      $region35: #{my_model_forward.1} parent=11 // pred_region
        _
      $region36: #{my_model_forward.1} parent=11 // pred_fallthru
        _
      // Predicated region
      $region37: #{my_model_forward.1} parent=11 // pred_check
        %p312 = pneg %p190
      $region38: #{my_model_forward.1} parent=11 // pred_check_branch
        %314 = sbr.rel (%p312) target = $region40
      $region39: #{my_model_forward.1} parent=11 // pred_region
        _
      $region40: #{my_model_forward.1} parent=11 // pred_fallthru
        _
      // Predicated region
      $region41: #{my_model_forward.1} parent=11 // pred_check
        %p315 = pneg %p211
      $region42: #{my_model_forward.1} parent=11 // pred_check_branch
        %317 = sbr.rel (%p315) target = $region44
      $region43: #{my_model_forward.1} parent=11 // pred_region
        _
      $region44: #{my_model_forward.1} parent=11 // pred_fallthru
        _
      // Predicated region
      $region45: #{my_model_forward.1} parent=11 // pred_check
        %p318 = pneg %p232
      $region46: #{my_model_forward.1} parent=11 // pred_check_branch
        %320 = sbr.rel (%p318) target = $region48
      $region47: #{my_model_forward.1} parent=11 // pred_region
        _
      $region48: #{my_model_forward.1} parent=11 // pred_fallthru
        _
      // Predicated region
      $region49: #{my_model_forward.1} parent=11 // pred_check
        %p321 = pneg %p253
      $region50: #{my_model_forward.1} parent=11 // pred_check_branch
        %323 = sbr.rel (%p321) target = $region52
      $region51: #{my_model_forward.1} parent=11 // pred_region
        _
      $region52: #{my_model_forward.1} parent=11 // pred_fallthru
        _
    $region12: #{my_model_forward.1} parent=5 // pred_fallthru
      _
    %p324 = scmp.lt.s32.totalorder %s17, 2
    // Predicated region
    $region53: #{my_model_forward.1} parent=5 // pred_check
      %p325 = pneg %p324
    $region54: #{my_model_forward.1} parent=5 // pred_check_branch
      %327 = sbr.rel (%p325) target = $region56
    $region55: #{my_model_forward.1} parent=5 // pred_region
      // Predicated region
      $region57: #{my_model_forward.1} parent=55 // pred_check
        %p328 = pneg %p37
      $region58: #{my_model_forward.1} parent=55 // pred_check_branch
        %330 = sbr.rel (%p328) target = $region60
      $region59: #{my_model_forward.1} parent=55 // pred_region
        %p331 = scmp.lt.s32.totalorder %s17, 1
        %s332 = scalar_select %p331, %s17, 1
        %s333 = smul.addr %s332, 36
        %s334 = smul.addr %s333, 8
        %s335 = scalar_lea.vmem %s0, %s334
      $region60: #{my_model_forward.1} parent=55 // pred_fallthru
        _
    $region56: #{my_model_forward.1} parent=5 // pred_fallthru
      _
    %p336 = scmp.le.s32.totalorder 1, %s17
    %p337 = scmp.lt.s32.totalorder %s17, 3
    %p338 = pnand %p336, %p337
    %p339 = pneg %p338
    // Predicated region
    $region61: #{my_model_forward.1} parent=5 // pred_check
      _
    $region62: #{my_model_forward.1} parent=5 // pred_check_branch
      %341 = sbr.rel (%p338) target = $region64
    $region63: #{my_model_forward.1} parent=5 // pred_region
      %s342 = ssub.s32 %s17, 1
      %p343 = scmp.lt.s32.totalorder %s22, 1
      %s344 = scalar_select %p343, %s22, 1
      %s345 = smul.addr %s344, 36
      %s346 = smul.addr %s345, 8
      %s347 = scalar_lea.vmem %s0, %s346
      %p348 = pneg %p43
      %p349 = pneg %p40
      %p350 = pneg %p64
      %p351 = pneg %p61
      %p352 = pneg %p85
      %p353 = pneg %p82
      %p354 = pneg %p106
      %p355 = pneg %p103
      %p356 = pneg %p127
      %p357 = pneg %p124
      %p358 = pneg %p148
      %p359 = pneg %p145
      %p360 = pneg %p169
      %p361 = pneg %p166
      %p362 = pneg %p190
      %p363 = pneg %p187
      %p364 = pneg %p211
      %p365 = pneg %p208
      %p366 = pneg %p232
      %p367 = pneg %p229
      %p368 = pneg %p253
      %p369 = pneg %p250
      %p370 = pneg %p279
      %p371 = pneg %p276
      %p372 = scmp.lt.s32.totalorder %s22, 1
      %s373 = scalar_select %p372, %s22, 1
      %s374 = smul.addr %s373, 16
      %s375 = smul.addr %s374, 8
      %s376 = scalar_lea.vmem %s11, %s375
      %p377 = scmp.lt.s32.totalorder %s22, 1
      %s378 = scalar_select %p377, %s22, 1
      %s379 = smul.addr %s378, 36
      %s380 = smul.addr %s379, 8
      %s381 = scalar_lea.vmem %s0, %s380
      %p382 = scmp.lt.s32.totalorder %s22, 1
      %s383 = scalar_select %p382, %s22, 1
      %s384 = smul.addr %s383, 16
      %s385 = smul.addr %s384, 8
      %s386 = scalar_lea.vmem %s11, %s385
      %v388 = vld [vmem:[%s381] sm:$0xff]
      %v389 = vld [vmem:[%s381 + $0x8] sm:$0x3]
      %v390 = vld [vmem:[%s381 + $0x10] sm:$0xff]
      %v391 = vld [vmem:[%s381 + $0x18] sm:$0x3]
      %v392 = vld [vmem:[%s381 + $0x20] sm:$0xff]
      %v393 = vld [vmem:[%s381 + $0x28] sm:$0x3]
      %v394 = vld [vmem:[%s381 + $0x30] sm:$0xff]
      %v395 = vld [vmem:[%s381 + $0x38] sm:$0x3]
      %v396 = vld [vmem:[%s381 + $0x40] sm:$0xff]
      %v397 = vld [vmem:[%s381 + $0x48] sm:$0x3]
      %v398 = vld [vmem:[%s381 + $0x50] sm:$0xff]
      %v399 = vld [vmem:[%s381 + $0x58] sm:$0x3]
      %v400 = vld [vmem:[%s381 + $0x60] sm:$0xff]
      %v401 = vld [vmem:[%s381 + $0x68] sm:$0x3]
      %v402 = vld [vmem:[%s381 + $0x70] sm:$0xff]
      %v403 = vld [vmem:[%s381 + $0x78] sm:$0x3]
      %v404 = vld [vmem:[%s381 + $0x80] sm:$0xff]
      %v405 = vld [vmem:[%s381 + $0x88] sm:$0x3]
      %v406 = vld [vmem:[%s381 + $0x90] sm:$0xff]
      %v407 = vld [vmem:[%s381 + $0x98] sm:$0x3]
      %v408 = vld [vmem:[%s381 + $0xa0] sm:$0xff]
      %v409 = vld [vmem:[%s381 + $0xa8] sm:$0x3]
      %v410 = vld [vmem:[%s381 + $0xb0] sm:$0xff]
      %v411 = vld [vmem:[%s381 + $0xb8] sm:$0x3]
      %v412 = vld [vmem:[%s381 + $0xc0] sm:$0xff]
      %v413 = vld [vmem:[%s381 + $0xc8] sm:$0x3]
      %v414 = vld [vmem:[%s381 + $0xd0] sm:$0xff]
      %v415 = vld [vmem:[%s381 + $0xd8] sm:$0x3]
      %v416 = vld [vmem:[%s381 + $0xe0] sm:$0xff]
      %v417 = vld [vmem:[%s381 + $0xe8] sm:$0x3]
      %v418 = vld [vmem:[%s381 + $0xf0] sm:$0xff]
      %v419 = vld [vmem:[%s381 + $0xf8] sm:$0x3]
      %v420 = vld [vmem:[%s381 + $0x100] sm:$0xff]
      %v421 = vld [vmem:[%s381 + $0x108] sm:$0x3]
      %v422 = vld [vmem:[%s381 + $0x110] sm:$0xff]
      %v423 = vld [vmem:[%s381 + $0x118] sm:$0x3]
      %vm456 = vcmask 1046528
      %v457 = vrot.slane %v388, 1
      %v458 = vrot.slane %v389, 1
      %v459 = vsel %vm456, %v457, %v458
      %v460 = vrot.slane %v390, 1
      %v461 = vrot.slane %v391, 1
      %v462 = vsel %vm456, %v460, %v461
      %v463 = vrot.slane %v392, 1
      %v464 = vrot.slane %v393, 1
      %v465 = vsel %vm456, %v463, %v464
      %v466 = vrot.slane %v394, 1
      %v467 = vrot.slane %v395, 1
      %v468 = vsel %vm456, %v466, %v467
      %v469 = vrot.slane %v396, 1
      %v470 = vrot.slane %v397, 1
      %v471 = vsel %vm456, %v469, %v470
      %v472 = vrot.slane %v398, 1
      %v473 = vrot.slane %v399, 1
      %v474 = vsel %vm456, %v472, %v473
      %v475 = vrot.slane %v400, 1
      %v476 = vrot.slane %v401, 1
      %v477 = vsel %vm456, %v475, %v476
      %v478 = vrot.slane %v402, 1
      %v479 = vrot.slane %v403, 1
      %v480 = vsel %vm456, %v478, %v479
      %v481 = vrot.slane %v404, 1
      %v482 = vrot.slane %v405, 1
      %v483 = vsel %vm456, %v481, %v482
      %v484 = vrot.slane %v406, 1
      %v485 = vrot.slane %v407, 1
      %v486 = vsel %vm456, %v484, %v485
      %v487 = vrot.slane %v408, 1
      %v488 = vrot.slane %v409, 1
      %v489 = vsel %vm456, %v487, %v488
      %v490 = vrot.slane %v410, 1
      %v491 = vrot.slane %v411, 1
      %v492 = vsel %vm456, %v490, %v491
      %v493 = vrot.slane %v412, 1
      %v494 = vrot.slane %v413, 1
      %v495 = vsel %vm456, %v493, %v494
      %v496 = vrot.slane %v414, 1
      %v497 = vrot.slane %v415, 1
      %v498 = vsel %vm456, %v496, %v497
      %v499 = vrot.slane %v416, 1
      %v500 = vrot.slane %v417, 1
      %v501 = vsel %vm456, %v499, %v500
      %v502 = vrot.slane %v418, 1
      %v503 = vrot.slane %v419, 1
      %v504 = vsel %vm456, %v502, %v503
      %505 = vrot.lane.b32.xlu0 %v459, 1
      %v506 = vpop.permute.xlu0 %505
      %507 = vrot.lane.b32.xlu0 %v462, 1
      %v508 = vpop.permute.xlu0 %507
      %509 = vrot.lane.b32.xlu0 %v465, 1
      %v510 = vpop.permute.xlu0 %509
      %511 = vrot.lane.b32.xlu0 %v468, 1
      %v512 = vpop.permute.xlu0 %511
      %513 = vrot.lane.b32.xlu0 %v471, 1
      %v514 = vpop.permute.xlu0 %513
      %515 = vrot.lane.b32.xlu0 %v474, 1
      %v516 = vpop.permute.xlu0 %515
      %517 = vrot.lane.b32.xlu0 %v477, 1
      %v518 = vpop.permute.xlu0 %517
      %519 = vrot.lane.b32.xlu0 %v480, 1
      %v520 = vpop.permute.xlu0 %519
      %521 = vrot.lane.b32.xlu0 %v483, 1
      %v522 = vpop.permute.xlu0 %521
      %523 = vrot.lane.b32.xlu0 %v486, 1
      %v524 = vpop.permute.xlu0 %523
      %525 = vrot.lane.b32.xlu0 %v489, 1
      %v526 = vpop.permute.xlu0 %525
      %527 = vrot.lane.b32.xlu0 %v492, 1
      %v528 = vpop.permute.xlu0 %527
      %529 = vrot.lane.b32.xlu0 %v495, 1
      %v530 = vpop.permute.xlu0 %529
      %531 = vrot.lane.b32.xlu0 %v498, 1
      %v532 = vpop.permute.xlu0 %531
      %533 = vrot.lane.b32.xlu0 %v501, 1
      %v534 = vpop.permute.xlu0 %533
      %535 = vrot.lane.b32.xlu0 %v504, 1
      %v536 = vpop.permute.xlu0 %535
      %vm553 = vcmask 1045504
      %v554 = vrot.slane %v388, 2
      %v555 = vrot.slane %v389, 2
      %v556 = vsel %vm553, %v554, %v555
      %v557 = vrot.slane %v390, 2
      %v558 = vrot.slane %v391, 2
      %v559 = vsel %vm553, %v557, %v558
      %v560 = vrot.slane %v392, 2
      %v561 = vrot.slane %v393, 2
      %v562 = vsel %vm553, %v560, %v561
      %v563 = vrot.slane %v394, 2
      %v564 = vrot.slane %v395, 2
      %v565 = vsel %vm553, %v563, %v564
      %v566 = vrot.slane %v396, 2
      %v567 = vrot.slane %v397, 2
      %v568 = vsel %vm553, %v566, %v567
      %v569 = vrot.slane %v398, 2
      %v570 = vrot.slane %v399, 2
      %v571 = vsel %vm553, %v569, %v570
      %v572 = vrot.slane %v400, 2
      %v573 = vrot.slane %v401, 2
      %v574 = vsel %vm553, %v572, %v573
      %v575 = vrot.slane %v402, 2
      %v576 = vrot.slane %v403, 2
      %v577 = vsel %vm553, %v575, %v576
      %v578 = vrot.slane %v404, 2
      %v579 = vrot.slane %v405, 2
      %v580 = vsel %vm553, %v578, %v579
      %v581 = vrot.slane %v406, 2
      %v582 = vrot.slane %v407, 2
      %v583 = vsel %vm553, %v581, %v582
      %v584 = vrot.slane %v408, 2
      %v585 = vrot.slane %v409, 2
      %v586 = vsel %vm553, %v584, %v585
      %v587 = vrot.slane %v410, 2
      %v588 = vrot.slane %v411, 2
      %v589 = vsel %vm553, %v587, %v588
      %v590 = vrot.slane %v412, 2
      %v591 = vrot.slane %v413, 2
      %v592 = vsel %vm553, %v590, %v591
      %v593 = vrot.slane %v414, 2
      %v594 = vrot.slane %v415, 2
      %v595 = vsel %vm553, %v593, %v594
      %v596 = vrot.slane %v416, 2
      %v597 = vrot.slane %v417, 2
      %v598 = vsel %vm553, %v596, %v597
      %v599 = vrot.slane %v418, 2
      %v600 = vrot.slane %v419, 2
      %v601 = vsel %vm553, %v599, %v600
      %602 = vrot.lane.b32.xlu0 %v556, 2
      %v603 = vpop.permute.xlu0 %602
      %604 = vrot.lane.b32.xlu0 %v559, 2
      %v605 = vpop.permute.xlu0 %604
      %606 = vrot.lane.b32.xlu0 %v562, 2
      %v607 = vpop.permute.xlu0 %606
      %608 = vrot.lane.b32.xlu0 %v565, 2
      %v609 = vpop.permute.xlu0 %608
      %610 = vrot.lane.b32.xlu0 %v568, 2
      %v611 = vpop.permute.xlu0 %610
      %612 = vrot.lane.b32.xlu0 %v571, 2
      %v613 = vpop.permute.xlu0 %612
      %614 = vrot.lane.b32.xlu0 %v574, 2
      %v615 = vpop.permute.xlu0 %614
      %616 = vrot.lane.b32.xlu0 %v577, 2
      %v617 = vpop.permute.xlu0 %616
      %618 = vrot.lane.b32.xlu0 %v580, 2
      %v619 = vpop.permute.xlu0 %618
      %620 = vrot.lane.b32.xlu0 %v583, 2
      %v621 = vpop.permute.xlu0 %620
      %622 = vrot.lane.b32.xlu0 %v586, 2
      %v623 = vpop.permute.xlu0 %622
      %624 = vrot.lane.b32.xlu0 %v589, 2
      %v625 = vpop.permute.xlu0 %624
      %626 = vrot.lane.b32.xlu0 %v592, 2
      %v627 = vpop.permute.xlu0 %626
      %628 = vrot.lane.b32.xlu0 %v595, 2
      %v629 = vpop.permute.xlu0 %628
      %630 = vrot.lane.b32.xlu0 %v598, 2
      %v631 = vpop.permute.xlu0 %630
      %632 = vrot.lane.b32.xlu0 %v601, 2
      %v633 = vpop.permute.xlu0 %632
      %651 = vrot.lane.b32.xlu0 %v390, 3
      %v652 = vpop.permute.xlu0 %651
      %653 = vrot.lane.b32.xlu0 %v392, 3
      %v654 = vpop.permute.xlu0 %653
      %655 = vrot.lane.b32.xlu0 %v394, 3
      %v656 = vpop.permute.xlu0 %655
      %657 = vrot.lane.b32.xlu0 %v396, 3
      %v658 = vpop.permute.xlu0 %657
      %659 = vrot.lane.b32.xlu0 %v398, 3
      %v660 = vpop.permute.xlu0 %659
      %661 = vrot.lane.b32.xlu0 %v400, 3
      %v662 = vpop.permute.xlu0 %661
      %663 = vrot.lane.b32.xlu0 %v402, 3
      %v664 = vpop.permute.xlu0 %663
      %665 = vrot.lane.b32.xlu0 %v404, 3
      %v666 = vpop.permute.xlu0 %665
      %667 = vrot.lane.b32.xlu0 %v406, 3
      %v668 = vpop.permute.xlu0 %667
      %669 = vrot.lane.b32.xlu0 %v408, 3
      %v670 = vpop.permute.xlu0 %669
      %671 = vrot.lane.b32.xlu0 %v410, 3
      %v672 = vpop.permute.xlu0 %671
      %673 = vrot.lane.b32.xlu0 %v412, 3
      %v674 = vpop.permute.xlu0 %673
      %675 = vrot.lane.b32.xlu0 %v414, 3
      %v676 = vpop.permute.xlu0 %675
      %677 = vrot.lane.b32.xlu0 %v416, 3
      %v678 = vpop.permute.xlu0 %677
      %679 = vrot.lane.b32.xlu0 %v418, 3
      %v680 = vpop.permute.xlu0 %679
      %681 = vrot.lane.b32.xlu0 %v420, 3
      %v682 = vpop.permute.xlu0 %681
      %v700 = vrot.slane %v420, 1
      %v701 = vrot.slane %v421, 1
      %v702 = vsel %vm456, %v700, %v701
      %703 = vrot.lane.b32.xlu0 %v462, 4
      %v704 = vpop.permute.xlu0 %703
      %705 = vrot.lane.b32.xlu0 %v465, 4
      %v706 = vpop.permute.xlu0 %705
      %707 = vrot.lane.b32.xlu0 %v468, 4
      %v708 = vpop.permute.xlu0 %707
      %709 = vrot.lane.b32.xlu0 %v471, 4
      %v710 = vpop.permute.xlu0 %709
      %711 = vrot.lane.b32.xlu0 %v474, 4
      %v712 = vpop.permute.xlu0 %711
      %713 = vrot.lane.b32.xlu0 %v477, 4
      %v714 = vpop.permute.xlu0 %713
      %715 = vrot.lane.b32.xlu0 %v480, 4
      %v716 = vpop.permute.xlu0 %715
      %717 = vrot.lane.b32.xlu0 %v483, 4
      %v718 = vpop.permute.xlu0 %717
      %719 = vrot.lane.b32.xlu0 %v486, 4
      %v720 = vpop.permute.xlu0 %719
      %721 = vrot.lane.b32.xlu0 %v489, 4
      %v722 = vpop.permute.xlu0 %721
      %723 = vrot.lane.b32.xlu0 %v492, 4
      %v724 = vpop.permute.xlu0 %723
      %725 = vrot.lane.b32.xlu0 %v495, 4
      %v726 = vpop.permute.xlu0 %725
      %727 = vrot.lane.b32.xlu0 %v498, 4
      %v728 = vpop.permute.xlu0 %727
      %729 = vrot.lane.b32.xlu0 %v501, 4
      %v730 = vpop.permute.xlu0 %729
      %731 = vrot.lane.b32.xlu0 %v504, 4
      %v732 = vpop.permute.xlu0 %731
      %733 = vrot.lane.b32.xlu0 %v702, 4
      %v734 = vpop.permute.xlu0 %733
      %v751 = vrot.slane %v420, 2
      %v752 = vrot.slane %v421, 2
      %v753 = vsel %vm553, %v751, %v752
      %754 = vrot.lane.b32.xlu0 %v559, 5
      %v755 = vpop.permute.xlu0 %754
      %756 = vrot.lane.b32.xlu0 %v562, 5
      %v757 = vpop.permute.xlu0 %756
      %758 = vrot.lane.b32.xlu0 %v565, 5
      %v759 = vpop.permute.xlu0 %758
      %760 = vrot.lane.b32.xlu0 %v568, 5
      %v761 = vpop.permute.xlu0 %760
      %762 = vrot.lane.b32.xlu0 %v571, 5
      %v763 = vpop.permute.xlu0 %762
      %764 = vrot.lane.b32.xlu0 %v574, 5
      %v765 = vpop.permute.xlu0 %764
      %766 = vrot.lane.b32.xlu0 %v577, 5
      %v767 = vpop.permute.xlu0 %766
      %768 = vrot.lane.b32.xlu0 %v580, 5
      %v769 = vpop.permute.xlu0 %768
      %770 = vrot.lane.b32.xlu0 %v583, 5
      %v771 = vpop.permute.xlu0 %770
      %772 = vrot.lane.b32.xlu0 %v586, 5
      %v773 = vpop.permute.xlu0 %772
      %774 = vrot.lane.b32.xlu0 %v589, 5
      %v775 = vpop.permute.xlu0 %774
      %776 = vrot.lane.b32.xlu0 %v592, 5
      %v777 = vpop.permute.xlu0 %776
      %778 = vrot.lane.b32.xlu0 %v595, 5
      %v779 = vpop.permute.xlu0 %778
      %780 = vrot.lane.b32.xlu0 %v598, 5
      %v781 = vpop.permute.xlu0 %780
      %782 = vrot.lane.b32.xlu0 %v601, 5
      %v783 = vpop.permute.xlu0 %782
      %784 = vrot.lane.b32.xlu0 %v753, 5
      %v785 = vpop.permute.xlu0 %784
      %803 = vrot.lane.b32.xlu0 %v392, 6
      %v804 = vpop.permute.xlu0 %803
      %805 = vrot.lane.b32.xlu0 %v394, 6
      %v806 = vpop.permute.xlu0 %805
      %807 = vrot.lane.b32.xlu0 %v396, 6
      %v808 = vpop.permute.xlu0 %807
      %809 = vrot.lane.b32.xlu0 %v398, 6
      %v810 = vpop.permute.xlu0 %809
      %811 = vrot.lane.b32.xlu0 %v400, 6
      %v812 = vpop.permute.xlu0 %811
      %813 = vrot.lane.b32.xlu0 %v402, 6
      %v814 = vpop.permute.xlu0 %813
      %815 = vrot.lane.b32.xlu0 %v404, 6
      %v816 = vpop.permute.xlu0 %815
      %817 = vrot.lane.b32.xlu0 %v406, 6
      %v818 = vpop.permute.xlu0 %817
      %819 = vrot.lane.b32.xlu0 %v408, 6
      %v820 = vpop.permute.xlu0 %819
      %821 = vrot.lane.b32.xlu0 %v410, 6
      %v822 = vpop.permute.xlu0 %821
      %823 = vrot.lane.b32.xlu0 %v412, 6
      %v824 = vpop.permute.xlu0 %823
      %825 = vrot.lane.b32.xlu0 %v414, 6
      %v826 = vpop.permute.xlu0 %825
      %827 = vrot.lane.b32.xlu0 %v416, 6
      %v828 = vpop.permute.xlu0 %827
      %829 = vrot.lane.b32.xlu0 %v418, 6
      %v830 = vpop.permute.xlu0 %829
      %831 = vrot.lane.b32.xlu0 %v420, 6
      %v832 = vpop.permute.xlu0 %831
      %833 = vrot.lane.b32.xlu0 %v422, 6
      %v834 = vpop.permute.xlu0 %833
      %v852 = vrot.slane %v422, 1
      %v853 = vrot.slane %v423, 1
      %v854 = vsel %vm456, %v852, %v853
      %855 = vrot.lane.b32.xlu0 %v465, 7
      %v856 = vpop.permute.xlu0 %855
      %857 = vrot.lane.b32.xlu0 %v468, 7
      %v858 = vpop.permute.xlu0 %857
      %859 = vrot.lane.b32.xlu0 %v471, 7
      %v860 = vpop.permute.xlu0 %859
      %861 = vrot.lane.b32.xlu0 %v474, 7
      %v862 = vpop.permute.xlu0 %861
      %863 = vrot.lane.b32.xlu0 %v477, 7
      %v864 = vpop.permute.xlu0 %863
      %865 = vrot.lane.b32.xlu0 %v480, 7
      %v866 = vpop.permute.xlu0 %865
      %867 = vrot.lane.b32.xlu0 %v483, 7
      %v868 = vpop.permute.xlu0 %867
      %869 = vrot.lane.b32.xlu0 %v486, 7
      %v870 = vpop.permute.xlu0 %869
      %871 = vrot.lane.b32.xlu0 %v489, 7
      %v872 = vpop.permute.xlu0 %871
      %873 = vrot.lane.b32.xlu0 %v492, 7
      %v874 = vpop.permute.xlu0 %873
      %875 = vrot.lane.b32.xlu0 %v495, 7
      %v876 = vpop.permute.xlu0 %875
      %877 = vrot.lane.b32.xlu0 %v498, 7
      %v878 = vpop.permute.xlu0 %877
      %879 = vrot.lane.b32.xlu0 %v501, 7
      %v880 = vpop.permute.xlu0 %879
      %881 = vrot.lane.b32.xlu0 %v504, 7
      %v882 = vpop.permute.xlu0 %881
      %883 = vrot.lane.b32.xlu0 %v702, 7
      %v884 = vpop.permute.xlu0 %883
      %885 = vrot.lane.b32.xlu0 %v854, 7
      %v886 = vpop.permute.xlu0 %885
      %v903 = vrot.slane %v422, 2
      %v904 = vrot.slane %v423, 2
      %v905 = vsel %vm553, %v903, %v904
      %906 = vrot.lane.b32.xlu0 %v562, 8
      %v907 = vpop.permute.xlu0 %906
      %908 = vrot.lane.b32.xlu0 %v565, 8
      %v909 = vpop.permute.xlu0 %908
      %910 = vrot.lane.b32.xlu0 %v568, 8
      %v911 = vpop.permute.xlu0 %910
      %912 = vrot.lane.b32.xlu0 %v571, 8
      %v913 = vpop.permute.xlu0 %912
      %914 = vrot.lane.b32.xlu0 %v574, 8
      %v915 = vpop.permute.xlu0 %914
      %916 = vrot.lane.b32.xlu0 %v577, 8
      %v917 = vpop.permute.xlu0 %916
      %918 = vrot.lane.b32.xlu0 %v580, 8
      %v919 = vpop.permute.xlu0 %918
      %920 = vrot.lane.b32.xlu0 %v583, 8
      %v921 = vpop.permute.xlu0 %920
      %922 = vrot.lane.b32.xlu0 %v586, 8
      %v923 = vpop.permute.xlu0 %922
      %924 = vrot.lane.b32.xlu0 %v589, 8
      %v925 = vpop.permute.xlu0 %924
      %926 = vrot.lane.b32.xlu0 %v592, 8
      %v927 = vpop.permute.xlu0 %926
      %928 = vrot.lane.b32.xlu0 %v595, 8
      %v929 = vpop.permute.xlu0 %928
      %930 = vrot.lane.b32.xlu0 %v598, 8
      %v931 = vpop.permute.xlu0 %930
      %932 = vrot.lane.b32.xlu0 %v601, 8
      %v933 = vpop.permute.xlu0 %932
      %934 = vrot.lane.b32.xlu0 %v753, 8
      %v935 = vpop.permute.xlu0 %934
      %936 = vrot.lane.b32.xlu0 %v905, 8
      %v937 = vpop.permute.xlu0 %936
      %vm954 = vcmask 7168
      %v955 = vsel %vm954, %v388, %v506
      %v956 = vsel %vm954, %v390, %v508
      %v957 = vsel %vm954, %v392, %v510
      %v958 = vsel %vm954, %v394, %v512
      %v959 = vsel %vm954, %v396, %v514
      %v960 = vsel %vm954, %v398, %v516
      %v961 = vsel %vm954, %v400, %v518
      %v962 = vsel %vm954, %v402, %v520
      %v963 = vsel %vm954, %v404, %v522
      %v964 = vsel %vm954, %v406, %v524
      %v965 = vsel %vm954, %v408, %v526
      %v966 = vsel %vm954, %v410, %v528
      %v967 = vsel %vm954, %v412, %v530
      %v968 = vsel %vm954, %v414, %v532
      %v969 = vsel %vm954, %v416, %v534
      %v970 = vsel %vm954, %v418, %v536
      %vm971 = vcmask 15360
      %v972 = vsel %vm971, %v955, %v603
      %v973 = vsel %vm971, %v956, %v605
      %v974 = vsel %vm971, %v957, %v607
      %v975 = vsel %vm971, %v958, %v609
      %v976 = vsel %vm971, %v959, %v611
      %v977 = vsel %vm971, %v960, %v613
      %v978 = vsel %vm971, %v961, %v615
      %v979 = vsel %vm971, %v962, %v617
      %v980 = vsel %vm971, %v963, %v619
      %v981 = vsel %vm971, %v964, %v621
      %v982 = vsel %vm971, %v965, %v623
      %v983 = vsel %vm971, %v966, %v625
      %v984 = vsel %vm971, %v967, %v627
      %v985 = vsel %vm971, %v968, %v629
      %v986 = vsel %vm971, %v969, %v631
      %v987 = vsel %vm971, %v970, %v633
      %vm988 = vcmask 23552
      %v989 = vsel %vm988, %v972, %v652
      %v990 = vsel %vm988, %v973, %v654
      %v991 = vsel %vm988, %v974, %v656
      %v992 = vsel %vm988, %v975, %v658
      %v993 = vsel %vm988, %v976, %v660
      %v994 = vsel %vm988, %v977, %v662
      %v995 = vsel %vm988, %v978, %v664
      %v996 = vsel %vm988, %v979, %v666
      %v997 = vsel %vm988, %v980, %v668
      %v998 = vsel %vm988, %v981, %v670
      %v999 = vsel %vm988, %v982, %v672
      %v1000 = vsel %vm988, %v983, %v674
      %v1001 = vsel %vm988, %v984, %v676
      %v1002 = vsel %vm988, %v985, %v678
      %v1003 = vsel %vm988, %v986, %v680
      %v1004 = vsel %vm988, %v987, %v682
      %vm1005 = vcmask 31744
      %v1006 = vsel %vm1005, %v989, %v704
      %v1007 = vsel %vm1005, %v990, %v706
      %v1008 = vsel %vm1005, %v991, %v708
      %v1009 = vsel %vm1005, %v992, %v710
      %v1010 = vsel %vm1005, %v993, %v712
      %v1011 = vsel %vm1005, %v994, %v714
      %v1012 = vsel %vm1005, %v995, %v716
      %v1013 = vsel %vm1005, %v996, %v718
      %v1014 = vsel %vm1005, %v997, %v720
      %v1015 = vsel %vm1005, %v998, %v722
      %v1016 = vsel %vm1005, %v999, %v724
      %v1017 = vsel %vm1005, %v1000, %v726
      %v1018 = vsel %vm1005, %v1001, %v728
      %v1019 = vsel %vm1005, %v1002, %v730
      %v1020 = vsel %vm1005, %v1003, %v732
      %v1021 = vsel %vm1005, %v1004, %v734
      %vm1022 = vcmask 39936
      %v1023 = vsel %vm1022, %v1006, %v755
      %v1024 = vsel %vm1022, %v1007, %v757
      %v1025 = vsel %vm1022, %v1008, %v759
      %v1026 = vsel %vm1022, %v1009, %v761
      %v1027 = vsel %vm1022, %v1010, %v763
      %v1028 = vsel %vm1022, %v1011, %v765
      %v1029 = vsel %vm1022, %v1012, %v767
      %v1030 = vsel %vm1022, %v1013, %v769
      %v1031 = vsel %vm1022, %v1014, %v771
      %v1032 = vsel %vm1022, %v1015, %v773
      %v1033 = vsel %vm1022, %v1016, %v775
      %v1034 = vsel %vm1022, %v1017, %v777
      %v1035 = vsel %vm1022, %v1018, %v779
      %v1036 = vsel %vm1022, %v1019, %v781
      %v1037 = vsel %vm1022, %v1020, %v783
      %v1038 = vsel %vm1022, %v1021, %v785
      %vm1039 = vcmask 48128
      %v1040 = vsel %vm1039, %v1023, %v804
      %v1041 = vsel %vm1039, %v1024, %v806
      %v1042 = vsel %vm1039, %v1025, %v808
      %v1043 = vsel %vm1039, %v1026, %v810
      %v1044 = vsel %vm1039, %v1027, %v812
      %v1045 = vsel %vm1039, %v1028, %v814
      %v1046 = vsel %vm1039, %v1029, %v816
      %v1047 = vsel %vm1039, %v1030, %v818
      %v1048 = vsel %vm1039, %v1031, %v820
      %v1049 = vsel %vm1039, %v1032, %v822
      %v1050 = vsel %vm1039, %v1033, %v824
      %v1051 = vsel %vm1039, %v1034, %v826
      %v1052 = vsel %vm1039, %v1035, %v828
      %v1053 = vsel %vm1039, %v1036, %v830
      %v1054 = vsel %vm1039, %v1037, %v832
      %v1055 = vsel %vm1039, %v1038, %v834
      %vm1056 = vcmask 56320
      %v1057 = vsel %vm1056, %v1040, %v856
      %v1058 = vsel %vm1056, %v1041, %v858
      %v1059 = vsel %vm1056, %v1042, %v860
      %v1060 = vsel %vm1056, %v1043, %v862
      %v1061 = vsel %vm1056, %v1044, %v864
      %v1062 = vsel %vm1056, %v1045, %v866
      %v1063 = vsel %vm1056, %v1046, %v868
      %v1064 = vsel %vm1056, %v1047, %v870
      %v1065 = vsel %vm1056, %v1048, %v872
      %v1066 = vsel %vm1056, %v1049, %v874
      %v1067 = vsel %vm1056, %v1050, %v876
      %v1068 = vsel %vm1056, %v1051, %v878
      %v1069 = vsel %vm1056, %v1052, %v880
      %v1070 = vsel %vm1056, %v1053, %v882
      %v1071 = vsel %vm1056, %v1054, %v884
      %v1072 = vsel %vm1056, %v1055, %v886
      %vm1073 = vcmask 64512
      %v1074 = vsel %vm1073, %v1057, %v907
      %v1075 = vsel %vm1073, %v1058, %v909
      %v1076 = vsel %vm1073, %v1059, %v911
      %v1077 = vsel %vm1073, %v1060, %v913
      %v1078 = vsel %vm1073, %v1061, %v915
      %v1079 = vsel %vm1073, %v1062, %v917
      %v1080 = vsel %vm1073, %v1063, %v919
      %v1081 = vsel %vm1073, %v1064, %v921
      %v1082 = vsel %vm1073, %v1065, %v923
      %v1083 = vsel %vm1073, %v1066, %v925
      %v1084 = vsel %vm1073, %v1067, %v927
      %v1085 = vsel %vm1073, %v1068, %v929
      %v1086 = vsel %vm1073, %v1069, %v931
      %v1087 = vsel %vm1073, %v1070, %v933
      %v1088 = vsel %vm1073, %v1071, %v935
      %v1089 = vsel %vm1073, %v1072, %v937
      %v1090 = vpack.c.bf16 %v1075, %v1074
      %v1091 = vpack.c.bf16 %v1077, %v1076
      %v1092 = vpack.c.bf16 %v1079, %v1078
      %v1093 = vpack.c.bf16 %v1081, %v1080
      %v1094 = vpack.c.bf16 %v1083, %v1082
      %v1095 = vpack.c.bf16 %v1085, %v1084
      %v1096 = vpack.c.bf16 %v1087, %v1086
      %v1097 = vpack.c.bf16 %v1089, %v1088
      %v1098 = vld [vmem:[%s1] sm:$0xff]
      %v1099 = vld [vmem:[%s1 + $0x8] sm:$0x1]
      %v1100 = vpack.c.bf16 %v1099, %v1098
      %v1101 = vld [vmem:[%s2] sm:$0x1]
      %v1103 = vlaneseq
      %v1104 = vshrl.u32 %v1103, 7
      %v1105 = vsub.s32 0, %v1104
      %v1106 = vrot.slane %v1101, %v1105
      %vm1108 = vcmask 72704
      %v1110 = vsel %vm1108, %v1090, 0
      %v1113 = vsel %vm1108, %v1091, 0
      %v1116 = vsel %vm1108, %v1092, 0
      %v1119 = vsel %vm1108, %v1093, 0
      %v1122 = vsel %vm1108, %v1094, 0
      %v1125 = vsel %vm1108, %v1095, 0
      %v1128 = vsel %vm1108, %v1096, 0
      %v1131 = vsel %vm1108, %v1097, 0
      %vm1133 = vcmask 1043456
      %vm1134 = vcmask 1044480
      %v1135 = vsel %vm1133, 4294967295, 65535
      %v1136 = vsel %vm1134, %v1135, 0
      %v1138 = vand.u32 %v1100, %v1136
      %1140 = vmatprep.subr.bf16.mxu0 0
      %1141 = vmatpush1.bf16.msra.mxu0 0
      %1142 = vmatprep.subr.bf16.mxu0 0
      %1143 = vmatpush1.bf16.msra.mxu0 0
      %1144 = vmatprep.subr.bf16.mxu0 0
      %1145 = vmatpush1.bf16.msra.mxu0 0
      %1146 = vmatprep.subr.bf16.mxu0 0
      %1147 = vmatpush1.bf16.msra.mxu0 0
      %1148 = vmatprep.subr.bf16.mxu0 0
      %1149 = vmatpush1.bf16.msra.mxu0 0
      %1150 = vmatprep.subr.bf16.mxu0 0
      %1151 = vmatpush1.bf16.msra.mxu0 0
      %1152 = vmatprep.subr.bf16.mxu0 0
      %1153 = vmatpush1.bf16.msra.mxu0 0
      %1154 = vmatprep.subr.bf16.mxu0 0
      %1155 = vmatpush1.bf16.msra.mxu0 %v1138
      %1156 = vmatprep.subr.bf16.mxu0 0
      %1157 = vmatpush2.bf16.msra.mxu0 0
      %1158 = vmatprep.subr.bf16.mxu0 0
      %1159 = vmatpush2.bf16.msra.mxu0 0
      %1160 = vmatprep.subr.bf16.mxu0 0
      %1161 = vmatpush2.bf16.msra.mxu0 0
      %1162 = vmatprep.subr.bf16.mxu0 0
      %1163 = vmatpush2.bf16.msra.mxu0 0
      %1164 = vmatprep.subr.bf16.mxu0 0
      %1165 = vmatpush2.bf16.msra.mxu0 0
      %1166 = vmatprep.subr.bf16.mxu0 0
      %1167 = vmatpush2.bf16.msra.mxu0 0
      %1168 = vmatprep.subr.bf16.mxu0 0
      %1169 = vmatpush2.bf16.msra.mxu0 0
      %1170 = vmatprep.subr.bf16.mxu0 0
      %1171 = vmatpush2.bf16.msra.mxu0 0
      %1172 = vmatprep.mubr.bf16.mxu0 0
      %1173 = vmatmul.mubr.bf16.gmra.mxu0 %v1110
      %v1174 = vpop.f32.mrf.mxu0
      %v1175 = vadd.f32 %v1106, %v1174
      %v1176 = vpop.f32.mrf.mxu0
      %v1177 = vpop.f32.mrf.mxu0
      %v1178 = vadd.f32 %v1106, %v1177
      %v1179 = vpop.f32.mrf.mxu0
      %1180 = vmatprep.mubr.bf16.mxu0 0
      %1181 = vmatmul.mubr.bf16.gmra.mxu0 %v1113
      %v1182 = vpop.f32.mrf.mxu0
      %v1183 = vadd.f32 %v1106, %v1182
      %v1184 = vpop.f32.mrf.mxu0
      %v1185 = vpop.f32.mrf.mxu0
      %v1186 = vadd.f32 %v1106, %v1185
      %v1187 = vpop.f32.mrf.mxu0
      %1188 = vmatprep.mubr.bf16.mxu0 0
      %1189 = vmatmul.mubr.bf16.gmra.mxu0 %v1116
      %v1190 = vpop.f32.mrf.mxu0
      %v1191 = vadd.f32 %v1106, %v1190
      %v1192 = vpop.f32.mrf.mxu0
      %v1193 = vpop.f32.mrf.mxu0
      %v1194 = vadd.f32 %v1106, %v1193
      %v1195 = vpop.f32.mrf.mxu0
      %1196 = vmatprep.mubr.bf16.mxu0 0
      %1197 = vmatmul.mubr.bf16.gmra.mxu0 %v1119
      %v1198 = vpop.f32.mrf.mxu0
      %v1199 = vadd.f32 %v1106, %v1198
      %v1200 = vpop.f32.mrf.mxu0
      %v1201 = vpop.f32.mrf.mxu0
      %v1202 = vadd.f32 %v1106, %v1201
      %v1203 = vpop.f32.mrf.mxu0
      %1204 = vmatprep.mubr.bf16.mxu0 0
      %1205 = vmatmul.mubr.bf16.gmra.mxu0 %v1122
      %v1206 = vpop.f32.mrf.mxu0
      %v1207 = vadd.f32 %v1106, %v1206
      %v1208 = vpop.f32.mrf.mxu0
      %v1209 = vpop.f32.mrf.mxu0
      %v1210 = vadd.f32 %v1106, %v1209
      %v1211 = vpop.f32.mrf.mxu0
      %1212 = vmatprep.mubr.bf16.mxu0 0
      %1213 = vmatmul.mubr.bf16.gmra.mxu0 %v1125
      %v1214 = vpop.f32.mrf.mxu0
      %v1215 = vadd.f32 %v1106, %v1214
      %v1216 = vpop.f32.mrf.mxu0
      %v1217 = vpop.f32.mrf.mxu0
      %v1218 = vadd.f32 %v1106, %v1217
      %v1219 = vpop.f32.mrf.mxu0
      %1220 = vmatprep.mubr.bf16.mxu0 0
      %1221 = vmatmul.mubr.bf16.gmra.mxu0 %v1128
      %v1222 = vpop.f32.mrf.mxu0
      %v1223 = vadd.f32 %v1106, %v1222
      %v1224 = vpop.f32.mrf.mxu0
      %v1225 = vpop.f32.mrf.mxu0
      %v1226 = vadd.f32 %v1106, %v1225
      %v1227 = vpop.f32.mrf.mxu0
      %1228 = vmatprep.mubr.bf16.mxu0 0
      %1229 = vmatmul.mubr.bf16.gmra.mxu0 %v1131
      %v1230 = vpop.f32.mrf.mxu0
      %v1231 = vadd.f32 %v1106, %v1230
      %v1232 = vpop.f32.mrf.mxu0
      %v1233 = vpop.f32.mrf.mxu0
      %v1234 = vadd.f32 %v1106, %v1233
      %v1235 = vpop.f32.mrf.mxu0
      %1236 = vdwg.mxu0
      %v1237 = vmax.f32 %v1175, 0.0
      %v1238 = vmax.f32 %v1178, 0.0
      %v1239 = vmax.f32 %v1183, 0.0
      %v1240 = vmax.f32 %v1186, 0.0
      %v1241 = vmax.f32 %v1191, 0.0
      %v1242 = vmax.f32 %v1194, 0.0
      %v1243 = vmax.f32 %v1199, 0.0
      %v1244 = vmax.f32 %v1202, 0.0
      %v1245 = vmax.f32 %v1207, 0.0
      %v1246 = vmax.f32 %v1210, 0.0
      %v1247 = vmax.f32 %v1215, 0.0
      %v1248 = vmax.f32 %v1218, 0.0
      %v1249 = vmax.f32 %v1223, 0.0
      %v1250 = vmax.f32 %v1226, 0.0
      %v1251 = vmax.f32 %v1231, 0.0
      %v1252 = vmax.f32 %v1234, 0.0
      %vm1253 = vcmask 261120
      %1254 = vst.msk [vmem:[#allocation2] sm:$0xff] %vm1253, 0.0
      %vm1255 = vcmask 254976
      %1256 = vst.msk [vmem:[#allocation2 + $0x8] sm:$0x3] %vm1255, 0.0
      %1257 = vst.msk [vmem:[#allocation2 + $0x10] sm:$0xff] %vm1253, 0.0
      %1258 = vst.msk [vmem:[#allocation2 + $0x18] sm:$0x3] %vm1255, 0.0
      %1259 = vst.msk [vmem:[#allocation2 + $0x20] sm:$0xff] %vm1253, 0.0
      %1260 = vst.msk [vmem:[#allocation2 + $0x28] sm:$0x3] %vm1255, 0.0
      %1261 = vst.msk [vmem:[#allocation2 + $0x30] sm:$0xff] %vm1253, 0.0
      %1262 = vst.msk [vmem:[#allocation2 + $0x38] sm:$0x3] %vm1255, 0.0
      %1263 = vst.msk [vmem:[#allocation2 + $0x40] sm:$0xff] %vm1253, 0.0
      %1264 = vst.msk [vmem:[#allocation2 + $0x48] sm:$0x3] %vm1255, 0.0
      %1265 = vst.msk [vmem:[#allocation2 + $0x50] sm:$0xff] %vm1253, 0.0
      %1266 = vst.msk [vmem:[#allocation2 + $0x58] sm:$0x3] %vm1255, 0.0
      %1267 = vst.msk [vmem:[#allocation2 + $0x60] sm:$0xff] %vm1253, 0.0
      %1268 = vst.msk [vmem:[#allocation2 + $0x68] sm:$0x3] %vm1255, 0.0
      %1269 = vst.msk [vmem:[#allocation2 + $0x70] sm:$0xff] %vm1253, 0.0
      %1270 = vst.msk [vmem:[#allocation2 + $0x78] sm:$0x3] %vm1255, 0.0
      %1271 = vst.msk [vmem:[#allocation2 + $0x80] sm:$0xff] %vm1253, 0.0
      %1272 = vst.msk [vmem:[#allocation2 + $0x88] sm:$0x3] %vm1255, 0.0
      %1273 = vst.msk [vmem:[#allocation2 + $0x90] sm:$0xff] %vm1253, 0.0
      %1274 = vst.msk [vmem:[#allocation2 + $0x98] sm:$0x3] %vm1255, 0.0
      %1275 = vst.msk [vmem:[#allocation2 + $0xa0] sm:$0xff] %vm1253, 0.0
      %1276 = vst.msk [vmem:[#allocation2 + $0xa8] sm:$0x3] %vm1255, 0.0
      %1277 = vst.msk [vmem:[#allocation2 + $0xb0] sm:$0xff] %vm1253, 0.0
      %1278 = vst.msk [vmem:[#allocation2 + $0xb8] sm:$0x3] %vm1255, 0.0
      %1279 = vst.msk [vmem:[#allocation2 + $0xc0] sm:$0xff] %vm1253, 0.0
      %1280 = vst.msk [vmem:[#allocation2 + $0xc8] sm:$0x3] %vm1255, 0.0
      %1281 = vst.msk [vmem:[#allocation2 + $0xd0] sm:$0xff] %vm1253, 0.0
      %1282 = vst.msk [vmem:[#allocation2 + $0xd8] sm:$0x3] %vm1255, 0.0
      %1283 = vst.msk [vmem:[#allocation2 + $0xe0] sm:$0xff] %vm1253, 0.0
      %1284 = vst.msk [vmem:[#allocation2 + $0xe8] sm:$0x3] %vm1255, 0.0
      %1285 = vst.msk [vmem:[#allocation2 + $0xf0] sm:$0xff] %vm1253, 0.0
      %1286 = vst.msk [vmem:[#allocation2 + $0xf8] sm:$0x3] %vm1255, 0.0
      %1287 = vst.msk [vmem:[#allocation2 + $0x100] sm:$0xff] %vm1253, 0.0
      %1288 = vst.msk [vmem:[#allocation2 + $0x108] sm:$0x3] %vm1255, 0.0
      %1289 = vst.msk [vmem:[#allocation2 + $0x110] sm:$0xff] %vm1253, 0.0
      %1290 = vst.msk [vmem:[#allocation2 + $0x118] sm:$0x3] %vm1255, 0.0
      %s1291 = scalar_lea.vmem [#allocation2], 16
      %1292 = vst.msk [vmem:[%s1291 + $0x1] sm:$0xff] %vm1253, %v1237
      %1293 = vst.msk [vmem:[%s1291 + $0x11] sm:$0xff] %vm1253, %v1238
      %1294 = vst.msk [vmem:[%s1291 + $0x21] sm:$0xff] %vm1253, %v1239
      %1295 = vst.msk [vmem:[%s1291 + $0x31] sm:$0xff] %vm1253, %v1240
      %1296 = vst.msk [vmem:[%s1291 + $0x41] sm:$0xff] %vm1253, %v1241
      %1297 = vst.msk [vmem:[%s1291 + $0x51] sm:$0xff] %vm1253, %v1242
      %1298 = vst.msk [vmem:[%s1291 + $0x61] sm:$0xff] %vm1253, %v1243
      %1299 = vst.msk [vmem:[%s1291 + $0x71] sm:$0xff] %vm1253, %v1244
      %1300 = vst.msk [vmem:[%s1291 + $0x81] sm:$0xff] %vm1253, %v1245
      %1301 = vst.msk [vmem:[%s1291 + $0x91] sm:$0xff] %vm1253, %v1246
      %1302 = vst.msk [vmem:[%s1291 + $0xa1] sm:$0xff] %vm1253, %v1247
      %1303 = vst.msk [vmem:[%s1291 + $0xb1] sm:$0xff] %vm1253, %v1248
      %1304 = vst.msk [vmem:[%s1291 + $0xc1] sm:$0xff] %vm1253, %v1249
      %1305 = vst.msk [vmem:[%s1291 + $0xd1] sm:$0xff] %vm1253, %v1250
      %1306 = vst.msk [vmem:[%s1291 + $0xe1] sm:$0xff] %vm1253, %v1251
      %1307 = vst.msk [vmem:[%s1291 + $0xf1] sm:$0xff] %vm1253, %v1252
      %v1308 = vld [vmem:[#allocation2] sm:$0xff]
      %v1309 = vld [vmem:[#allocation2 + $0x8] sm:$0x3]
      %v1310 = vld [vmem:[#allocation2 + $0x10] sm:$0xff]
      %v1311 = vld [vmem:[#allocation2 + $0x18] sm:$0x3]
      %v1312 = vld [vmem:[#allocation2 + $0x20] sm:$0xff]
      %v1313 = vld [vmem:[#allocation2 + $0x28] sm:$0x3]
      %v1314 = vld [vmem:[#allocation2 + $0x30] sm:$0xff]
      %v1315 = vld [vmem:[#allocation2 + $0x38] sm:$0x3]
      %v1316 = vld [vmem:[#allocation2 + $0x40] sm:$0xff]
      %v1317 = vld [vmem:[#allocation2 + $0x48] sm:$0x3]
      %v1318 = vld [vmem:[#allocation2 + $0x50] sm:$0xff]
      %v1319 = vld [vmem:[#allocation2 + $0x58] sm:$0x3]
      %v1320 = vld [vmem:[#allocation2 + $0x60] sm:$0xff]
      %v1321 = vld [vmem:[#allocation2 + $0x68] sm:$0x3]
      %v1322 = vld [vmem:[#allocation2 + $0x70] sm:$0xff]
      %v1323 = vld [vmem:[#allocation2 + $0x78] sm:$0x3]
      %v1324 = vld [vmem:[#allocation2 + $0x80] sm:$0xff]
      %v1325 = vld [vmem:[#allocation2 + $0x88] sm:$0x3]
      %v1326 = vld [vmem:[#allocation2 + $0x90] sm:$0xff]
      %v1327 = vld [vmem:[#allocation2 + $0x98] sm:$0x3]
      %v1328 = vld [vmem:[#allocation2 + $0xa0] sm:$0xff]
      %v1329 = vld [vmem:[#allocation2 + $0xa8] sm:$0x3]
      %v1330 = vld [vmem:[#allocation2 + $0xb0] sm:$0xff]
      %v1331 = vld [vmem:[#allocation2 + $0xb8] sm:$0x3]
      %v1332 = vld [vmem:[#allocation2 + $0xc0] sm:$0xff]
      %v1333 = vld [vmem:[#allocation2 + $0xc8] sm:$0x3]
      %v1334 = vld [vmem:[#allocation2 + $0xd0] sm:$0xff]
      %v1335 = vld [vmem:[#allocation2 + $0xd8] sm:$0x3]
      %v1336 = vld [vmem:[#allocation2 + $0xe0] sm:$0xff]
      %v1337 = vld [vmem:[#allocation2 + $0xe8] sm:$0x3]
      %v1338 = vld [vmem:[#allocation2 + $0xf0] sm:$0xff]
      %v1339 = vld [vmem:[#allocation2 + $0xf8] sm:$0x3]
      %v1340 = vld [vmem:[#allocation2 + $0x100] sm:$0xff]
      %v1341 = vld [vmem:[#allocation2 + $0x108] sm:$0x3]
      %v1342 = vld [vmem:[#allocation2 + $0x110] sm:$0xff]
      %v1343 = vld [vmem:[#allocation2 + $0x118] sm:$0x3]
      %v1376 = vrot.slane %v1308, 1
      %v1377 = vrot.slane %v1309, 1
      %v1378 = vsel %vm456, %v1376, %v1377
      %v1379 = vrot.slane %v1310, 1
      %v1380 = vrot.slane %v1311, 1
      %v1381 = vsel %vm456, %v1379, %v1380
      %v1382 = vrot.slane %v1312, 1
      %v1383 = vrot.slane %v1313, 1
      %v1384 = vsel %vm456, %v1382, %v1383
      %v1385 = vrot.slane %v1314, 1
      %v1386 = vrot.slane %v1315, 1
      %v1387 = vsel %vm456, %v1385, %v1386
      %v1388 = vrot.slane %v1316, 1
      %v1389 = vrot.slane %v1317, 1
      %v1390 = vsel %vm456, %v1388, %v1389
      %v1391 = vrot.slane %v1318, 1
      %v1392 = vrot.slane %v1319, 1
      %v1393 = vsel %vm456, %v1391, %v1392
      %v1394 = vrot.slane %v1320, 1
      %v1395 = vrot.slane %v1321, 1
      %v1396 = vsel %vm456, %v1394, %v1395
      %v1397 = vrot.slane %v1322, 1
      %v1398 = vrot.slane %v1323, 1
      %v1399 = vsel %vm456, %v1397, %v1398
      %v1400 = vrot.slane %v1324, 1
      %v1401 = vrot.slane %v1325, 1
      %v1402 = vsel %vm456, %v1400, %v1401
      %v1403 = vrot.slane %v1326, 1
      %v1404 = vrot.slane %v1327, 1
      %v1405 = vsel %vm456, %v1403, %v1404
      %v1406 = vrot.slane %v1328, 1
      %v1407 = vrot.slane %v1329, 1
      %v1408 = vsel %vm456, %v1406, %v1407
      %v1409 = vrot.slane %v1330, 1
      %v1410 = vrot.slane %v1331, 1
      %v1411 = vsel %vm456, %v1409, %v1410
      %v1412 = vrot.slane %v1332, 1
      %v1413 = vrot.slane %v1333, 1
      %v1414 = vsel %vm456, %v1412, %v1413
      %v1415 = vrot.slane %v1334, 1
      %v1416 = vrot.slane %v1335, 1
      %v1417 = vsel %vm456, %v1415, %v1416
      %v1418 = vrot.slane %v1336, 1
      %v1419 = vrot.slane %v1337, 1
      %v1420 = vsel %vm456, %v1418, %v1419
      %v1421 = vrot.slane %v1338, 1
      %v1422 = vrot.slane %v1339, 1
      %v1423 = vsel %vm456, %v1421, %v1422
      %1424 = vrot.lane.b32.xlu0 %v1378, 32
      %v1425 = vpop.permute.xlu0 %1424
      %1426 = vrot.lane.b32.xlu0 %v1381, 32
      %v1427 = vpop.permute.xlu0 %1426
      %1428 = vrot.lane.b32.xlu0 %v1384, 32
      %v1429 = vpop.permute.xlu0 %1428
      %1430 = vrot.lane.b32.xlu0 %v1387, 32
      %v1431 = vpop.permute.xlu0 %1430
      %1432 = vrot.lane.b32.xlu0 %v1390, 32
      %v1433 = vpop.permute.xlu0 %1432
      %1434 = vrot.lane.b32.xlu0 %v1393, 32
      %v1435 = vpop.permute.xlu0 %1434
      %1436 = vrot.lane.b32.xlu0 %v1396, 32
      %v1437 = vpop.permute.xlu0 %1436
      %1438 = vrot.lane.b32.xlu0 %v1399, 32
      %v1439 = vpop.permute.xlu0 %1438
      %1440 = vrot.lane.b32.xlu0 %v1402, 32
      %v1441 = vpop.permute.xlu0 %1440
      %1442 = vrot.lane.b32.xlu0 %v1405, 32
      %v1443 = vpop.permute.xlu0 %1442
      %1444 = vrot.lane.b32.xlu0 %v1408, 32
      %v1445 = vpop.permute.xlu0 %1444
      %1446 = vrot.lane.b32.xlu0 %v1411, 32
      %v1447 = vpop.permute.xlu0 %1446
      %1448 = vrot.lane.b32.xlu0 %v1414, 32
      %v1449 = vpop.permute.xlu0 %1448
      %1450 = vrot.lane.b32.xlu0 %v1417, 32
      %v1451 = vpop.permute.xlu0 %1450
      %1452 = vrot.lane.b32.xlu0 %v1420, 32
      %v1453 = vpop.permute.xlu0 %1452
      %1454 = vrot.lane.b32.xlu0 %v1423, 32
      %v1455 = vpop.permute.xlu0 %1454
      %v1472 = vrot.slane %v1308, 2
      %v1473 = vrot.slane %v1309, 2
      %v1474 = vsel %vm553, %v1472, %v1473
      %v1475 = vrot.slane %v1310, 2
      %v1476 = vrot.slane %v1311, 2
      %v1477 = vsel %vm553, %v1475, %v1476
      %v1478 = vrot.slane %v1312, 2
      %v1479 = vrot.slane %v1313, 2
      %v1480 = vsel %vm553, %v1478, %v1479
      %v1481 = vrot.slane %v1314, 2
      %v1482 = vrot.slane %v1315, 2
      %v1483 = vsel %vm553, %v1481, %v1482
      %v1484 = vrot.slane %v1316, 2
      %v1485 = vrot.slane %v1317, 2
      %v1486 = vsel %vm553, %v1484, %v1485
      %v1487 = vrot.slane %v1318, 2
      %v1488 = vrot.slane %v1319, 2
      %v1489 = vsel %vm553, %v1487, %v1488
      %v1490 = vrot.slane %v1320, 2
      %v1491 = vrot.slane %v1321, 2
      %v1492 = vsel %vm553, %v1490, %v1491
      %v1493 = vrot.slane %v1322, 2
      %v1494 = vrot.slane %v1323, 2
      %v1495 = vsel %vm553, %v1493, %v1494
      %v1496 = vrot.slane %v1324, 2
      %v1497 = vrot.slane %v1325, 2
      %v1498 = vsel %vm553, %v1496, %v1497
      %v1499 = vrot.slane %v1326, 2
      %v1500 = vrot.slane %v1327, 2
      %v1501 = vsel %vm553, %v1499, %v1500
      %v1502 = vrot.slane %v1328, 2
      %v1503 = vrot.slane %v1329, 2
      %v1504 = vsel %vm553, %v1502, %v1503
      %v1505 = vrot.slane %v1330, 2
      %v1506 = vrot.slane %v1331, 2
      %v1507 = vsel %vm553, %v1505, %v1506
      %v1508 = vrot.slane %v1332, 2
      %v1509 = vrot.slane %v1333, 2
      %v1510 = vsel %vm553, %v1508, %v1509
      %v1511 = vrot.slane %v1334, 2
      %v1512 = vrot.slane %v1335, 2
      %v1513 = vsel %vm553, %v1511, %v1512
      %v1514 = vrot.slane %v1336, 2
      %v1515 = vrot.slane %v1337, 2
      %v1516 = vsel %vm553, %v1514, %v1515
      %v1517 = vrot.slane %v1338, 2
      %v1518 = vrot.slane %v1339, 2
      %v1519 = vsel %vm553, %v1517, %v1518
      %1520 = vrot.lane.b32.xlu0 %v1474, 64
      %v1521 = vpop.permute.xlu0 %1520
      %1522 = vrot.lane.b32.xlu0 %v1477, 64
      %v1523 = vpop.permute.xlu0 %1522
      %1524 = vrot.lane.b32.xlu0 %v1480, 64
      %v1525 = vpop.permute.xlu0 %1524
      %1526 = vrot.lane.b32.xlu0 %v1483, 64
      %v1527 = vpop.permute.xlu0 %1526
      %1528 = vrot.lane.b32.xlu0 %v1486, 64
      %v1529 = vpop.permute.xlu0 %1528
      %1530 = vrot.lane.b32.xlu0 %v1489, 64
      %v1531 = vpop.permute.xlu0 %1530
      %1532 = vrot.lane.b32.xlu0 %v1492, 64
      %v1533 = vpop.permute.xlu0 %1532
      %1534 = vrot.lane.b32.xlu0 %v1495, 64
      %v1535 = vpop.permute.xlu0 %1534
      %1536 = vrot.lane.b32.xlu0 %v1498, 64
      %v1537 = vpop.permute.xlu0 %1536
      %1538 = vrot.lane.b32.xlu0 %v1501, 64
      %v1539 = vpop.permute.xlu0 %1538
      %1540 = vrot.lane.b32.xlu0 %v1504, 64
      %v1541 = vpop.permute.xlu0 %1540
      %1542 = vrot.lane.b32.xlu0 %v1507, 64
      %v1543 = vpop.permute.xlu0 %1542
      %1544 = vrot.lane.b32.xlu0 %v1510, 64
      %v1545 = vpop.permute.xlu0 %1544
      %1546 = vrot.lane.b32.xlu0 %v1513, 64
      %v1547 = vpop.permute.xlu0 %1546
      %1548 = vrot.lane.b32.xlu0 %v1516, 64
      %v1549 = vpop.permute.xlu0 %1548
      %1550 = vrot.lane.b32.xlu0 %v1519, 64
      %v1551 = vpop.permute.xlu0 %1550
      %1569 = vrot.lane.b32.xlu0 %v1310, 96
      %v1570 = vpop.permute.xlu0 %1569
      %1571 = vrot.lane.b32.xlu0 %v1312, 96
      %v1572 = vpop.permute.xlu0 %1571
      %1573 = vrot.lane.b32.xlu0 %v1314, 96
      %v1574 = vpop.permute.xlu0 %1573
      %1575 = vrot.lane.b32.xlu0 %v1316, 96
      %v1576 = vpop.permute.xlu0 %1575
      %1577 = vrot.lane.b32.xlu0 %v1318, 96
      %v1578 = vpop.permute.xlu0 %1577
      %1579 = vrot.lane.b32.xlu0 %v1320, 96
      %v1580 = vpop.permute.xlu0 %1579
      %1581 = vrot.lane.b32.xlu0 %v1322, 96
      %v1582 = vpop.permute.xlu0 %1581
      %1583 = vrot.lane.b32.xlu0 %v1324, 96
      %v1584 = vpop.permute.xlu0 %1583
      %1585 = vrot.lane.b32.xlu0 %v1326, 96
      %v1586 = vpop.permute.xlu0 %1585
      %1587 = vrot.lane.b32.xlu0 %v1328, 96
      %v1588 = vpop.permute.xlu0 %1587
      %1589 = vrot.lane.b32.xlu0 %v1330, 96
      %v1590 = vpop.permute.xlu0 %1589
      %1591 = vrot.lane.b32.xlu0 %v1332, 96
      %v1592 = vpop.permute.xlu0 %1591
      %1593 = vrot.lane.b32.xlu0 %v1334, 96
      %v1594 = vpop.permute.xlu0 %1593
      %1595 = vrot.lane.b32.xlu0 %v1336, 96
      %v1596 = vpop.permute.xlu0 %1595
      %1597 = vrot.lane.b32.xlu0 %v1338, 96
      %v1598 = vpop.permute.xlu0 %1597
      %1599 = vrot.lane.b32.xlu0 %v1340, 96
      %v1600 = vpop.permute.xlu0 %1599
      %v1618 = vrot.slane %v1340, 1
      %v1619 = vrot.slane %v1341, 1
      %v1620 = vsel %vm456, %v1618, %v1619
      %v1637 = vrot.slane %v1340, 2
      %v1638 = vrot.slane %v1341, 2
      %v1639 = vsel %vm553, %v1637, %v1638
      %1640 = vrot.lane.b32.xlu0 %v1477, 32
      %v1641 = vpop.permute.xlu0 %1640
      %1642 = vrot.lane.b32.xlu0 %v1480, 32
      %v1643 = vpop.permute.xlu0 %1642
      %1644 = vrot.lane.b32.xlu0 %v1483, 32
      %v1645 = vpop.permute.xlu0 %1644
      %1646 = vrot.lane.b32.xlu0 %v1486, 32
      %v1647 = vpop.permute.xlu0 %1646
      %1648 = vrot.lane.b32.xlu0 %v1489, 32
      %v1649 = vpop.permute.xlu0 %1648
      %1650 = vrot.lane.b32.xlu0 %v1492, 32
      %v1651 = vpop.permute.xlu0 %1650
      %1652 = vrot.lane.b32.xlu0 %v1495, 32
      %v1653 = vpop.permute.xlu0 %1652
      %1654 = vrot.lane.b32.xlu0 %v1498, 32
      %v1655 = vpop.permute.xlu0 %1654
      %1656 = vrot.lane.b32.xlu0 %v1501, 32
      %v1657 = vpop.permute.xlu0 %1656
      %1658 = vrot.lane.b32.xlu0 %v1504, 32
      %v1659 = vpop.permute.xlu0 %1658
      %1660 = vrot.lane.b32.xlu0 %v1507, 32
      %v1661 = vpop.permute.xlu0 %1660
      %1662 = vrot.lane.b32.xlu0 %v1510, 32
      %v1663 = vpop.permute.xlu0 %1662
      %1664 = vrot.lane.b32.xlu0 %v1513, 32
      %v1665 = vpop.permute.xlu0 %1664
      %1666 = vrot.lane.b32.xlu0 %v1516, 32
      %v1667 = vpop.permute.xlu0 %1666
      %1668 = vrot.lane.b32.xlu0 %v1519, 32
      %v1669 = vpop.permute.xlu0 %1668
      %1670 = vrot.lane.b32.xlu0 %v1639, 32
      %v1671 = vpop.permute.xlu0 %1670
      %1689 = vrot.lane.b32.xlu0 %v1312, 64
      %v1690 = vpop.permute.xlu0 %1689
      %1691 = vrot.lane.b32.xlu0 %v1314, 64
      %v1692 = vpop.permute.xlu0 %1691
      %1693 = vrot.lane.b32.xlu0 %v1316, 64
      %v1694 = vpop.permute.xlu0 %1693
      %1695 = vrot.lane.b32.xlu0 %v1318, 64
      %v1696 = vpop.permute.xlu0 %1695
      %1697 = vrot.lane.b32.xlu0 %v1320, 64
      %v1698 = vpop.permute.xlu0 %1697
      %1699 = vrot.lane.b32.xlu0 %v1322, 64
      %v1700 = vpop.permute.xlu0 %1699
      %1701 = vrot.lane.b32.xlu0 %v1324, 64
      %v1702 = vpop.permute.xlu0 %1701
      %1703 = vrot.lane.b32.xlu0 %v1326, 64
      %v1704 = vpop.permute.xlu0 %1703
      %1705 = vrot.lane.b32.xlu0 %v1328, 64
      %v1706 = vpop.permute.xlu0 %1705
      %1707 = vrot.lane.b32.xlu0 %v1330, 64
      %v1708 = vpop.permute.xlu0 %1707
      %1709 = vrot.lane.b32.xlu0 %v1332, 64
      %v1710 = vpop.permute.xlu0 %1709
      %1711 = vrot.lane.b32.xlu0 %v1334, 64
      %v1712 = vpop.permute.xlu0 %1711
      %1713 = vrot.lane.b32.xlu0 %v1336, 64
      %v1714 = vpop.permute.xlu0 %1713
      %1715 = vrot.lane.b32.xlu0 %v1338, 64
      %v1716 = vpop.permute.xlu0 %1715
      %1717 = vrot.lane.b32.xlu0 %v1340, 64
      %v1718 = vpop.permute.xlu0 %1717
      %1719 = vrot.lane.b32.xlu0 %v1342, 64
      %v1720 = vpop.permute.xlu0 %1719
      %v1738 = vrot.slane %v1342, 1
      %v1739 = vrot.slane %v1343, 1
      %v1740 = vsel %vm456, %v1738, %v1739
      %1741 = vrot.lane.b32.xlu0 %v1384, 96
      %v1742 = vpop.permute.xlu0 %1741
      %1743 = vrot.lane.b32.xlu0 %v1387, 96
      %v1744 = vpop.permute.xlu0 %1743
      %1745 = vrot.lane.b32.xlu0 %v1390, 96
      %v1746 = vpop.permute.xlu0 %1745
      %1747 = vrot.lane.b32.xlu0 %v1393, 96
      %v1748 = vpop.permute.xlu0 %1747
      %1749 = vrot.lane.b32.xlu0 %v1396, 96
      %v1750 = vpop.permute.xlu0 %1749
      %1751 = vrot.lane.b32.xlu0 %v1399, 96
      %v1752 = vpop.permute.xlu0 %1751
      %1753 = vrot.lane.b32.xlu0 %v1402, 96
      %v1754 = vpop.permute.xlu0 %1753
      %1755 = vrot.lane.b32.xlu0 %v1405, 96
      %v1756 = vpop.permute.xlu0 %1755
      %1757 = vrot.lane.b32.xlu0 %v1408, 96
      %v1758 = vpop.permute.xlu0 %1757
      %1759 = vrot.lane.b32.xlu0 %v1411, 96
      %v1760 = vpop.permute.xlu0 %1759
      %1761 = vrot.lane.b32.xlu0 %v1414, 96
      %v1762 = vpop.permute.xlu0 %1761
      %1763 = vrot.lane.b32.xlu0 %v1417, 96
      %v1764 = vpop.permute.xlu0 %1763
      %1765 = vrot.lane.b32.xlu0 %v1420, 96
      %v1766 = vpop.permute.xlu0 %1765
      %1767 = vrot.lane.b32.xlu0 %v1423, 96
      %v1768 = vpop.permute.xlu0 %1767
      %1769 = vrot.lane.b32.xlu0 %v1620, 96
      %v1770 = vpop.permute.xlu0 %1769
      %1771 = vrot.lane.b32.xlu0 %v1740, 96
      %v1772 = vpop.permute.xlu0 %1771
      %v1789 = vrot.slane %v1342, 2
      %v1790 = vrot.slane %v1343, 2
      %v1791 = vsel %vm553, %v1789, %v1790
      %v1808 = vsel %vm1253, %v1308, %v1425
      %v1809 = vsel %vm1253, %v1310, %v1427
      %v1810 = vsel %vm1253, %v1312, %v1429
      %v1811 = vsel %vm1253, %v1314, %v1431
      %v1812 = vsel %vm1253, %v1316, %v1433
      %v1813 = vsel %vm1253, %v1318, %v1435
      %v1814 = vsel %vm1253, %v1320, %v1437
      %v1815 = vsel %vm1253, %v1322, %v1439
      %v1816 = vsel %vm1253, %v1324, %v1441
      %v1817 = vsel %vm1253, %v1326, %v1443
      %v1818 = vsel %vm1253, %v1328, %v1445
      %v1819 = vsel %vm1253, %v1330, %v1447
      %v1820 = vsel %vm1253, %v1332, %v1449
      %v1821 = vsel %vm1253, %v1334, %v1451
      %v1822 = vsel %vm1253, %v1336, %v1453
      %v1823 = vsel %vm1253, %v1338, %v1455
      %vm1824 = vcmask 523264
      %v1825 = vsel %vm1824, %v1808, %v1521
      %v1826 = vsel %vm1824, %v1809, %v1523
      %v1827 = vsel %vm1824, %v1810, %v1525
      %v1828 = vsel %vm1824, %v1811, %v1527
      %v1829 = vsel %vm1824, %v1812, %v1529
      %v1830 = vsel %vm1824, %v1813, %v1531
      %v1831 = vsel %vm1824, %v1814, %v1533
      %v1832 = vsel %vm1824, %v1815, %v1535
      %v1833 = vsel %vm1824, %v1816, %v1537
      %v1834 = vsel %vm1824, %v1817, %v1539
      %v1835 = vsel %vm1824, %v1818, %v1541
      %v1836 = vsel %vm1824, %v1819, %v1543
      %v1837 = vsel %vm1824, %v1820, %v1545
      %v1838 = vsel %vm1824, %v1821, %v1547
      %v1839 = vsel %vm1824, %v1822, %v1549
      %v1840 = vsel %vm1824, %v1823, %v1551
      %vm1841 = vcmask 785408
      %v1842 = vsel %vm1841, %v1825, %v1570
      %v1843 = vsel %vm1841, %v1826, %v1572
      %v1844 = vsel %vm1841, %v1827, %v1574
      %v1845 = vsel %vm1841, %v1828, %v1576
      %v1846 = vsel %vm1841, %v1829, %v1578
      %v1847 = vsel %vm1841, %v1830, %v1580
      %v1848 = vsel %vm1841, %v1831, %v1582
      %v1849 = vsel %vm1841, %v1832, %v1584
      %v1850 = vsel %vm1841, %v1833, %v1586
      %v1851 = vsel %vm1841, %v1834, %v1588
      %v1852 = vsel %vm1841, %v1835, %v1590
      %v1853 = vsel %vm1841, %v1836, %v1592
      %v1854 = vsel %vm1841, %v1837, %v1594
      %v1855 = vsel %vm1841, %v1838, %v1596
      %v1856 = vsel %vm1841, %v1839, %v1598
      %v1857 = vsel %vm1841, %v1840, %v1600
      %v1858 = vsel %vm1253, %v1381, %v1641
      %v1859 = vsel %vm1253, %v1384, %v1643
      %v1860 = vsel %vm1253, %v1387, %v1645
      %v1861 = vsel %vm1253, %v1390, %v1647
      %v1862 = vsel %vm1253, %v1393, %v1649
      %v1863 = vsel %vm1253, %v1396, %v1651
      %v1864 = vsel %vm1253, %v1399, %v1653
      %v1865 = vsel %vm1253, %v1402, %v1655
      %v1866 = vsel %vm1253, %v1405, %v1657
      %v1867 = vsel %vm1253, %v1408, %v1659
      %v1868 = vsel %vm1253, %v1411, %v1661
      %v1869 = vsel %vm1253, %v1414, %v1663
      %v1870 = vsel %vm1253, %v1417, %v1665
      %v1871 = vsel %vm1253, %v1420, %v1667
      %v1872 = vsel %vm1253, %v1423, %v1669
      %v1873 = vsel %vm1253, %v1620, %v1671
      %v1874 = vsel %vm1824, %v1858, %v1690
      %v1875 = vsel %vm1824, %v1859, %v1692
      %v1876 = vsel %vm1824, %v1860, %v1694
      %v1877 = vsel %vm1824, %v1861, %v1696
      %v1878 = vsel %vm1824, %v1862, %v1698
      %v1879 = vsel %vm1824, %v1863, %v1700
      %v1880 = vsel %vm1824, %v1864, %v1702
      %v1881 = vsel %vm1824, %v1865, %v1704
      %v1882 = vsel %vm1824, %v1866, %v1706
      %v1883 = vsel %vm1824, %v1867, %v1708
      %v1884 = vsel %vm1824, %v1868, %v1710
      %v1885 = vsel %vm1824, %v1869, %v1712
      %v1886 = vsel %vm1824, %v1870, %v1714
      %v1887 = vsel %vm1824, %v1871, %v1716
      %v1888 = vsel %vm1824, %v1872, %v1718
      %v1889 = vsel %vm1824, %v1873, %v1720
      %v1890 = vsel %vm1841, %v1874, %v1742
      %v1891 = vsel %vm1841, %v1875, %v1744
      %v1892 = vsel %vm1841, %v1876, %v1746
      %v1893 = vsel %vm1841, %v1877, %v1748
      %v1894 = vsel %vm1841, %v1878, %v1750
      %v1895 = vsel %vm1841, %v1879, %v1752
      %v1896 = vsel %vm1841, %v1880, %v1754
      %v1897 = vsel %vm1841, %v1881, %v1756
      %v1898 = vsel %vm1841, %v1882, %v1758
      %v1899 = vsel %vm1841, %v1883, %v1760
      %v1900 = vsel %vm1841, %v1884, %v1762
      %v1901 = vsel %vm1841, %v1885, %v1764
      %v1902 = vsel %vm1841, %v1886, %v1766
      %v1903 = vsel %vm1841, %v1887, %v1768
      %v1904 = vsel %vm1841, %v1888, %v1770
      %v1905 = vsel %vm1841, %v1889, %v1772
      %v1906 = vpack.c.bf16 %v1843, %v1842
      %v1907 = vpack.c.bf16 %v1891, %v1890
      %v1908 = vpack.c.bf16 %v1483, %v1480
      %v1909 = vpack.c.bf16 %v1845, %v1844
      %v1910 = vpack.c.bf16 %v1893, %v1892
      %v1911 = vpack.c.bf16 %v1489, %v1486
      %v1912 = vpack.c.bf16 %v1847, %v1846
      %v1913 = vpack.c.bf16 %v1895, %v1894
      %v1914 = vpack.c.bf16 %v1495, %v1492
      %v1915 = vpack.c.bf16 %v1849, %v1848
      %v1916 = vpack.c.bf16 %v1897, %v1896
      %v1917 = vpack.c.bf16 %v1501, %v1498
      %v1918 = vpack.c.bf16 %v1851, %v1850
      %v1919 = vpack.c.bf16 %v1899, %v1898
      %v1920 = vpack.c.bf16 %v1507, %v1504
      %v1921 = vpack.c.bf16 %v1853, %v1852
      %v1922 = vpack.c.bf16 %v1901, %v1900
      %v1923 = vpack.c.bf16 %v1513, %v1510
      %v1924 = vpack.c.bf16 %v1855, %v1854
      %v1925 = vpack.c.bf16 %v1903, %v1902
      %v1926 = vpack.c.bf16 %v1519, %v1516
      %v1927 = vpack.c.bf16 %v1857, %v1856
      %v1928 = vpack.c.bf16 %v1905, %v1904
      %v1929 = vpack.c.bf16 %v1791, %v1639
      %v1930 = vld [vmem:[%s3] sm:$0xff]
      %v1931 = vld [vmem:[%s3 + $0x8] sm:$0xff]
      %v1932 = vld [vmem:[%s3 + $0x10] sm:$0xff]
      %v1933 = vld [vmem:[%s3 + $0x18] sm:$0xff]
      %v1934 = vld [vmem:[%s3 + $0x20] sm:$0xff]
      %v1935 = vld [vmem:[%s3 + $0x28] sm:$0xff]
      %v1936 = vld [vmem:[%s3 + $0x30] sm:$0xff]
      %v1937 = vld [vmem:[%s3 + $0x38] sm:$0xff]
      %v1938 = vld [vmem:[%s3 + $0x40] sm:$0xff]
      %v1939 = vld [vmem:[%s3 + $0x48] sm:$0xff]
      %v1940 = vld [vmem:[%s3 + $0x50] sm:$0xff]
      %v1941 = vld [vmem:[%s3 + $0x58] sm:$0xff]
      %v1942 = vld [vmem:[%s3 + $0x60] sm:$0xff]
      %v1943 = vld [vmem:[%s3 + $0x68] sm:$0xff]
      %v1944 = vld [vmem:[%s3 + $0x70] sm:$0xff]
      %v1945 = vld [vmem:[%s3 + $0x78] sm:$0xff]
      %v1946 = vld [vmem:[%s3 + $0x80] sm:$0xff]
      %v1947 = vld [vmem:[%s3 + $0x88] sm:$0xff]
      %v1948 = vld [vmem:[%s3 + $0x90] sm:$0xff]
      %v1949 = vld [vmem:[%s3 + $0x98] sm:$0xff]
      %v1950 = vld [vmem:[%s3 + $0xa0] sm:$0xff]
      %v1951 = vld [vmem:[%s3 + $0xa8] sm:$0xff]
      %v1952 = vld [vmem:[%s3 + $0xb0] sm:$0xff]
      %v1953 = vld [vmem:[%s3 + $0xb8] sm:$0xff]
      %v1954 = vld [vmem:[%s3 + $0xc0] sm:$0xff]
      %v1955 = vld [vmem:[%s3 + $0xc8] sm:$0xff]
      %v1956 = vld [vmem:[%s3 + $0xd0] sm:$0xff]
      %v1957 = vld [vmem:[%s3 + $0xd8] sm:$0xff]
      %v1958 = vld [vmem:[%s3 + $0xe0] sm:$0xff]
      %v1959 = vld [vmem:[%s3 + $0xe8] sm:$0xff]
      %v1960 = vld [vmem:[%s3 + $0xf0] sm:$0xff]
      %v1961 = vld [vmem:[%s3 + $0xf8] sm:$0xff]
      %v1962 = vld [vmem:[%s3 + $0x100] sm:$0xff]
      %v1963 = vld [vmem:[%s3 + $0x108] sm:$0xff]
      %v1964 = vld [vmem:[%s3 + $0x110] sm:$0xff]
      %v1965 = vld [vmem:[%s3 + $0x118] sm:$0xff]
      %v1966 = vpack.c.bf16 %v1931, %v1930
      %v1967 = vpack.c.bf16 %v1933, %v1932
      %v1968 = vpack.c.bf16 %v1935, %v1934
      %v1969 = vpack.c.bf16 %v1937, %v1936
      %v1970 = vpack.c.bf16 %v1939, %v1938
      %v1971 = vpack.c.bf16 %v1941, %v1940
      %v1972 = vpack.c.bf16 %v1943, %v1942
      %v1973 = vpack.c.bf16 %v1945, %v1944
      %v1974 = vpack.c.bf16 %v1947, %v1946
      %v1975 = vpack.c.bf16 %v1949, %v1948
      %v1976 = vpack.c.bf16 %v1951, %v1950
      %v1977 = vpack.c.bf16 %v1953, %v1952
      %v1978 = vpack.c.bf16 %v1955, %v1954
      %v1979 = vpack.c.bf16 %v1957, %v1956
      %v1980 = vpack.c.bf16 %v1959, %v1958
      %v1981 = vpack.c.bf16 %v1961, %v1960
      %v1982 = vpack.c.bf16 %v1963, %v1962
      %v1983 = vpack.c.bf16 %v1965, %v1964
      %v1984 = vld [vmem:[%s4] sm:$0x1]
      %v1986 = vlaneseq
      %v1987 = vshrl.u32 %v1986, 7
      %v1988 = vsub.s32 0, %v1987
      %v1989 = vrot.slane %v1984, %v1988
      %v1992 = vsel %vm1253, %v1908, 0
      %v1995 = vsel %vm1253, %v1911, 0
      %v1998 = vsel %vm1253, %v1914, 0
      %v2001 = vsel %vm1253, %v1917, 0
      %v2004 = vsel %vm1253, %v1920, 0
      %v2007 = vsel %vm1253, %v1923, 0
      %v2010 = vsel %vm1253, %v1926, 0
      %v2013 = vsel %vm1253, %v1929, 0
      %2015 = vmatprep.subr.bf16.mxu0 0
      %2016 = vmatpush1.bf16.msra.mxu0 %v1973
      %2017 = vmatprep.subr.bf16.mxu0 0
      %2018 = vmatpush1.bf16.msra.mxu0 %v1972
      %2019 = vmatprep.subr.bf16.mxu0 0
      %2020 = vmatpush1.bf16.msra.mxu0 %v1971
      %2021 = vmatprep.subr.bf16.mxu0 0
      %2022 = vmatpush1.bf16.msra.mxu0 %v1970
      %2023 = vmatprep.subr.bf16.mxu0 0
      %2024 = vmatpush1.bf16.msra.mxu0 %v1969
      %2025 = vmatprep.subr.bf16.mxu0 0
      %2026 = vmatpush1.bf16.msra.mxu0 %v1968
      %2027 = vmatprep.subr.bf16.mxu0 0
      %2028 = vmatpush1.bf16.msra.mxu0 %v1967
      %2029 = vmatprep.subr.bf16.mxu0 0
      %2030 = vmatpush1.bf16.msra.mxu0 %v1966
      %2031 = vmatprep.subr.bf16.mxu0 0
      %2032 = vmatpush2.bf16.msra.mxu0 %v1981
      %2033 = vmatprep.subr.bf16.mxu0 0
      %2034 = vmatpush2.bf16.msra.mxu0 %v1980
      %2035 = vmatprep.subr.bf16.mxu0 0
      %2036 = vmatpush2.bf16.msra.mxu0 %v1979
      %2037 = vmatprep.subr.bf16.mxu0 0
      %2038 = vmatpush2.bf16.msra.mxu0 %v1978
      %2039 = vmatprep.subr.bf16.mxu0 0
      %2040 = vmatpush2.bf16.msra.mxu0 %v1977
      %2041 = vmatprep.subr.bf16.mxu0 0
      %2042 = vmatpush2.bf16.msra.mxu0 %v1976
      %2043 = vmatprep.subr.bf16.mxu0 0
      %2044 = vmatpush2.bf16.msra.mxu0 %v1975
      %2045 = vmatprep.subr.bf16.mxu0 0
      %2046 = vmatpush2.bf16.msra.mxu0 %v1974
      %2047 = vmatprep.mubr.bf16.mxu0 %v1907
      %2048 = vmatmul.mubr.bf16.gmra.mxu0 %v1906
      %v2049 = vpop.f32.mrf.mxu0
      %v2050 = vadd.f32 %v1989, %v2049
      %v2051 = vpop.f32.mrf.mxu0
      %v2052 = vpop.f32.mrf.mxu0
      %v2053 = vadd.f32 %v1989, %v2052
      %v2054 = vpop.f32.mrf.mxu0
      %2055 = vmatprep.mubr.bf16.mxu0 %v1910
      %2056 = vmatmul.mubr.bf16.gmra.mxu0 %v1909
      %v2057 = vpop.f32.mrf.mxu0
      %v2058 = vadd.f32 %v1989, %v2057
      %v2059 = vpop.f32.mrf.mxu0
      %v2060 = vpop.f32.mrf.mxu0
      %v2061 = vadd.f32 %v1989, %v2060
      %v2062 = vpop.f32.mrf.mxu0
      %2063 = vmatprep.mubr.bf16.mxu0 %v1913
      %2064 = vmatmul.mubr.bf16.gmra.mxu0 %v1912
      %v2065 = vpop.f32.mrf.mxu0
      %v2066 = vadd.f32 %v1989, %v2065
      %v2067 = vpop.f32.mrf.mxu0
      %v2068 = vpop.f32.mrf.mxu0
      %v2069 = vadd.f32 %v1989, %v2068
      %v2070 = vpop.f32.mrf.mxu0
      %2071 = vmatprep.mubr.bf16.mxu0 %v1916
      %2072 = vmatmul.mubr.bf16.gmra.mxu0 %v1915
      %v2073 = vpop.f32.mrf.mxu0
      %v2074 = vadd.f32 %v1989, %v2073
      %v2075 = vpop.f32.mrf.mxu0
      %v2076 = vpop.f32.mrf.mxu0
      %v2077 = vadd.f32 %v1989, %v2076
      %v2078 = vpop.f32.mrf.mxu0
      %2079 = vmatprep.mubr.bf16.mxu0 %v1919
      %2080 = vmatmul.mubr.bf16.gmra.mxu0 %v1918
      %v2081 = vpop.f32.mrf.mxu0
      %v2082 = vadd.f32 %v1989, %v2081
      %v2083 = vpop.f32.mrf.mxu0
      %v2084 = vpop.f32.mrf.mxu0
      %v2085 = vadd.f32 %v1989, %v2084
      %v2086 = vpop.f32.mrf.mxu0
      %2087 = vmatprep.mubr.bf16.mxu0 %v1922
      %2088 = vmatmul.mubr.bf16.gmra.mxu0 %v1921
      %v2089 = vpop.f32.mrf.mxu0
      %v2090 = vadd.f32 %v1989, %v2089
      %v2091 = vpop.f32.mrf.mxu0
      %v2092 = vpop.f32.mrf.mxu0
      %v2093 = vadd.f32 %v1989, %v2092
      %v2094 = vpop.f32.mrf.mxu0
      %2095 = vmatprep.mubr.bf16.mxu0 %v1925
      %2096 = vmatmul.mubr.bf16.gmra.mxu0 %v1924
      %v2097 = vpop.f32.mrf.mxu0
      %v2098 = vadd.f32 %v1989, %v2097
      %v2099 = vpop.f32.mrf.mxu0
      %v2100 = vpop.f32.mrf.mxu0
      %v2101 = vadd.f32 %v1989, %v2100
      %v2102 = vpop.f32.mrf.mxu0
      %2103 = vmatprep.mubr.bf16.mxu0 %v1928
      %2104 = vmatmul.mubr.bf16.gmra.mxu0 %v1927
      %v2105 = vpop.f32.mrf.mxu0
      %v2106 = vadd.f32 %v1989, %v2105
      %v2107 = vpop.f32.mrf.mxu0
      %v2108 = vpop.f32.mrf.mxu0
      %v2109 = vadd.f32 %v1989, %v2108
      %v2110 = vpop.f32.mrf.mxu0
      %2111 = vdwg.mxu0
      %2112 = vmatprep.subr.bf16.mxu0 0
      %2113 = vmatpush1.bf16.msra.mxu0 0
      %2114 = vmatprep.subr.bf16.mxu0 0
      %2115 = vmatpush1.bf16.msra.mxu0 0
      %2116 = vmatprep.subr.bf16.mxu0 0
      %2117 = vmatpush1.bf16.msra.mxu0 0
      %2118 = vmatprep.subr.bf16.mxu0 0
      %2119 = vmatpush1.bf16.msra.mxu0 0
      %2120 = vmatprep.subr.bf16.mxu0 0
      %2121 = vmatpush1.bf16.msra.mxu0 0
      %2122 = vmatprep.subr.bf16.mxu0 0
      %2123 = vmatpush1.bf16.msra.mxu0 0
      %2124 = vmatprep.subr.bf16.mxu0 0
      %2125 = vmatpush1.bf16.msra.mxu0 %v1983
      %2126 = vmatprep.subr.bf16.mxu0 0
      %2127 = vmatpush1.bf16.msra.mxu0 %v1982
      %2128 = vmatprep.subr.bf16.mxu0 0
      %2129 = vmatpush2.bf16.msra.mxu0 0
      %2130 = vmatprep.subr.bf16.mxu0 0
      %2131 = vmatpush2.bf16.msra.mxu0 0
      %2132 = vmatprep.subr.bf16.mxu0 0
      %2133 = vmatpush2.bf16.msra.mxu0 0
      %2134 = vmatprep.subr.bf16.mxu0 0
      %2135 = vmatpush2.bf16.msra.mxu0 0
      %2136 = vmatprep.subr.bf16.mxu0 0
      %2137 = vmatpush2.bf16.msra.mxu0 0
      %2138 = vmatprep.subr.bf16.mxu0 0
      %2139 = vmatpush2.bf16.msra.mxu0 0
      %2140 = vmatprep.subr.bf16.mxu0 0
      %2141 = vmatpush2.bf16.msra.mxu0 0
      %2142 = vmatprep.subr.bf16.mxu0 0
      %2143 = vmatpush2.bf16.msra.mxu0 0
      %2144 = vmatprep.mubr.bf16.mxu0 0
      %2145 = vmatmul.mubr.bf16.gmra.mxu0 %v1992
      %v2146 = vpop.f32.mrf.mxu0
      %v2147 = vadd.f32 %v2050, %v2146
      %v2148 = vpop.f32.mrf.mxu0
      %v2149 = vpop.f32.mrf.mxu0
      %v2150 = vadd.f32 %v2053, %v2149
      %v2151 = vpop.f32.mrf.mxu0
      %2152 = vmatprep.mubr.bf16.mxu0 0
      %2153 = vmatmul.mubr.bf16.gmra.mxu0 %v1995
      %v2154 = vpop.f32.mrf.mxu0
      %v2155 = vadd.f32 %v2058, %v2154
      %v2156 = vpop.f32.mrf.mxu0
      %v2157 = vpop.f32.mrf.mxu0
      %v2158 = vadd.f32 %v2061, %v2157
      %v2159 = vpop.f32.mrf.mxu0
      %2160 = vmatprep.mubr.bf16.mxu0 0
      %2161 = vmatmul.mubr.bf16.gmra.mxu0 %v1998
      %v2162 = vpop.f32.mrf.mxu0
      %v2163 = vadd.f32 %v2066, %v2162
      %v2164 = vpop.f32.mrf.mxu0
      %v2165 = vpop.f32.mrf.mxu0
      %v2166 = vadd.f32 %v2069, %v2165
      %v2167 = vpop.f32.mrf.mxu0
      %2168 = vmatprep.mubr.bf16.mxu0 0
      %2169 = vmatmul.mubr.bf16.gmra.mxu0 %v2001
      %v2170 = vpop.f32.mrf.mxu0
      %v2171 = vadd.f32 %v2074, %v2170
      %v2172 = vpop.f32.mrf.mxu0
      %v2173 = vpop.f32.mrf.mxu0
      %v2174 = vadd.f32 %v2077, %v2173
      %v2175 = vpop.f32.mrf.mxu0
      %2176 = vmatprep.mubr.bf16.mxu0 0
      %2177 = vmatmul.mubr.bf16.gmra.mxu0 %v2004
      %v2178 = vpop.f32.mrf.mxu0
      %v2179 = vadd.f32 %v2082, %v2178
      %v2180 = vpop.f32.mrf.mxu0
      %v2181 = vpop.f32.mrf.mxu0
      %v2182 = vadd.f32 %v2085, %v2181
      %v2183 = vpop.f32.mrf.mxu0
      %2184 = vmatprep.mubr.bf16.mxu0 0
      %2185 = vmatmul.mubr.bf16.gmra.mxu0 %v2007
      %v2186 = vpop.f32.mrf.mxu0
      %v2187 = vadd.f32 %v2090, %v2186
      %v2188 = vpop.f32.mrf.mxu0
      %v2189 = vpop.f32.mrf.mxu0
      %v2190 = vadd.f32 %v2093, %v2189
      %v2191 = vpop.f32.mrf.mxu0
      %2192 = vmatprep.mubr.bf16.mxu0 0
      %2193 = vmatmul.mubr.bf16.gmra.mxu0 %v2010
      %v2194 = vpop.f32.mrf.mxu0
      %v2195 = vadd.f32 %v2098, %v2194
      %v2196 = vpop.f32.mrf.mxu0
      %v2197 = vpop.f32.mrf.mxu0
      %v2198 = vadd.f32 %v2101, %v2197
      %v2199 = vpop.f32.mrf.mxu0
      %2200 = vmatprep.mubr.bf16.mxu0 0
      %2201 = vmatmul.mubr.bf16.gmra.mxu0 %v2013
      %v2202 = vpop.f32.mrf.mxu0
      %v2203 = vadd.f32 %v2106, %v2202
      %v2204 = vpop.f32.mrf.mxu0
      %v2205 = vpop.f32.mrf.mxu0
      %v2206 = vadd.f32 %v2109, %v2205
      %v2207 = vpop.f32.mrf.mxu0
      %2208 = vdwg.mxu0
      %v2209 = vmax.f32 %v2147, 0.0
      %v2210 = vmax.f32 %v2150, 0.0
      %v2211 = vmax.f32 %v2155, 0.0
      %v2212 = vmax.f32 %v2158, 0.0
      %v2213 = vmax.f32 %v2163, 0.0
      %v2214 = vmax.f32 %v2166, 0.0
      %v2215 = vmax.f32 %v2171, 0.0
      %v2216 = vmax.f32 %v2174, 0.0
      %v2217 = vmax.f32 %v2179, 0.0
      %v2218 = vmax.f32 %v2182, 0.0
      %v2219 = vmax.f32 %v2187, 0.0
      %v2220 = vmax.f32 %v2190, 0.0
      %v2221 = vmax.f32 %v2195, 0.0
      %v2222 = vmax.f32 %v2198, 0.0
      %v2223 = vmax.f32 %v2203, 0.0
      %v2224 = vmax.f32 %v2206, 0.0
      %2225 = vst.msk [vmem:[#allocation3] sm:$0xff] %vm1824, 0.0
      %vm2226 = vcmask 517120
      %2227 = vst.msk [vmem:[#allocation3 + $0x8] sm:$0x3] %vm2226, 0.0
      %2228 = vst.msk [vmem:[#allocation3 + $0x10] sm:$0xff] %vm1824, 0.0
      %2229 = vst.msk [vmem:[#allocation3 + $0x18] sm:$0x3] %vm2226, 0.0
      %2230 = vst.msk [vmem:[#allocation3 + $0x20] sm:$0xff] %vm1824, 0.0
      %2231 = vst.msk [vmem:[#allocation3 + $0x28] sm:$0x3] %vm2226, 0.0
      %2232 = vst.msk [vmem:[#allocation3 + $0x30] sm:$0xff] %vm1824, 0.0
      %2233 = vst.msk [vmem:[#allocation3 + $0x38] sm:$0x3] %vm2226, 0.0
      %2234 = vst.msk [vmem:[#allocation3 + $0x40] sm:$0xff] %vm1824, 0.0
      %2235 = vst.msk [vmem:[#allocation3 + $0x48] sm:$0x3] %vm2226, 0.0
      %2236 = vst.msk [vmem:[#allocation3 + $0x50] sm:$0xff] %vm1824, 0.0
      %2237 = vst.msk [vmem:[#allocation3 + $0x58] sm:$0x3] %vm2226, 0.0
      %2238 = vst.msk [vmem:[#allocation3 + $0x60] sm:$0xff] %vm1824, 0.0
      %2239 = vst.msk [vmem:[#allocation3 + $0x68] sm:$0x3] %vm2226, 0.0
      %2240 = vst.msk [vmem:[#allocation3 + $0x70] sm:$0xff] %vm1824, 0.0
      %2241 = vst.msk [vmem:[#allocation3 + $0x78] sm:$0x3] %vm2226, 0.0
      %2242 = vst.msk [vmem:[#allocation3 + $0x80] sm:$0xff] %vm1824, 0.0
      %2243 = vst.msk [vmem:[#allocation3 + $0x88] sm:$0x3] %vm2226, 0.0
      %2244 = vst.msk [vmem:[#allocation3 + $0x90] sm:$0xff] %vm1824, 0.0
      %2245 = vst.msk [vmem:[#allocation3 + $0x98] sm:$0x3] %vm2226, 0.0
      %2246 = vst.msk [vmem:[#allocation3 + $0xa0] sm:$0xff] %vm1824, 0.0
      %2247 = vst.msk [vmem:[#allocation3 + $0xa8] sm:$0x3] %vm2226, 0.0
      %2248 = vst.msk [vmem:[#allocation3 + $0xb0] sm:$0xff] %vm1824, 0.0
      %2249 = vst.msk [vmem:[#allocation3 + $0xb8] sm:$0x3] %vm2226, 0.0
      %2250 = vst.msk [vmem:[#allocation3 + $0xc0] sm:$0xff] %vm1824, 0.0
      %2251 = vst.msk [vmem:[#allocation3 + $0xc8] sm:$0x3] %vm2226, 0.0
      %2252 = vst.msk [vmem:[#allocation3 + $0xd0] sm:$0xff] %vm1824, 0.0
      %2253 = vst.msk [vmem:[#allocation3 + $0xd8] sm:$0x3] %vm2226, 0.0
      %2254 = vst.msk [vmem:[#allocation3 + $0xe0] sm:$0xff] %vm1824, 0.0
      %2255 = vst.msk [vmem:[#allocation3 + $0xe8] sm:$0x3] %vm2226, 0.0
      %2256 = vst.msk [vmem:[#allocation3 + $0xf0] sm:$0xff] %vm1824, 0.0
      %2257 = vst.msk [vmem:[#allocation3 + $0xf8] sm:$0x3] %vm2226, 0.0
      %2258 = vst.msk [vmem:[#allocation3 + $0x100] sm:$0xff] %vm1824, 0.0
      %2259 = vst.msk [vmem:[#allocation3 + $0x108] sm:$0x3] %vm2226, 0.0
      %2260 = vst.msk [vmem:[#allocation3 + $0x110] sm:$0xff] %vm1824, 0.0
      %2261 = vst.msk [vmem:[#allocation3 + $0x118] sm:$0x3] %vm2226, 0.0
      %s2262 = scalar_lea.vmem [#allocation3], 16
      %2263 = vst.msk [vmem:[%s2262 + $0x1] sm:$0xff] %vm1824, %v2209
      %2264 = vst.msk [vmem:[%s2262 + $0x11] sm:$0xff] %vm1824, %v2210
      %2265 = vst.msk [vmem:[%s2262 + $0x21] sm:$0xff] %vm1824, %v2211
      %2266 = vst.msk [vmem:[%s2262 + $0x31] sm:$0xff] %vm1824, %v2212
      %2267 = vst.msk [vmem:[%s2262 + $0x41] sm:$0xff] %vm1824, %v2213
      %2268 = vst.msk [vmem:[%s2262 + $0x51] sm:$0xff] %vm1824, %v2214
      %2269 = vst.msk [vmem:[%s2262 + $0x61] sm:$0xff] %vm1824, %v2215
      %2270 = vst.msk [vmem:[%s2262 + $0x71] sm:$0xff] %vm1824, %v2216
      %2271 = vst.msk [vmem:[%s2262 + $0x81] sm:$0xff] %vm1824, %v2217
      %2272 = vst.msk [vmem:[%s2262 + $0x91] sm:$0xff] %vm1824, %v2218
      %2273 = vst.msk [vmem:[%s2262 + $0xa1] sm:$0xff] %vm1824, %v2219
      %2274 = vst.msk [vmem:[%s2262 + $0xb1] sm:$0xff] %vm1824, %v2220
      %2275 = vst.msk [vmem:[%s2262 + $0xc1] sm:$0xff] %vm1824, %v2221
      %2276 = vst.msk [vmem:[%s2262 + $0xd1] sm:$0xff] %vm1824, %v2222
      %2277 = vst.msk [vmem:[%s2262 + $0xe1] sm:$0xff] %vm1824, %v2223
      %2278 = vst.msk [vmem:[%s2262 + $0xf1] sm:$0xff] %vm1824, %v2224
      %v2279 = vld [vmem:[#allocation3] sm:$0xff]
      %v2280 = vld [vmem:[#allocation3 + $0x8] sm:$0x3]
      %v2281 = vld [vmem:[#allocation3 + $0x10] sm:$0xff]
      %v2282 = vld [vmem:[#allocation3 + $0x18] sm:$0x3]
      %v2283 = vld [vmem:[#allocation3 + $0x20] sm:$0xff]
      %v2284 = vld [vmem:[#allocation3 + $0x28] sm:$0x3]
      %v2285 = vld [vmem:[#allocation3 + $0x30] sm:$0xff]
      %v2286 = vld [vmem:[#allocation3 + $0x38] sm:$0x3]
      %v2287 = vld [vmem:[#allocation3 + $0x40] sm:$0xff]
      %v2288 = vld [vmem:[#allocation3 + $0x48] sm:$0x3]
      %v2289 = vld [vmem:[#allocation3 + $0x50] sm:$0xff]
      %v2290 = vld [vmem:[#allocation3 + $0x58] sm:$0x3]
      %v2291 = vld [vmem:[#allocation3 + $0x60] sm:$0xff]
      %v2292 = vld [vmem:[#allocation3 + $0x68] sm:$0x3]
      %v2293 = vld [vmem:[#allocation3 + $0x70] sm:$0xff]
      %v2294 = vld [vmem:[#allocation3 + $0x78] sm:$0x3]
      %v2295 = vld [vmem:[#allocation3 + $0x80] sm:$0xff]
      %v2296 = vld [vmem:[#allocation3 + $0x88] sm:$0x3]
      %v2297 = vld [vmem:[#allocation3 + $0x90] sm:$0xff]
      %v2298 = vld [vmem:[#allocation3 + $0x98] sm:$0x3]
      %v2299 = vld [vmem:[#allocation3 + $0xa0] sm:$0xff]
      %v2300 = vld [vmem:[#allocation3 + $0xa8] sm:$0x3]
      %v2301 = vld [vmem:[#allocation3 + $0xb0] sm:$0xff]
      %v2302 = vld [vmem:[#allocation3 + $0xb8] sm:$0x3]
      %v2303 = vld [vmem:[#allocation3 + $0xc0] sm:$0xff]
      %v2304 = vld [vmem:[#allocation3 + $0xc8] sm:$0x3]
      %v2305 = vld [vmem:[#allocation3 + $0xd0] sm:$0xff]
      %v2306 = vld [vmem:[#allocation3 + $0xd8] sm:$0x3]
      %v2307 = vld [vmem:[#allocation3 + $0xe0] sm:$0xff]
      %v2308 = vld [vmem:[#allocation3 + $0xe8] sm:$0x3]
      %v2309 = vld [vmem:[#allocation3 + $0xf0] sm:$0xff]
      %v2310 = vld [vmem:[#allocation3 + $0xf8] sm:$0x3]
      %v2311 = vld [vmem:[#allocation3 + $0x100] sm:$0xff]
      %v2312 = vld [vmem:[#allocation3 + $0x108] sm:$0x3]
      %v2313 = vld [vmem:[#allocation3 + $0x110] sm:$0xff]
      %v2314 = vld [vmem:[#allocation3 + $0x118] sm:$0x3]
      %v2347 = vrot.slane %v2279, 1
      %v2348 = vrot.slane %v2280, 1
      %v2349 = vsel %vm456, %v2347, %v2348
      %v2350 = vrot.slane %v2281, 1
      %v2351 = vrot.slane %v2282, 1
      %v2352 = vsel %vm456, %v2350, %v2351
      %v2353 = vrot.slane %v2283, 1
      %v2354 = vrot.slane %v2284, 1
      %v2355 = vsel %vm456, %v2353, %v2354
      %v2356 = vrot.slane %v2285, 1
      %v2357 = vrot.slane %v2286, 1
      %v2358 = vsel %vm456, %v2356, %v2357
      %v2359 = vrot.slane %v2287, 1
      %v2360 = vrot.slane %v2288, 1
      %v2361 = vsel %vm456, %v2359, %v2360
      %v2362 = vrot.slane %v2289, 1
      %v2363 = vrot.slane %v2290, 1
      %v2364 = vsel %vm456, %v2362, %v2363
      %v2365 = vrot.slane %v2291, 1
      %v2366 = vrot.slane %v2292, 1
      %v2367 = vsel %vm456, %v2365, %v2366
      %v2368 = vrot.slane %v2293, 1
      %v2369 = vrot.slane %v2294, 1
      %v2370 = vsel %vm456, %v2368, %v2369
      %v2371 = vrot.slane %v2295, 1
      %v2372 = vrot.slane %v2296, 1
      %v2373 = vsel %vm456, %v2371, %v2372
      %v2374 = vrot.slane %v2297, 1
      %v2375 = vrot.slane %v2298, 1
      %v2376 = vsel %vm456, %v2374, %v2375
      %v2377 = vrot.slane %v2299, 1
      %v2378 = vrot.slane %v2300, 1
      %v2379 = vsel %vm456, %v2377, %v2378
      %v2380 = vrot.slane %v2301, 1
      %v2381 = vrot.slane %v2302, 1
      %v2382 = vsel %vm456, %v2380, %v2381
      %v2383 = vrot.slane %v2303, 1
      %v2384 = vrot.slane %v2304, 1
      %v2385 = vsel %vm456, %v2383, %v2384
      %v2386 = vrot.slane %v2305, 1
      %v2387 = vrot.slane %v2306, 1
      %v2388 = vsel %vm456, %v2386, %v2387
      %v2389 = vrot.slane %v2307, 1
      %v2390 = vrot.slane %v2308, 1
      %v2391 = vsel %vm456, %v2389, %v2390
      %v2392 = vrot.slane %v2309, 1
      %v2393 = vrot.slane %v2310, 1
      %v2394 = vsel %vm456, %v2392, %v2393
      %2395 = vrot.lane.b32.xlu0 %v2349, 64
      %v2396 = vpop.permute.xlu0 %2395
      %2397 = vrot.lane.b32.xlu0 %v2352, 64
      %v2398 = vpop.permute.xlu0 %2397
      %2399 = vrot.lane.b32.xlu0 %v2355, 64
      %v2400 = vpop.permute.xlu0 %2399
      %2401 = vrot.lane.b32.xlu0 %v2358, 64
      %v2402 = vpop.permute.xlu0 %2401
      %2403 = vrot.lane.b32.xlu0 %v2361, 64
      %v2404 = vpop.permute.xlu0 %2403
      %2405 = vrot.lane.b32.xlu0 %v2364, 64
      %v2406 = vpop.permute.xlu0 %2405
      %2407 = vrot.lane.b32.xlu0 %v2367, 64
      %v2408 = vpop.permute.xlu0 %2407
      %2409 = vrot.lane.b32.xlu0 %v2370, 64
      %v2410 = vpop.permute.xlu0 %2409
      %2411 = vrot.lane.b32.xlu0 %v2373, 64
      %v2412 = vpop.permute.xlu0 %2411
      %2413 = vrot.lane.b32.xlu0 %v2376, 64
      %v2414 = vpop.permute.xlu0 %2413
      %2415 = vrot.lane.b32.xlu0 %v2379, 64
      %v2416 = vpop.permute.xlu0 %2415
      %2417 = vrot.lane.b32.xlu0 %v2382, 64
      %v2418 = vpop.permute.xlu0 %2417
      %2419 = vrot.lane.b32.xlu0 %v2385, 64
      %v2420 = vpop.permute.xlu0 %2419
      %2421 = vrot.lane.b32.xlu0 %v2388, 64
      %v2422 = vpop.permute.xlu0 %2421
      %2423 = vrot.lane.b32.xlu0 %v2391, 64
      %v2424 = vpop.permute.xlu0 %2423
      %2425 = vrot.lane.b32.xlu0 %v2394, 64
      %v2426 = vpop.permute.xlu0 %2425
      %v2443 = vrot.slane %v2279, 2
      %v2444 = vrot.slane %v2280, 2
      %v2445 = vsel %vm553, %v2443, %v2444
      %v2446 = vrot.slane %v2281, 2
      %v2447 = vrot.slane %v2282, 2
      %v2448 = vsel %vm553, %v2446, %v2447
      %v2449 = vrot.slane %v2283, 2
      %v2450 = vrot.slane %v2284, 2
      %v2451 = vsel %vm553, %v2449, %v2450
      %v2452 = vrot.slane %v2285, 2
      %v2453 = vrot.slane %v2286, 2
      %v2454 = vsel %vm553, %v2452, %v2453
      %v2455 = vrot.slane %v2287, 2
      %v2456 = vrot.slane %v2288, 2
      %v2457 = vsel %vm553, %v2455, %v2456
      %v2458 = vrot.slane %v2289, 2
      %v2459 = vrot.slane %v2290, 2
      %v2460 = vsel %vm553, %v2458, %v2459
      %v2461 = vrot.slane %v2291, 2
      %v2462 = vrot.slane %v2292, 2
      %v2463 = vsel %vm553, %v2461, %v2462
      %v2464 = vrot.slane %v2293, 2
      %v2465 = vrot.slane %v2294, 2
      %v2466 = vsel %vm553, %v2464, %v2465
      %v2467 = vrot.slane %v2295, 2
      %v2468 = vrot.slane %v2296, 2
      %v2469 = vsel %vm553, %v2467, %v2468
      %v2470 = vrot.slane %v2297, 2
      %v2471 = vrot.slane %v2298, 2
      %v2472 = vsel %vm553, %v2470, %v2471
      %v2473 = vrot.slane %v2299, 2
      %v2474 = vrot.slane %v2300, 2
      %v2475 = vsel %vm553, %v2473, %v2474
      %v2476 = vrot.slane %v2301, 2
      %v2477 = vrot.slane %v2302, 2
      %v2478 = vsel %vm553, %v2476, %v2477
      %v2479 = vrot.slane %v2303, 2
      %v2480 = vrot.slane %v2304, 2
      %v2481 = vsel %vm553, %v2479, %v2480
      %v2482 = vrot.slane %v2305, 2
      %v2483 = vrot.slane %v2306, 2
      %v2484 = vsel %vm553, %v2482, %v2483
      %v2485 = vrot.slane %v2307, 2
      %v2486 = vrot.slane %v2308, 2
      %v2487 = vsel %vm553, %v2485, %v2486
      %v2488 = vrot.slane %v2309, 2
      %v2489 = vrot.slane %v2310, 2
      %v2490 = vsel %vm553, %v2488, %v2489
      %2508 = vrot.lane.b32.xlu0 %v2281, 64
      %v2509 = vpop.permute.xlu0 %2508
      %2510 = vrot.lane.b32.xlu0 %v2283, 64
      %v2511 = vpop.permute.xlu0 %2510
      %2512 = vrot.lane.b32.xlu0 %v2285, 64
      %v2513 = vpop.permute.xlu0 %2512
      %2514 = vrot.lane.b32.xlu0 %v2287, 64
      %v2515 = vpop.permute.xlu0 %2514
      %2516 = vrot.lane.b32.xlu0 %v2289, 64
      %v2517 = vpop.permute.xlu0 %2516
      %2518 = vrot.lane.b32.xlu0 %v2291, 64
      %v2519 = vpop.permute.xlu0 %2518
      %2520 = vrot.lane.b32.xlu0 %v2293, 64
      %v2521 = vpop.permute.xlu0 %2520
      %2522 = vrot.lane.b32.xlu0 %v2295, 64
      %v2523 = vpop.permute.xlu0 %2522
      %2524 = vrot.lane.b32.xlu0 %v2297, 64
      %v2525 = vpop.permute.xlu0 %2524
      %2526 = vrot.lane.b32.xlu0 %v2299, 64
      %v2527 = vpop.permute.xlu0 %2526
      %2528 = vrot.lane.b32.xlu0 %v2301, 64
      %v2529 = vpop.permute.xlu0 %2528
      %2530 = vrot.lane.b32.xlu0 %v2303, 64
      %v2531 = vpop.permute.xlu0 %2530
      %2532 = vrot.lane.b32.xlu0 %v2305, 64
      %v2533 = vpop.permute.xlu0 %2532
      %2534 = vrot.lane.b32.xlu0 %v2307, 64
      %v2535 = vpop.permute.xlu0 %2534
      %2536 = vrot.lane.b32.xlu0 %v2309, 64
      %v2537 = vpop.permute.xlu0 %2536
      %2538 = vrot.lane.b32.xlu0 %v2311, 64
      %v2539 = vpop.permute.xlu0 %2538
      %v2557 = vrot.slane %v2311, 1
      %v2558 = vrot.slane %v2312, 1
      %v2559 = vsel %vm456, %v2557, %v2558
      %v2576 = vrot.slane %v2311, 2
      %v2577 = vrot.slane %v2312, 2
      %v2578 = vsel %vm553, %v2576, %v2577
      %2579 = vrot.lane.b32.xlu0 %v2448, 64
      %v2580 = vpop.permute.xlu0 %2579
      %2581 = vrot.lane.b32.xlu0 %v2451, 64
      %v2582 = vpop.permute.xlu0 %2581
      %2583 = vrot.lane.b32.xlu0 %v2454, 64
      %v2584 = vpop.permute.xlu0 %2583
      %2585 = vrot.lane.b32.xlu0 %v2457, 64
      %v2586 = vpop.permute.xlu0 %2585
      %2587 = vrot.lane.b32.xlu0 %v2460, 64
      %v2588 = vpop.permute.xlu0 %2587
      %2589 = vrot.lane.b32.xlu0 %v2463, 64
      %v2590 = vpop.permute.xlu0 %2589
      %2591 = vrot.lane.b32.xlu0 %v2466, 64
      %v2592 = vpop.permute.xlu0 %2591
      %2593 = vrot.lane.b32.xlu0 %v2469, 64
      %v2594 = vpop.permute.xlu0 %2593
      %2595 = vrot.lane.b32.xlu0 %v2472, 64
      %v2596 = vpop.permute.xlu0 %2595
      %2597 = vrot.lane.b32.xlu0 %v2475, 64
      %v2598 = vpop.permute.xlu0 %2597
      %2599 = vrot.lane.b32.xlu0 %v2478, 64
      %v2600 = vpop.permute.xlu0 %2599
      %2601 = vrot.lane.b32.xlu0 %v2481, 64
      %v2602 = vpop.permute.xlu0 %2601
      %2603 = vrot.lane.b32.xlu0 %v2484, 64
      %v2604 = vpop.permute.xlu0 %2603
      %2605 = vrot.lane.b32.xlu0 %v2487, 64
      %v2606 = vpop.permute.xlu0 %2605
      %2607 = vrot.lane.b32.xlu0 %v2490, 64
      %v2608 = vpop.permute.xlu0 %2607
      %2609 = vrot.lane.b32.xlu0 %v2578, 64
      %v2610 = vpop.permute.xlu0 %2609
      %v2629 = vrot.slane %v2313, 1
      %v2630 = vrot.slane %v2314, 1
      %v2631 = vsel %vm456, %v2629, %v2630
      %2632 = vrot.lane.b32.xlu0 %v2559, 64
      %v2633 = vpop.permute.xlu0 %2632
      %2634 = vrot.lane.b32.xlu0 %v2631, 64
      %v2635 = vpop.permute.xlu0 %2634
      %v2638 = vrot.slane %v2313, 2
      %v2639 = vrot.slane %v2314, 2
      %v2640 = vsel %vm553, %v2638, %v2639
      %v2643 = vsel %vm1824, %v2279, %v2396
      %v2644 = vsel %vm1824, %v2281, %v2398
      %v2645 = vsel %vm1824, %v2283, %v2400
      %v2646 = vsel %vm1824, %v2285, %v2402
      %v2647 = vsel %vm1824, %v2287, %v2404
      %v2648 = vsel %vm1824, %v2289, %v2406
      %v2649 = vsel %vm1824, %v2291, %v2408
      %v2650 = vsel %vm1824, %v2293, %v2410
      %v2651 = vsel %vm1824, %v2295, %v2412
      %v2652 = vsel %vm1824, %v2297, %v2414
      %v2653 = vsel %vm1824, %v2299, %v2416
      %v2654 = vsel %vm1824, %v2301, %v2418
      %v2655 = vsel %vm1824, %v2303, %v2420
      %v2656 = vsel %vm1824, %v2305, %v2422
      %v2657 = vsel %vm1824, %v2307, %v2424
      %v2658 = vsel %vm1824, %v2309, %v2426
      %v2659 = vsel %vm1824, %v2445, %v2509
      %v2660 = vsel %vm1824, %v2448, %v2511
      %v2661 = vsel %vm1824, %v2451, %v2513
      %v2662 = vsel %vm1824, %v2454, %v2515
      %v2663 = vsel %vm1824, %v2457, %v2517
      %v2664 = vsel %vm1824, %v2460, %v2519
      %v2665 = vsel %vm1824, %v2463, %v2521
      %v2666 = vsel %vm1824, %v2466, %v2523
      %v2667 = vsel %vm1824, %v2469, %v2525
      %v2668 = vsel %vm1824, %v2472, %v2527
      %v2669 = vsel %vm1824, %v2475, %v2529
      %v2670 = vsel %vm1824, %v2478, %v2531
      %v2671 = vsel %vm1824, %v2481, %v2533
      %v2672 = vsel %vm1824, %v2484, %v2535
      %v2673 = vsel %vm1824, %v2487, %v2537
      %v2674 = vsel %vm1824, %v2490, %v2539
      %v2675 = vsel %vm1824, %v2352, %v2580
      %v2676 = vsel %vm1824, %v2355, %v2582
      %v2677 = vsel %vm1824, %v2358, %v2584
      %v2678 = vsel %vm1824, %v2361, %v2586
      %v2679 = vsel %vm1824, %v2364, %v2588
      %v2680 = vsel %vm1824, %v2367, %v2590
      %v2681 = vsel %vm1824, %v2370, %v2592
      %v2682 = vsel %vm1824, %v2373, %v2594
      %v2683 = vsel %vm1824, %v2376, %v2596
      %v2684 = vsel %vm1824, %v2379, %v2598
      %v2685 = vsel %vm1824, %v2382, %v2600
      %v2686 = vsel %vm1824, %v2385, %v2602
      %v2687 = vsel %vm1824, %v2388, %v2604
      %v2688 = vsel %vm1824, %v2391, %v2606
      %v2689 = vsel %vm1824, %v2394, %v2608
      %v2690 = vsel %vm1824, %v2559, %v2610
      %v2691 = vsel %vm1824, %v2311, %v2633
      %v2692 = vsel %vm1824, %v2313, %v2635
      %v2693 = vpack.c.bf16 %v2644, %v2643
      %v2694 = vpack.c.bf16 %v2660, %v2659
      %v2695 = vpack.c.bf16 %v2676, %v2675
      %v2696 = vpack.c.bf16 %v2646, %v2645
      %v2697 = vpack.c.bf16 %v2454, %v2451
      %v2698 = vpack.c.bf16 %v2662, %v2661
      %v2699 = vpack.c.bf16 %v2678, %v2677
      %v2700 = vpack.c.bf16 %v2648, %v2647
      %v2701 = vpack.c.bf16 %v2460, %v2457
      %v2702 = vpack.c.bf16 %v2664, %v2663
      %v2703 = vpack.c.bf16 %v2680, %v2679
      %v2704 = vpack.c.bf16 %v2650, %v2649
      %v2705 = vpack.c.bf16 %v2466, %v2463
      %v2706 = vpack.c.bf16 %v2666, %v2665
      %v2707 = vpack.c.bf16 %v2682, %v2681
      %v2708 = vpack.c.bf16 %v2652, %v2651
      %v2709 = vpack.c.bf16 %v2472, %v2469
      %v2710 = vpack.c.bf16 %v2668, %v2667
      %v2711 = vpack.c.bf16 %v2684, %v2683
      %v2712 = vpack.c.bf16 %v2654, %v2653
      %v2713 = vpack.c.bf16 %v2478, %v2475
      %v2714 = vpack.c.bf16 %v2670, %v2669
      %v2715 = vpack.c.bf16 %v2686, %v2685
      %v2716 = vpack.c.bf16 %v2656, %v2655
      %v2717 = vpack.c.bf16 %v2484, %v2481
      %v2718 = vpack.c.bf16 %v2672, %v2671
      %v2719 = vpack.c.bf16 %v2688, %v2687
      %v2720 = vpack.c.bf16 %v2658, %v2657
      %v2721 = vpack.c.bf16 %v2490, %v2487
      %v2722 = vpack.c.bf16 %v2674, %v2673
      %v2723 = vpack.c.bf16 %v2690, %v2689
      %v2724 = vpack.c.bf16 %v2692, %v2691
      %v2725 = vpack.c.bf16 %v2640, %v2578
      %v2726 = vld [vmem:[%s5] sm:$0xff]
      %v2727 = vld [vmem:[%s5 + $0x8] sm:$0xff]
      %v2728 = vld [vmem:[%s5 + $0x10] sm:$0xff]
      %v2729 = vld [vmem:[%s5 + $0x18] sm:$0xff]
      %v2730 = vld [vmem:[%s5 + $0x20] sm:$0xff]
      %v2731 = vld [vmem:[%s5 + $0x28] sm:$0xff]
      %v2732 = vld [vmem:[%s5 + $0x30] sm:$0xff]
      %v2733 = vld [vmem:[%s5 + $0x38] sm:$0xff]
      %v2734 = vld [vmem:[%s5 + $0x40] sm:$0xff]
      %v2735 = vld [vmem:[%s5 + $0x48] sm:$0xff]
      %v2736 = vld [vmem:[%s5 + $0x50] sm:$0xff]
      %v2737 = vld [vmem:[%s5 + $0x58] sm:$0xff]
      %v2738 = vld [vmem:[%s5 + $0x60] sm:$0xff]
      %v2739 = vld [vmem:[%s5 + $0x68] sm:$0xff]
      %v2740 = vld [vmem:[%s5 + $0x70] sm:$0xff]
      %v2741 = vld [vmem:[%s5 + $0x78] sm:$0xff]
      %v2742 = vld [vmem:[%s5 + $0x80] sm:$0xff]
      %v2743 = vld [vmem:[%s5 + $0x88] sm:$0xff]
      %v2744 = vld [vmem:[%s5 + $0x90] sm:$0xff]
      %v2745 = vld [vmem:[%s5 + $0x98] sm:$0xff]
      %v2746 = vld [vmem:[%s5 + $0xa0] sm:$0xff]
      %v2747 = vld [vmem:[%s5 + $0xa8] sm:$0xff]
      %v2748 = vld [vmem:[%s5 + $0xb0] sm:$0xff]
      %v2749 = vld [vmem:[%s5 + $0xb8] sm:$0xff]
      %v2750 = vld [vmem:[%s5 + $0xc0] sm:$0xff]
      %v2751 = vld [vmem:[%s5 + $0xc8] sm:$0xff]
      %v2752 = vld [vmem:[%s5 + $0xd0] sm:$0xff]
      %v2753 = vld [vmem:[%s5 + $0xd8] sm:$0xff]
      %v2754 = vld [vmem:[%s5 + $0xe0] sm:$0xff]
      %v2755 = vld [vmem:[%s5 + $0xe8] sm:$0xff]
      %v2756 = vld [vmem:[%s5 + $0xf0] sm:$0xff]
      %v2757 = vld [vmem:[%s5 + $0xf8] sm:$0xff]
      %v2758 = vld [vmem:[%s5 + $0x100] sm:$0xff]
      %v2759 = vld [vmem:[%s5 + $0x108] sm:$0xff]
      %v2760 = vld [vmem:[%s5 + $0x110] sm:$0xff]
      %v2761 = vld [vmem:[%s5 + $0x118] sm:$0xff]
      %v2762 = vld [vmem:[%s5 + $0x120] sm:$0xff]
      %v2763 = vld [vmem:[%s5 + $0x128] sm:$0xff]
      %v2764 = vld [vmem:[%s5 + $0x130] sm:$0xff]
      %v2765 = vld [vmem:[%s5 + $0x138] sm:$0xff]
      %v2766 = vld [vmem:[%s5 + $0x140] sm:$0xff]
      %v2767 = vld [vmem:[%s5 + $0x148] sm:$0xff]
      %v2768 = vld [vmem:[%s5 + $0x150] sm:$0xff]
      %v2769 = vld [vmem:[%s5 + $0x158] sm:$0xff]
      %v2770 = vld [vmem:[%s5 + $0x160] sm:$0xff]
      %v2771 = vld [vmem:[%s5 + $0x168] sm:$0xff]
      %v2772 = vld [vmem:[%s5 + $0x170] sm:$0xff]
      %v2773 = vld [vmem:[%s5 + $0x178] sm:$0xff]
      %v2774 = vld [vmem:[%s5 + $0x180] sm:$0xff]
      %v2775 = vld [vmem:[%s5 + $0x188] sm:$0xff]
      %v2776 = vld [vmem:[%s5 + $0x190] sm:$0xff]
      %v2777 = vld [vmem:[%s5 + $0x198] sm:$0xff]
      %v2778 = vld [vmem:[%s5 + $0x1a0] sm:$0xff]
      %v2779 = vld [vmem:[%s5 + $0x1a8] sm:$0xff]
      %v2780 = vld [vmem:[%s5 + $0x1b0] sm:$0xff]
      %v2781 = vld [vmem:[%s5 + $0x1b8] sm:$0xff]
      %v2782 = vld [vmem:[%s5 + $0x1c0] sm:$0xff]
      %v2783 = vld [vmem:[%s5 + $0x1c8] sm:$0xff]
      %v2784 = vld [vmem:[%s5 + $0x1d0] sm:$0xff]
      %v2785 = vld [vmem:[%s5 + $0x1d8] sm:$0xff]
      %v2786 = vld [vmem:[%s5 + $0x1e0] sm:$0xff]
      %v2787 = vld [vmem:[%s5 + $0x1e8] sm:$0xff]
      %v2788 = vld [vmem:[%s5 + $0x1f0] sm:$0xff]
      %v2789 = vld [vmem:[%s5 + $0x1f8] sm:$0xff]
      %v2790 = vld [vmem:[%s5 + $0x200] sm:$0xff]
      %v2791 = vld [vmem:[%s5 + $0x208] sm:$0xff]
      %v2792 = vld [vmem:[%s5 + $0x210] sm:$0xff]
      %v2793 = vld [vmem:[%s5 + $0x218] sm:$0xff]
      %v2794 = vld [vmem:[%s5 + $0x220] sm:$0xff]
      %v2795 = vld [vmem:[%s5 + $0x228] sm:$0xff]
      %v2796 = vld [vmem:[%s5 + $0x230] sm:$0xff]
      %v2797 = vld [vmem:[%s5 + $0x238] sm:$0xff]
      %v2798 = vpack.c.bf16 %v2727, %v2726
      %v2799 = vpack.c.bf16 %v2729, %v2728
      %v2800 = vpack.c.bf16 %v2731, %v2730
      %v2801 = vpack.c.bf16 %v2733, %v2732
      %v2802 = vpack.c.bf16 %v2735, %v2734
      %v2803 = vpack.c.bf16 %v2737, %v2736
      %v2804 = vpack.c.bf16 %v2739, %v2738
      %v2805 = vpack.c.bf16 %v2741, %v2740
      %v2806 = vpack.c.bf16 %v2743, %v2742
      %v2807 = vpack.c.bf16 %v2745, %v2744
      %v2808 = vpack.c.bf16 %v2747, %v2746
      %v2809 = vpack.c.bf16 %v2749, %v2748
      %v2810 = vpack.c.bf16 %v2751, %v2750
      %v2811 = vpack.c.bf16 %v2753, %v2752
      %v2812 = vpack.c.bf16 %v2755, %v2754
      %v2813 = vpack.c.bf16 %v2757, %v2756
      %v2814 = vpack.c.bf16 %v2759, %v2758
      %v2815 = vpack.c.bf16 %v2761, %v2760
      %v2816 = vpack.c.bf16 %v2763, %v2762
      %v2817 = vpack.c.bf16 %v2765, %v2764
      %v2818 = vpack.c.bf16 %v2767, %v2766
      %v2819 = vpack.c.bf16 %v2769, %v2768
      %v2820 = vpack.c.bf16 %v2771, %v2770
      %v2821 = vpack.c.bf16 %v2773, %v2772
      %v2822 = vpack.c.bf16 %v2775, %v2774
      %v2823 = vpack.c.bf16 %v2777, %v2776
      %v2824 = vpack.c.bf16 %v2779, %v2778
      %v2825 = vpack.c.bf16 %v2781, %v2780
      %v2826 = vpack.c.bf16 %v2783, %v2782
      %v2827 = vpack.c.bf16 %v2785, %v2784
      %v2828 = vpack.c.bf16 %v2787, %v2786
      %v2829 = vpack.c.bf16 %v2789, %v2788
      %v2830 = vpack.c.bf16 %v2791, %v2790
      %v2831 = vpack.c.bf16 %v2793, %v2792
      %v2832 = vpack.c.bf16 %v2795, %v2794
      %v2833 = vpack.c.bf16 %v2797, %v2796
      %v2834 = vld [vmem:[%s6] sm:$0x1]
      %v2836 = vlaneseq
      %v2837 = vshrl.u32 %v2836, 7
      %v2838 = vsub.s32 0, %v2837
      %v2839 = vrot.slane %v2834, %v2838
      %v2842 = vsel %vm1824, %v2697, 0
      %v2845 = vsel %vm1824, %v2701, 0
      %v2848 = vsel %vm1824, %v2705, 0
      %v2851 = vsel %vm1824, %v2709, 0
      %v2854 = vsel %vm1824, %v2713, 0
      %v2857 = vsel %vm1824, %v2717, 0
      %v2860 = vsel %vm1824, %v2721, 0
      %v2863 = vsel %vm1824, %v2725, 0
      %2865 = vmatprep.subr.bf16.mxu0 0
      %2866 = vmatpush1.bf16.msra.mxu0 %v2805
      %2867 = vmatprep.subr.bf16.mxu0 0
      %2868 = vmatpush1.bf16.msra.mxu0 %v2804
      %2869 = vmatprep.subr.bf16.mxu0 0
      %2870 = vmatpush1.bf16.msra.mxu0 %v2803
      %2871 = vmatprep.subr.bf16.mxu0 0
      %2872 = vmatpush1.bf16.msra.mxu0 %v2802
      %2873 = vmatprep.subr.bf16.mxu0 0
      %2874 = vmatpush1.bf16.msra.mxu0 %v2801
      %2875 = vmatprep.subr.bf16.mxu0 0
      %2876 = vmatpush1.bf16.msra.mxu0 %v2800
      %2877 = vmatprep.subr.bf16.mxu0 0
      %2878 = vmatpush1.bf16.msra.mxu0 %v2799
      %2879 = vmatprep.subr.bf16.mxu0 0
      %2880 = vmatpush1.bf16.msra.mxu0 %v2798
      %2881 = vmatprep.subr.bf16.mxu0 0
      %2882 = vmatpush2.bf16.msra.mxu0 %v2813
      %2883 = vmatprep.subr.bf16.mxu0 0
      %2884 = vmatpush2.bf16.msra.mxu0 %v2812
      %2885 = vmatprep.subr.bf16.mxu0 0
      %2886 = vmatpush2.bf16.msra.mxu0 %v2811
      %2887 = vmatprep.subr.bf16.mxu0 0
      %2888 = vmatpush2.bf16.msra.mxu0 %v2810
      %2889 = vmatprep.subr.bf16.mxu0 0
      %2890 = vmatpush2.bf16.msra.mxu0 %v2809
      %2891 = vmatprep.subr.bf16.mxu0 0
      %2892 = vmatpush2.bf16.msra.mxu0 %v2808
      %2893 = vmatprep.subr.bf16.mxu0 0
      %2894 = vmatpush2.bf16.msra.mxu0 %v2807
      %2895 = vmatprep.subr.bf16.mxu0 0
      %2896 = vmatpush2.bf16.msra.mxu0 %v2806
      %2897 = vmatprep.mubr.bf16.mxu0 %v2694
      %2898 = vmatmul.mubr.bf16.gmra.mxu0 %v2693
      %v2899 = vpop.f32.mrf.mxu0
      %v2900 = vadd.f32 %v2839, %v2899
      %v2901 = vpop.f32.mrf.mxu0
      %v2902 = vpop.f32.mrf.mxu0
      %v2903 = vadd.f32 %v2839, %v2902
      %v2904 = vpop.f32.mrf.mxu0
      %2905 = vmatprep.mubr.bf16.mxu0 %v2698
      %2906 = vmatmul.mubr.bf16.gmra.mxu0 %v2696
      %v2907 = vpop.f32.mrf.mxu0
      %v2908 = vadd.f32 %v2839, %v2907
      %v2909 = vpop.f32.mrf.mxu0
      %v2910 = vpop.f32.mrf.mxu0
      %v2911 = vadd.f32 %v2839, %v2910
      %v2912 = vpop.f32.mrf.mxu0
      %2913 = vmatprep.mubr.bf16.mxu0 %v2702
      %2914 = vmatmul.mubr.bf16.gmra.mxu0 %v2700
      %v2915 = vpop.f32.mrf.mxu0
      %v2916 = vadd.f32 %v2839, %v2915
      %v2917 = vpop.f32.mrf.mxu0
      %v2918 = vpop.f32.mrf.mxu0
      %v2919 = vadd.f32 %v2839, %v2918
      %v2920 = vpop.f32.mrf.mxu0
      %2921 = vmatprep.mubr.bf16.mxu0 %v2706
      %2922 = vmatmul.mubr.bf16.gmra.mxu0 %v2704
      %v2923 = vpop.f32.mrf.mxu0
      %v2924 = vadd.f32 %v2839, %v2923
      %v2925 = vpop.f32.mrf.mxu0
      %v2926 = vpop.f32.mrf.mxu0
      %v2927 = vadd.f32 %v2839, %v2926
      %v2928 = vpop.f32.mrf.mxu0
      %2929 = vmatprep.mubr.bf16.mxu0 %v2710
      %2930 = vmatmul.mubr.bf16.gmra.mxu0 %v2708
      %v2931 = vpop.f32.mrf.mxu0
      %v2932 = vadd.f32 %v2839, %v2931
      %v2933 = vpop.f32.mrf.mxu0
      %v2934 = vpop.f32.mrf.mxu0
      %v2935 = vadd.f32 %v2839, %v2934
      %v2936 = vpop.f32.mrf.mxu0
      %2937 = vmatprep.mubr.bf16.mxu0 %v2714
      %2938 = vmatmul.mubr.bf16.gmra.mxu0 %v2712
      %v2939 = vpop.f32.mrf.mxu0
      %v2940 = vadd.f32 %v2839, %v2939
      %v2941 = vpop.f32.mrf.mxu0
      %v2942 = vpop.f32.mrf.mxu0
      %v2943 = vadd.f32 %v2839, %v2942
      %v2944 = vpop.f32.mrf.mxu0
      %2945 = vmatprep.mubr.bf16.mxu0 %v2718
      %2946 = vmatmul.mubr.bf16.gmra.mxu0 %v2716
      %v2947 = vpop.f32.mrf.mxu0
      %v2948 = vadd.f32 %v2839, %v2947
      %v2949 = vpop.f32.mrf.mxu0
      %v2950 = vpop.f32.mrf.mxu0
      %v2951 = vadd.f32 %v2839, %v2950
      %v2952 = vpop.f32.mrf.mxu0
      %2953 = vmatprep.mubr.bf16.mxu0 %v2722
      %2954 = vmatmul.mubr.bf16.gmra.mxu0 %v2720
      %v2955 = vpop.f32.mrf.mxu0
      %v2956 = vadd.f32 %v2839, %v2955
      %v2957 = vpop.f32.mrf.mxu0
      %v2958 = vpop.f32.mrf.mxu0
      %v2959 = vadd.f32 %v2839, %v2958
      %v2960 = vpop.f32.mrf.mxu0
      %2961 = vdwg.mxu0
      %2962 = vmatprep.subr.bf16.mxu0 0
      %2963 = vmatpush1.bf16.msra.mxu0 %v2821
      %2964 = vmatprep.subr.bf16.mxu0 0
      %2965 = vmatpush1.bf16.msra.mxu0 %v2820
      %2966 = vmatprep.subr.bf16.mxu0 0
      %2967 = vmatpush1.bf16.msra.mxu0 %v2819
      %2968 = vmatprep.subr.bf16.mxu0 0
      %2969 = vmatpush1.bf16.msra.mxu0 %v2818
      %2970 = vmatprep.subr.bf16.mxu0 0
      %2971 = vmatpush1.bf16.msra.mxu0 %v2817
      %2972 = vmatprep.subr.bf16.mxu0 0
      %2973 = vmatpush1.bf16.msra.mxu0 %v2816
      %2974 = vmatprep.subr.bf16.mxu0 0
      %2975 = vmatpush1.bf16.msra.mxu0 %v2815
      %2976 = vmatprep.subr.bf16.mxu0 0
      %2977 = vmatpush1.bf16.msra.mxu0 %v2814
      %2978 = vmatprep.subr.bf16.mxu0 0
      %2979 = vmatpush2.bf16.msra.mxu0 %v2829
      %2980 = vmatprep.subr.bf16.mxu0 0
      %2981 = vmatpush2.bf16.msra.mxu0 %v2828
      %2982 = vmatprep.subr.bf16.mxu0 0
      %2983 = vmatpush2.bf16.msra.mxu0 %v2827
      %2984 = vmatprep.subr.bf16.mxu0 0
      %2985 = vmatpush2.bf16.msra.mxu0 %v2826
      %2986 = vmatprep.subr.bf16.mxu0 0
      %2987 = vmatpush2.bf16.msra.mxu0 %v2825
      %2988 = vmatprep.subr.bf16.mxu0 0
      %2989 = vmatpush2.bf16.msra.mxu0 %v2824
      %2990 = vmatprep.subr.bf16.mxu0 0
      %2991 = vmatpush2.bf16.msra.mxu0 %v2823
      %2992 = vmatprep.subr.bf16.mxu0 0
      %2993 = vmatpush2.bf16.msra.mxu0 %v2822
      %2994 = vmatprep.mubr.bf16.mxu0 %v2696
      %2995 = vmatmul.mubr.bf16.gmra.mxu0 %v2695
      %v2996 = vpop.f32.mrf.mxu0
      %v2997 = vadd.f32 %v2900, %v2996
      %v2998 = vpop.f32.mrf.mxu0
      %v2999 = vpop.f32.mrf.mxu0
      %v3000 = vadd.f32 %v2903, %v2999
      %v3001 = vpop.f32.mrf.mxu0
      %3002 = vmatprep.mubr.bf16.mxu0 %v2700
      %3003 = vmatmul.mubr.bf16.gmra.mxu0 %v2699
      %v3004 = vpop.f32.mrf.mxu0
      %v3005 = vadd.f32 %v2908, %v3004
      %v3006 = vpop.f32.mrf.mxu0
      %v3007 = vpop.f32.mrf.mxu0
      %v3008 = vadd.f32 %v2911, %v3007
      %v3009 = vpop.f32.mrf.mxu0
      %3010 = vmatprep.mubr.bf16.mxu0 %v2704
      %3011 = vmatmul.mubr.bf16.gmra.mxu0 %v2703
      %v3012 = vpop.f32.mrf.mxu0
      %v3013 = vadd.f32 %v2916, %v3012
      %v3014 = vpop.f32.mrf.mxu0
      %v3015 = vpop.f32.mrf.mxu0
      %v3016 = vadd.f32 %v2919, %v3015
      %v3017 = vpop.f32.mrf.mxu0
      %3018 = vmatprep.mubr.bf16.mxu0 %v2708
      %3019 = vmatmul.mubr.bf16.gmra.mxu0 %v2707
      %v3020 = vpop.f32.mrf.mxu0
      %v3021 = vadd.f32 %v2924, %v3020
      %v3022 = vpop.f32.mrf.mxu0
      %v3023 = vpop.f32.mrf.mxu0
      %v3024 = vadd.f32 %v2927, %v3023
      %v3025 = vpop.f32.mrf.mxu0
      %3026 = vmatprep.mubr.bf16.mxu0 %v2712
      %3027 = vmatmul.mubr.bf16.gmra.mxu0 %v2711
      %v3028 = vpop.f32.mrf.mxu0
      %v3029 = vadd.f32 %v2932, %v3028
      %v3030 = vpop.f32.mrf.mxu0
      %v3031 = vpop.f32.mrf.mxu0
      %v3032 = vadd.f32 %v2935, %v3031
      %v3033 = vpop.f32.mrf.mxu0
      %3034 = vmatprep.mubr.bf16.mxu0 %v2716
      %3035 = vmatmul.mubr.bf16.gmra.mxu0 %v2715
      %v3036 = vpop.f32.mrf.mxu0
      %v3037 = vadd.f32 %v2940, %v3036
      %v3038 = vpop.f32.mrf.mxu0
      %v3039 = vpop.f32.mrf.mxu0
      %v3040 = vadd.f32 %v2943, %v3039
      %v3041 = vpop.f32.mrf.mxu0
      %3042 = vmatprep.mubr.bf16.mxu0 %v2720
      %3043 = vmatmul.mubr.bf16.gmra.mxu0 %v2719
      %v3044 = vpop.f32.mrf.mxu0
      %v3045 = vadd.f32 %v2948, %v3044
      %v3046 = vpop.f32.mrf.mxu0
      %v3047 = vpop.f32.mrf.mxu0
      %v3048 = vadd.f32 %v2951, %v3047
      %v3049 = vpop.f32.mrf.mxu0
      %3050 = vmatprep.mubr.bf16.mxu0 %v2724
      %3051 = vmatmul.mubr.bf16.gmra.mxu0 %v2723
      %v3052 = vpop.f32.mrf.mxu0
      %v3053 = vadd.f32 %v2956, %v3052
      %v3054 = vpop.f32.mrf.mxu0
      %v3055 = vpop.f32.mrf.mxu0
      %v3056 = vadd.f32 %v2959, %v3055
      %v3057 = vpop.f32.mrf.mxu0
      %3058 = vdwg.mxu0
      %3059 = vmatprep.subr.bf16.mxu0 0
      %3060 = vmatpush1.bf16.msra.mxu0 0
      %3061 = vmatprep.subr.bf16.mxu0 0
      %3062 = vmatpush1.bf16.msra.mxu0 0
      %3063 = vmatprep.subr.bf16.mxu0 0
      %3064 = vmatpush1.bf16.msra.mxu0 0
      %3065 = vmatprep.subr.bf16.mxu0 0
      %3066 = vmatpush1.bf16.msra.mxu0 0
      %3067 = vmatprep.subr.bf16.mxu0 0
      %3068 = vmatpush1.bf16.msra.mxu0 %v2833
      %3069 = vmatprep.subr.bf16.mxu0 0
      %3070 = vmatpush1.bf16.msra.mxu0 %v2832
      %3071 = vmatprep.subr.bf16.mxu0 0
      %3072 = vmatpush1.bf16.msra.mxu0 %v2831
      %3073 = vmatprep.subr.bf16.mxu0 0
      %3074 = vmatpush1.bf16.msra.mxu0 %v2830
      %3075 = vmatprep.subr.bf16.mxu0 0
      %3076 = vmatpush2.bf16.msra.mxu0 0
      %3077 = vmatprep.subr.bf16.mxu0 0
      %3078 = vmatpush2.bf16.msra.mxu0 0
      %3079 = vmatprep.subr.bf16.mxu0 0
      %3080 = vmatpush2.bf16.msra.mxu0 0
      %3081 = vmatprep.subr.bf16.mxu0 0
      %3082 = vmatpush2.bf16.msra.mxu0 0
      %3083 = vmatprep.subr.bf16.mxu0 0
      %3084 = vmatpush2.bf16.msra.mxu0 0
      %3085 = vmatprep.subr.bf16.mxu0 0
      %3086 = vmatpush2.bf16.msra.mxu0 0
      %3087 = vmatprep.subr.bf16.mxu0 0
      %3088 = vmatpush2.bf16.msra.mxu0 0
      %3089 = vmatprep.subr.bf16.mxu0 0
      %3090 = vmatpush2.bf16.msra.mxu0 0
      %3091 = vmatprep.mubr.bf16.mxu0 0
      %3092 = vmatmul.mubr.bf16.gmra.mxu0 %v2842
      %v3093 = vpop.f32.mrf.mxu0
      %v3094 = vadd.f32 %v2997, %v3093
      %v3095 = vpop.f32.mrf.mxu0
      %v3096 = vpop.f32.mrf.mxu0
      %v3097 = vadd.f32 %v3000, %v3096
      %v3098 = vpop.f32.mrf.mxu0
      %3099 = vmatprep.mubr.bf16.mxu0 0
      %3100 = vmatmul.mubr.bf16.gmra.mxu0 %v2845
      %v3101 = vpop.f32.mrf.mxu0
      %v3102 = vadd.f32 %v3005, %v3101
      %v3103 = vpop.f32.mrf.mxu0
      %v3104 = vpop.f32.mrf.mxu0
      %v3105 = vadd.f32 %v3008, %v3104
      %v3106 = vpop.f32.mrf.mxu0
      %3107 = vmatprep.mubr.bf16.mxu0 0
      %3108 = vmatmul.mubr.bf16.gmra.mxu0 %v2848
      %v3109 = vpop.f32.mrf.mxu0
      %v3110 = vadd.f32 %v3013, %v3109
      %v3111 = vpop.f32.mrf.mxu0
      %v3112 = vpop.f32.mrf.mxu0
      %v3113 = vadd.f32 %v3016, %v3112
      %v3114 = vpop.f32.mrf.mxu0
      %3115 = vmatprep.mubr.bf16.mxu0 0
      %3116 = vmatmul.mubr.bf16.gmra.mxu0 %v2851
      %v3117 = vpop.f32.mrf.mxu0
      %v3118 = vadd.f32 %v3021, %v3117
      %v3119 = vpop.f32.mrf.mxu0
      %v3120 = vpop.f32.mrf.mxu0
      %v3121 = vadd.f32 %v3024, %v3120
      %v3122 = vpop.f32.mrf.mxu0
      %3123 = vmatprep.mubr.bf16.mxu0 0
      %3124 = vmatmul.mubr.bf16.gmra.mxu0 %v2854
      %v3125 = vpop.f32.mrf.mxu0
      %v3126 = vadd.f32 %v3029, %v3125
      %v3127 = vpop.f32.mrf.mxu0
      %v3128 = vpop.f32.mrf.mxu0
      %v3129 = vadd.f32 %v3032, %v3128
      %v3130 = vpop.f32.mrf.mxu0
      %3131 = vmatprep.mubr.bf16.mxu0 0
      %3132 = vmatmul.mubr.bf16.gmra.mxu0 %v2857
      %v3133 = vpop.f32.mrf.mxu0
      %v3134 = vadd.f32 %v3037, %v3133
      %v3135 = vpop.f32.mrf.mxu0
      %v3136 = vpop.f32.mrf.mxu0
      %v3137 = vadd.f32 %v3040, %v3136
      %v3138 = vpop.f32.mrf.mxu0
      %3139 = vmatprep.mubr.bf16.mxu0 0
      %3140 = vmatmul.mubr.bf16.gmra.mxu0 %v2860
      %v3141 = vpop.f32.mrf.mxu0
      %v3142 = vadd.f32 %v3045, %v3141
      %v3143 = vpop.f32.mrf.mxu0
      %v3144 = vpop.f32.mrf.mxu0
      %v3145 = vadd.f32 %v3048, %v3144
      %v3146 = vpop.f32.mrf.mxu0
      %3147 = vmatprep.mubr.bf16.mxu0 0
      %3148 = vmatmul.mubr.bf16.gmra.mxu0 %v2863
      %v3149 = vpop.f32.mrf.mxu0
      %v3150 = vadd.f32 %v3053, %v3149
      %v3151 = vpop.f32.mrf.mxu0
      %v3152 = vpop.f32.mrf.mxu0
      %v3153 = vadd.f32 %v3056, %v3152
      %v3154 = vpop.f32.mrf.mxu0
      %3155 = vdwg.mxu0
      %v3156 = vmax.f32 %v3094, 0.0
      %v3157 = vmax.f32 %v3097, 0.0
      %v3158 = vmax.f32 %v3102, 0.0
      %v3159 = vmax.f32 %v3105, 0.0
      %v3160 = vmax.f32 %v3110, 0.0
      %v3161 = vmax.f32 %v3113, 0.0
      %v3162 = vmax.f32 %v3118, 0.0
      %v3163 = vmax.f32 %v3121, 0.0
      %v3164 = vmax.f32 %v3126, 0.0
      %v3165 = vmax.f32 %v3129, 0.0
      %v3166 = vmax.f32 %v3134, 0.0
      %v3167 = vmax.f32 %v3137, 0.0
      %v3168 = vmax.f32 %v3142, 0.0
      %v3169 = vmax.f32 %v3145, 0.0
      %v3170 = vmax.f32 %v3150, 0.0
      %v3171 = vmax.f32 %v3153, 0.0
      %v3172 = vpack.c.bf16 %v3157, %v3156
      %v3173 = vpack.c.bf16 %v3159, %v3158
      %v3174 = vpack.c.bf16 %v3161, %v3160
      %v3175 = vpack.c.bf16 %v3163, %v3162
      %v3176 = vpack.c.bf16 %v3165, %v3164
      %v3177 = vpack.c.bf16 %v3167, %v3166
      %v3178 = vpack.c.bf16 %v3169, %v3168
      %v3179 = vpack.c.bf16 %v3171, %v3170
      %v3180 = vld [vmem:[%s7] sm:$0xff]
      %v3181 = vld [vmem:[%s7 + $0x8] sm:$0xff]
      %v3182 = vld [vmem:[%s7 + $0x10] sm:$0xff]
      %v3183 = vld [vmem:[%s7 + $0x18] sm:$0xff]
      %v3184 = vld [vmem:[%s7 + $0x20] sm:$0xff]
      %v3185 = vld [vmem:[%s7 + $0x28] sm:$0xff]
      %v3186 = vld [vmem:[%s7 + $0x30] sm:$0xff]
      %v3187 = vld [vmem:[%s7 + $0x38] sm:$0xff]
      %v3188 = vpack.c.bf16 %v3181, %v3180
      %v3189 = vpack.c.bf16 %v3183, %v3182
      %v3190 = vpack.c.bf16 %v3185, %v3184
      %v3191 = vpack.c.bf16 %v3187, %v3186
      %v3192 = vld [vmem:[%s8] sm:$0xff]
      %v3193 = vld [vmem:[%s8 + $0x8] sm:$0xff]
      %v3194 = vld [vmem:[%s8 + $0x10] sm:$0xff]
      %v3195 = vld [vmem:[%s8 + $0x18] sm:$0xff]
      %v3196 = vld [vmem:[%s8 + $0x20] sm:$0xff]
      %v3197 = vld [vmem:[%s8 + $0x28] sm:$0xff]
      %v3198 = vld [vmem:[%s8 + $0x30] sm:$0xff]
      %v3199 = vld [vmem:[%s8 + $0x38] sm:$0xff]
      %3201 = vset.pattern.permute.xlu0 0
      %3202 = vperm.xlu0 %3201, %v3192
      %v3203 = vpop.permute.xlu0 %3202
      %3206 = vset.pattern.permute.xlu0 0
      %3207 = vperm.xlu0 %3206, %v3193
      %v3208 = vpop.permute.xlu0 %3207
      %3211 = vset.pattern.permute.xlu0 0
      %3212 = vperm.xlu0 %3211, %v3194
      %v3213 = vpop.permute.xlu0 %3212
      %3216 = vset.pattern.permute.xlu0 0
      %3217 = vperm.xlu0 %3216, %v3195
      %v3218 = vpop.permute.xlu0 %3217
      %3221 = vset.pattern.permute.xlu0 0
      %3222 = vperm.xlu0 %3221, %v3196
      %v3223 = vpop.permute.xlu0 %3222
      %3226 = vset.pattern.permute.xlu0 0
      %3227 = vperm.xlu0 %3226, %v3197
      %v3228 = vpop.permute.xlu0 %3227
      %3231 = vset.pattern.permute.xlu0 0
      %3232 = vperm.xlu0 %3231, %v3198
      %v3233 = vpop.permute.xlu0 %3232
      %3236 = vset.pattern.permute.xlu0 0
      %3237 = vperm.xlu0 %3236, %v3199
      %v3238 = vpop.permute.xlu0 %3237
      %3240 = vmatprep.subr.bf16.mxu0 0
      %3241 = vmatpush1.bf16.msra.mxu0 %v3179
      %3242 = vmatprep.subr.bf16.mxu0 0
      %3243 = vmatpush1.bf16.msra.mxu0 %v3178
      %3244 = vmatprep.subr.bf16.mxu0 0
      %3245 = vmatpush1.bf16.msra.mxu0 %v3177
      %3246 = vmatprep.subr.bf16.mxu0 0
      %3247 = vmatpush1.bf16.msra.mxu0 %v3176
      %3248 = vmatprep.subr.bf16.mxu0 0
      %3249 = vmatpush1.bf16.msra.mxu0 %v3175
      %3250 = vmatprep.subr.bf16.mxu0 0
      %3251 = vmatpush1.bf16.msra.mxu0 %v3174
      %3252 = vmatprep.subr.bf16.mxu0 0
      %3253 = vmatpush1.bf16.msra.mxu0 %v3173
      %3254 = vmatprep.subr.bf16.mxu0 0
      %3255 = vmatpush1.bf16.msra.mxu0 %v3172
      %3256 = vmatprep.subr.bf16.mxu0 0
      %3257 = vmatpush2.bf16.msra.mxu0 0
      %3258 = vmatprep.subr.bf16.mxu0 0
      %3259 = vmatpush2.bf16.msra.mxu0 0
      %3260 = vmatprep.subr.bf16.mxu0 0
      %3261 = vmatpush2.bf16.msra.mxu0 0
      %3262 = vmatprep.subr.bf16.mxu0 0
      %3263 = vmatpush2.bf16.msra.mxu0 0
      %3264 = vmatprep.subr.bf16.mxu0 0
      %3265 = vmatpush2.bf16.msra.mxu0 0
      %3266 = vmatprep.subr.bf16.mxu0 0
      %3267 = vmatpush2.bf16.msra.mxu0 0
      %3268 = vmatprep.subr.bf16.mxu0 0
      %3269 = vmatpush2.bf16.msra.mxu0 0
      %3270 = vmatprep.subr.bf16.mxu0 0
      %3271 = vmatpush2.bf16.msra.mxu0 0
      %3272 = vmatprep.mubr.bf16.mxu0 0
      %3273 = vmatmul.mubr.bf16.gmra.mxu0 %v3188
      %v3274 = vpop.f32.mrf.mxu0
      %v3275 = vadd.f32 %v3203, %v3274
      %v3276 = vpop.f32.mrf.mxu0
      %v3277 = vpop.f32.mrf.mxu0
      %v3278 = vadd.f32 %v3208, %v3277
      %v3279 = vpop.f32.mrf.mxu0
      %3280 = vmatprep.mubr.bf16.mxu0 0
      %3281 = vmatmul.mubr.bf16.gmra.mxu0 %v3189
      %v3282 = vpop.f32.mrf.mxu0
      %v3283 = vadd.f32 %v3213, %v3282
      %v3284 = vpop.f32.mrf.mxu0
      %v3285 = vpop.f32.mrf.mxu0
      %v3286 = vadd.f32 %v3218, %v3285
      %v3287 = vpop.f32.mrf.mxu0
      %3288 = vmatprep.mubr.bf16.mxu0 0
      %3289 = vmatmul.mubr.bf16.gmra.mxu0 %v3190
      %v3290 = vpop.f32.mrf.mxu0
      %v3291 = vadd.f32 %v3223, %v3290
      %v3292 = vpop.f32.mrf.mxu0
      %v3293 = vpop.f32.mrf.mxu0
      %v3294 = vadd.f32 %v3228, %v3293
      %v3295 = vpop.f32.mrf.mxu0
      %3296 = vmatprep.mubr.bf16.mxu0 0
      %3297 = vmatmul.mubr.bf16.gmra.mxu0 %v3191
      %v3298 = vpop.f32.mrf.mxu0
      %v3299 = vadd.f32 %v3233, %v3298
      %v3300 = vpop.f32.mrf.mxu0
      %v3301 = vpop.f32.mrf.mxu0
      %v3302 = vadd.f32 %v3238, %v3301
      %v3303 = vpop.f32.mrf.mxu0
      %3304 = vdwg.mxu0
      %v3305 = vmax.f32 %v3275, 0.0
      %v3306 = vmax.f32 %v3278, 0.0
      %v3307 = vmax.f32 %v3283, 0.0
      %v3308 = vmax.f32 %v3286, 0.0
      %v3309 = vmax.f32 %v3291, 0.0
      %v3310 = vmax.f32 %v3294, 0.0
      %v3311 = vmax.f32 %v3299, 0.0
      %v3312 = vmax.f32 %v3302, 0.0
      %v3313 = vld [vmem:[%s9] sm:$0xff]
      %v3314 = vld [vmem:[%s9 + $0x8] sm:$0xff]
      %v3315 = vld [vmem:[%s9 + $0x10] sm:$0xff]
      %v3316 = vld [vmem:[%s9 + $0x18] sm:$0xff]
      %v3317 = vld [vmem:[%s9 + $0x20] sm:$0xff]
      %v3318 = vld [vmem:[%s9 + $0x28] sm:$0xff]
      %v3319 = vld [vmem:[%s9 + $0x30] sm:$0xff]
      %v3320 = vld [vmem:[%s9 + $0x38] sm:$0xff]
      %v3321 = vld [vmem:[%s9 + $0x40] sm:$0xff]
      %v3322 = vld [vmem:[%s9 + $0x48] sm:$0xff]
      %v3323 = vld [vmem:[%s9 + $0x50] sm:$0xff]
      %v3324 = vld [vmem:[%s9 + $0x58] sm:$0xff]
      %v3325 = vld [vmem:[%s9 + $0x60] sm:$0xff]
      %v3326 = vld [vmem:[%s9 + $0x68] sm:$0xff]
      %v3327 = vld [vmem:[%s9 + $0x70] sm:$0xff]
      %v3328 = vld [vmem:[%s9 + $0x78] sm:$0xff]
      %v3329 = vpack.c.bf16 %v3314, %v3313
      %v3330 = vpack.c.bf16 %v3316, %v3315
      %v3331 = vpack.c.bf16 %v3318, %v3317
      %v3332 = vpack.c.bf16 %v3320, %v3319
      %v3333 = vpack.c.bf16 %v3322, %v3321
      %v3334 = vpack.c.bf16 %v3324, %v3323
      %v3335 = vpack.c.bf16 %v3326, %v3325
      %v3336 = vpack.c.bf16 %v3328, %v3327
      %v3337 = vpack.c.bf16 %v3306, %v3305
      %v3338 = vpack.c.bf16 %v3308, %v3307
      %v3339 = vpack.c.bf16 %v3310, %v3309
      %v3340 = vpack.c.bf16 %v3312, %v3311
      %v3341 = vld [vmem:[%s10] sm:$0xff]
      %v3342 = vld [vmem:[%s10 + $0x8] sm:$0xff]
      %v3343 = vld [vmem:[%s10 + $0x10] sm:$0xff]
      %v3344 = vld [vmem:[%s10 + $0x18] sm:$0xff]
      %v3345 = vld [vmem:[%s10 + $0x20] sm:$0xff]
      %v3346 = vld [vmem:[%s10 + $0x28] sm:$0xff]
      %v3347 = vld [vmem:[%s10 + $0x30] sm:$0xff]
      %v3348 = vld [vmem:[%s10 + $0x38] sm:$0xff]
      %v3349 = vld [vmem:[%s10 + $0x40] sm:$0xff]
      %v3350 = vld [vmem:[%s10 + $0x48] sm:$0xff]
      %v3351 = vld [vmem:[%s10 + $0x50] sm:$0xff]
      %v3352 = vld [vmem:[%s10 + $0x58] sm:$0xff]
      %v3353 = vld [vmem:[%s10 + $0x60] sm:$0xff]
      %v3354 = vld [vmem:[%s10 + $0x68] sm:$0xff]
      %v3355 = vld [vmem:[%s10 + $0x70] sm:$0xff]
      %v3356 = vld [vmem:[%s10 + $0x78] sm:$0xff]
      %3358 = vset.pattern.permute.xlu0 0
      %3359 = vperm.xlu0 %3358, %v3341
      %v3360 = vpop.permute.xlu0 %3359
      %3363 = vset.pattern.permute.xlu0 0
      %3364 = vperm.xlu0 %3363, %v3342
      %v3365 = vpop.permute.xlu0 %3364
      %3368 = vset.pattern.permute.xlu0 0
      %3369 = vperm.xlu0 %3368, %v3343
      %v3370 = vpop.permute.xlu0 %3369
      %3373 = vset.pattern.permute.xlu0 0
      %3374 = vperm.xlu0 %3373, %v3344
      %v3375 = vpop.permute.xlu0 %3374
      %3378 = vset.pattern.permute.xlu0 0
      %3379 = vperm.xlu0 %3378, %v3345
      %v3380 = vpop.permute.xlu0 %3379
      %3383 = vset.pattern.permute.xlu0 0
      %3384 = vperm.xlu0 %3383, %v3346
      %v3385 = vpop.permute.xlu0 %3384
      %3388 = vset.pattern.permute.xlu0 0
      %3389 = vperm.xlu0 %3388, %v3347
      %v3390 = vpop.permute.xlu0 %3389
      %3393 = vset.pattern.permute.xlu0 0
      %3394 = vperm.xlu0 %3393, %v3348
      %v3395 = vpop.permute.xlu0 %3394
      %3398 = vset.pattern.permute.xlu0 0
      %3399 = vperm.xlu0 %3398, %v3349
      %v3400 = vpop.permute.xlu0 %3399
      %3403 = vset.pattern.permute.xlu0 0
      %3404 = vperm.xlu0 %3403, %v3350
      %v3405 = vpop.permute.xlu0 %3404
      %3408 = vset.pattern.permute.xlu0 0
      %3409 = vperm.xlu0 %3408, %v3351
      %v3410 = vpop.permute.xlu0 %3409
      %3413 = vset.pattern.permute.xlu0 0
      %3414 = vperm.xlu0 %3413, %v3352
      %v3415 = vpop.permute.xlu0 %3414
      %3418 = vset.pattern.permute.xlu0 0
      %3419 = vperm.xlu0 %3418, %v3353
      %v3420 = vpop.permute.xlu0 %3419
      %3423 = vset.pattern.permute.xlu0 0
      %3424 = vperm.xlu0 %3423, %v3354
      %v3425 = vpop.permute.xlu0 %3424
      %3428 = vset.pattern.permute.xlu0 0
      %3429 = vperm.xlu0 %3428, %v3355
      %v3430 = vpop.permute.xlu0 %3429
      %3433 = vset.pattern.permute.xlu0 0
      %3434 = vperm.xlu0 %3433, %v3356
      %v3435 = vpop.permute.xlu0 %3434
      %v3438 = vsel %vm1824, %v3329, 0
      %v3441 = vsel %vm1824, %v3330, 0
      %v3444 = vsel %vm1824, %v3331, 0
      %v3447 = vsel %vm1824, %v3332, 0
      %v3450 = vsel %vm1824, %v3333, 0
      %v3453 = vsel %vm1824, %v3334, 0
      %v3456 = vsel %vm1824, %v3335, 0
      %v3459 = vsel %vm1824, %v3336, 0
      %3461 = vmatprep.subr.bf16.mxu0 0
      %3462 = vmatpush1.bf16.msra.mxu0 0
      %3463 = vmatprep.subr.bf16.mxu0 0
      %3464 = vmatpush1.bf16.msra.mxu0 0
      %3465 = vmatprep.subr.bf16.mxu0 0
      %3466 = vmatpush1.bf16.msra.mxu0 0
      %3467 = vmatprep.subr.bf16.mxu0 0
      %3468 = vmatpush1.bf16.msra.mxu0 0
      %3469 = vmatprep.subr.bf16.mxu0 0
      %3470 = vmatpush1.bf16.msra.mxu0 %v3340
      %3471 = vmatprep.subr.bf16.mxu0 0
      %3472 = vmatpush1.bf16.msra.mxu0 %v3339
      %3473 = vmatprep.subr.bf16.mxu0 0
      %3474 = vmatpush1.bf16.msra.mxu0 %v3338
      %3475 = vmatprep.subr.bf16.mxu0 0
      %3476 = vmatpush1.bf16.msra.mxu0 %v3337
      %3477 = vmatprep.subr.bf16.mxu0 0
      %3478 = vmatpush2.bf16.msra.mxu0 0
      %3479 = vmatprep.subr.bf16.mxu0 0
      %3480 = vmatpush2.bf16.msra.mxu0 0
      %3481 = vmatprep.subr.bf16.mxu0 0
      %3482 = vmatpush2.bf16.msra.mxu0 0
      %3483 = vmatprep.subr.bf16.mxu0 0
      %3484 = vmatpush2.bf16.msra.mxu0 0
      %3485 = vmatprep.subr.bf16.mxu0 0
      %3486 = vmatpush2.bf16.msra.mxu0 0
      %3487 = vmatprep.subr.bf16.mxu0 0
      %3488 = vmatpush2.bf16.msra.mxu0 0
      %3489 = vmatprep.subr.bf16.mxu0 0
      %3490 = vmatpush2.bf16.msra.mxu0 0
      %3491 = vmatprep.subr.bf16.mxu0 0
      %3492 = vmatpush2.bf16.msra.mxu0 0
      %3493 = vmatprep.mubr.bf16.mxu0 0
      %3494 = vmatmul.mubr.bf16.gmra.mxu0 %v3438
      %v3495 = vpop.f32.mrf.mxu0
      %v3496 = vadd.f32 %v3360, %v3495
      %v3497 = vpop.f32.mrf.mxu0
      %v3498 = vpop.f32.mrf.mxu0
      %v3499 = vadd.f32 %v3365, %v3498
      %v3500 = vpop.f32.mrf.mxu0
      %3501 = vmatprep.mubr.bf16.mxu0 0
      %3502 = vmatmul.mubr.bf16.gmra.mxu0 %v3441
      %v3503 = vpop.f32.mrf.mxu0
      %v3504 = vadd.f32 %v3370, %v3503
      %v3505 = vpop.f32.mrf.mxu0
      %v3506 = vpop.f32.mrf.mxu0
      %v3507 = vadd.f32 %v3375, %v3506
      %v3508 = vpop.f32.mrf.mxu0
      %3509 = vmatprep.mubr.bf16.mxu0 0
      %3510 = vmatmul.mubr.bf16.gmra.mxu0 %v3444
      %v3511 = vpop.f32.mrf.mxu0
      %v3512 = vadd.f32 %v3380, %v3511
      %v3513 = vpop.f32.mrf.mxu0
      %v3514 = vpop.f32.mrf.mxu0
      %v3515 = vadd.f32 %v3385, %v3514
      %v3516 = vpop.f32.mrf.mxu0
      %3517 = vmatprep.mubr.bf16.mxu0 0
      %3518 = vmatmul.mubr.bf16.gmra.mxu0 %v3447
      %v3519 = vpop.f32.mrf.mxu0
      %v3520 = vadd.f32 %v3390, %v3519
      %v3521 = vpop.f32.mrf.mxu0
      %v3522 = vpop.f32.mrf.mxu0
      %v3523 = vadd.f32 %v3395, %v3522
      %v3524 = vpop.f32.mrf.mxu0
      %3525 = vmatprep.mubr.bf16.mxu0 0
      %3526 = vmatmul.mubr.bf16.gmra.mxu0 %v3450
      %v3527 = vpop.f32.mrf.mxu0
      %v3528 = vadd.f32 %v3400, %v3527
      %v3529 = vpop.f32.mrf.mxu0
      %v3530 = vpop.f32.mrf.mxu0
      %v3531 = vadd.f32 %v3405, %v3530
      %v3532 = vpop.f32.mrf.mxu0
      %3533 = vmatprep.mubr.bf16.mxu0 0
      %3534 = vmatmul.mubr.bf16.gmra.mxu0 %v3453
      %v3535 = vpop.f32.mrf.mxu0
      %v3536 = vadd.f32 %v3410, %v3535
      %v3537 = vpop.f32.mrf.mxu0
      %v3538 = vpop.f32.mrf.mxu0
      %v3539 = vadd.f32 %v3415, %v3538
      %v3540 = vpop.f32.mrf.mxu0
      %3541 = vmatprep.mubr.bf16.mxu0 0
      %3542 = vmatmul.mubr.bf16.gmra.mxu0 %v3456
      %v3543 = vpop.f32.mrf.mxu0
      %v3544 = vadd.f32 %v3420, %v3543
      %v3545 = vpop.f32.mrf.mxu0
      %v3546 = vpop.f32.mrf.mxu0
      %v3547 = vadd.f32 %v3425, %v3546
      %v3548 = vpop.f32.mrf.mxu0
      %3549 = vmatprep.mubr.bf16.mxu0 0
      %3550 = vmatmul.mubr.bf16.gmra.mxu0 %v3459
      %v3551 = vpop.f32.mrf.mxu0
      %v3552 = vadd.f32 %v3430, %v3551
      %v3553 = vpop.f32.mrf.mxu0
      %v3554 = vpop.f32.mrf.mxu0
      %v3555 = vadd.f32 %v3435, %v3554
      %v3556 = vpop.f32.mrf.mxu0
      %3557 = vdwg.mxu0
      %3558 = vmax.xlane.f32.xlu0 %v3496
      %v3559 = vpop.xlane.xlu0 %3558
      %3560 = vmax.xlane.f32.xlu0 %v3499
      %v3561 = vpop.xlane.xlu0 %3560
      %3562 = vmax.xlane.f32.xlu0 %v3504
      %v3563 = vpop.xlane.xlu0 %3562
      %3564 = vmax.xlane.f32.xlu0 %v3507
      %v3565 = vpop.xlane.xlu0 %3564
      %3566 = vmax.xlane.f32.xlu0 %v3512
      %v3567 = vpop.xlane.xlu0 %3566
      %3568 = vmax.xlane.f32.xlu0 %v3515
      %v3569 = vpop.xlane.xlu0 %3568
      %3570 = vmax.xlane.f32.xlu0 %v3520
      %v3571 = vpop.xlane.xlu0 %3570
      %3572 = vmax.xlane.f32.xlu0 %v3523
      %v3573 = vpop.xlane.xlu0 %3572
      %3574 = vmax.xlane.f32.xlu0 %v3528
      %v3575 = vpop.xlane.xlu0 %3574
      %3576 = vmax.xlane.f32.xlu0 %v3531
      %v3577 = vpop.xlane.xlu0 %3576
      %3578 = vmax.xlane.f32.xlu0 %v3536
      %v3579 = vpop.xlane.xlu0 %3578
      %3580 = vmax.xlane.f32.xlu0 %v3539
      %v3581 = vpop.xlane.xlu0 %3580
      %3582 = vmax.xlane.f32.xlu0 %v3544
      %v3583 = vpop.xlane.xlu0 %3582
      %3584 = vmax.xlane.f32.xlu0 %v3547
      %v3585 = vpop.xlane.xlu0 %3584
      %3586 = vmax.xlane.f32.xlu0 %v3552
      %v3587 = vpop.xlane.xlu0 %3586
      %3588 = vmax.xlane.f32.xlu0 %v3555
      %v3589 = vpop.xlane.xlu0 %3588
      %v3590 = vsub.f32 %v3496, %v3559
      %v3591 = vsub.f32 %v3499, %v3561
      %v3592 = vsub.f32 %v3504, %v3563
      %v3593 = vsub.f32 %v3507, %v3565
      %v3594 = vsub.f32 %v3512, %v3567
      %v3595 = vsub.f32 %v3515, %v3569
      %v3596 = vsub.f32 %v3520, %v3571
      %v3597 = vsub.f32 %v3523, %v3573
      %v3598 = vsub.f32 %v3528, %v3575
      %v3599 = vsub.f32 %v3531, %v3577
      %v3600 = vsub.f32 %v3536, %v3579
      %v3601 = vsub.f32 %v3539, %v3581
      %v3602 = vsub.f32 %v3544, %v3583
      %v3603 = vsub.f32 %v3547, %v3585
      %v3604 = vsub.f32 %v3552, %v3587
      %v3605 = vsub.f32 %v3555, %v3589
      %v3606 = vmul.f32 %v3590, 1.442695
      %v3607 = vpow.pop %v3606
      %v3608 = vmul.f32 %v3591, 1.442695
      %v3609 = vpow.pop %v3608
      %v3610 = vmul.f32 %v3592, 1.442695
      %v3611 = vpow.pop %v3610
      %v3612 = vmul.f32 %v3593, 1.442695
      %v3613 = vpow.pop %v3612
      %v3614 = vmul.f32 %v3594, 1.442695
      %v3615 = vpow.pop %v3614
      %v3616 = vmul.f32 %v3595, 1.442695
      %v3617 = vpow.pop %v3616
      %v3618 = vmul.f32 %v3596, 1.442695
      %v3619 = vpow.pop %v3618
      %v3620 = vmul.f32 %v3597, 1.442695
      %v3621 = vpow.pop %v3620
      %v3622 = vmul.f32 %v3598, 1.442695
      %v3623 = vpow.pop %v3622
      %v3624 = vmul.f32 %v3599, 1.442695
      %v3625 = vpow.pop %v3624
      %v3626 = vmul.f32 %v3600, 1.442695
      %v3627 = vpow.pop %v3626
      %v3628 = vmul.f32 %v3601, 1.442695
      %v3629 = vpow.pop %v3628
      %v3630 = vmul.f32 %v3602, 1.442695
      %v3631 = vpow.pop %v3630
      %v3632 = vmul.f32 %v3603, 1.442695
      %v3633 = vpow.pop %v3632
      %v3634 = vmul.f32 %v3604, 1.442695
      %v3635 = vpow.pop %v3634
      %v3636 = vmul.f32 %v3605, 1.442695
      %v3637 = vpow.pop %v3636
      %3638 = vadd.xlane.f32.xlu0 %v3607
      %v3639 = vpop.xlane.xlu0 %3638
      %3640 = vadd.xlane.f32.xlu0 %v3609
      %v3641 = vpop.xlane.xlu0 %3640
      %3642 = vadd.xlane.f32.xlu0 %v3611
      %v3643 = vpop.xlane.xlu0 %3642
      %3644 = vadd.xlane.f32.xlu0 %v3613
      %v3645 = vpop.xlane.xlu0 %3644
      %3646 = vadd.xlane.f32.xlu0 %v3615
      %v3647 = vpop.xlane.xlu0 %3646
      %3648 = vadd.xlane.f32.xlu0 %v3617
      %v3649 = vpop.xlane.xlu0 %3648
      %3650 = vadd.xlane.f32.xlu0 %v3619
      %v3651 = vpop.xlane.xlu0 %3650
      %3652 = vadd.xlane.f32.xlu0 %v3621
      %v3653 = vpop.xlane.xlu0 %3652
      %3654 = vadd.xlane.f32.xlu0 %v3623
      %v3655 = vpop.xlane.xlu0 %3654
      %3656 = vadd.xlane.f32.xlu0 %v3625
      %v3657 = vpop.xlane.xlu0 %3656
      %3658 = vadd.xlane.f32.xlu0 %v3627
      %v3659 = vpop.xlane.xlu0 %3658
      %3660 = vadd.xlane.f32.xlu0 %v3629
      %v3661 = vpop.xlane.xlu0 %3660
      %3662 = vadd.xlane.f32.xlu0 %v3631
      %v3663 = vpop.xlane.xlu0 %3662
      %3664 = vadd.xlane.f32.xlu0 %v3633
      %v3665 = vpop.xlane.xlu0 %3664
      %3666 = vadd.xlane.f32.xlu0 %v3635
      %v3667 = vpop.xlane.xlu0 %3666
      %3668 = vadd.xlane.f32.xlu0 %v3637
      %v3669 = vpop.xlane.xlu0 %3668
      %v3670 = vrcp.pop %v3639
      %v3671 = vmul.f32 %v3607, %v3670
      %v3672 = vrcp.pop %v3641
      %v3673 = vmul.f32 %v3609, %v3672
      %v3674 = vrcp.pop %v3643
      %v3675 = vmul.f32 %v3611, %v3674
      %v3676 = vrcp.pop %v3645
      %v3677 = vmul.f32 %v3613, %v3676
      %v3678 = vrcp.pop %v3647
      %v3679 = vmul.f32 %v3615, %v3678
      %v3680 = vrcp.pop %v3649
      %v3681 = vmul.f32 %v3617, %v3680
      %v3682 = vrcp.pop %v3651
      %v3683 = vmul.f32 %v3619, %v3682
      %v3684 = vrcp.pop %v3653
      %v3685 = vmul.f32 %v3621, %v3684
      %v3686 = vrcp.pop %v3655
      %v3687 = vmul.f32 %v3623, %v3686
      %v3688 = vrcp.pop %v3657
      %v3689 = vmul.f32 %v3625, %v3688
      %v3690 = vrcp.pop %v3659
      %v3691 = vmul.f32 %v3627, %v3690
      %v3692 = vrcp.pop %v3661
      %v3693 = vmul.f32 %v3629, %v3692
      %v3694 = vrcp.pop %v3663
      %v3695 = vmul.f32 %v3631, %v3694
      %v3696 = vrcp.pop %v3665
      %v3697 = vmul.f32 %v3633, %v3696
      %v3698 = vrcp.pop %v3667
      %v3699 = vmul.f32 %v3635, %v3698
      %v3700 = vrcp.pop %v3669
      %v3701 = vmul.f32 %v3637, %v3700
      %v3702 = vmul.f32 %v3156, %v3671
      %v3703 = vmul.f32 %v3157, %v3673
      %v3704 = vmul.f32 %v3158, %v3675
      %v3705 = vmul.f32 %v3159, %v3677
      %v3706 = vmul.f32 %v3160, %v3679
      %v3707 = vmul.f32 %v3161, %v3681
      %v3708 = vmul.f32 %v3162, %v3683
      %v3709 = vmul.f32 %v3163, %v3685
      %v3710 = vmul.f32 %v3164, %v3687
      %v3711 = vmul.f32 %v3165, %v3689
      %v3712 = vmul.f32 %v3166, %v3691
      %v3713 = vmul.f32 %v3167, %v3693
      %v3714 = vmul.f32 %v3168, %v3695
      %v3715 = vmul.f32 %v3169, %v3697
      %v3716 = vmul.f32 %v3170, %v3699
      %v3717 = vmul.f32 %v3171, %v3701
      %3718 = vadd.xlane.f32.xlu0 %v3702
      %v3719 = vpop.xlane.xlu0 %3718
      %3720 = vadd.xlane.f32.xlu0 %v3703
      %v3721 = vpop.xlane.xlu0 %3720
      %3722 = vadd.xlane.f32.xlu0 %v3704
      %v3723 = vpop.xlane.xlu0 %3722
      %3724 = vadd.xlane.f32.xlu0 %v3705
      %v3725 = vpop.xlane.xlu0 %3724
      %3726 = vadd.xlane.f32.xlu0 %v3706
      %v3727 = vpop.xlane.xlu0 %3726
      %3728 = vadd.xlane.f32.xlu0 %v3707
      %v3729 = vpop.xlane.xlu0 %3728
      %3730 = vadd.xlane.f32.xlu0 %v3708
      %v3731 = vpop.xlane.xlu0 %3730
      %3732 = vadd.xlane.f32.xlu0 %v3709
      %v3733 = vpop.xlane.xlu0 %3732
      %3734 = vadd.xlane.f32.xlu0 %v3710
      %v3735 = vpop.xlane.xlu0 %3734
      %3736 = vadd.xlane.f32.xlu0 %v3711
      %v3737 = vpop.xlane.xlu0 %3736
      %3738 = vadd.xlane.f32.xlu0 %v3712
      %v3739 = vpop.xlane.xlu0 %3738
      %3740 = vadd.xlane.f32.xlu0 %v3713
      %v3741 = vpop.xlane.xlu0 %3740
      %3742 = vadd.xlane.f32.xlu0 %v3714
      %v3743 = vpop.xlane.xlu0 %3742
      %3744 = vadd.xlane.f32.xlu0 %v3715
      %v3745 = vpop.xlane.xlu0 %3744
      %3746 = vadd.xlane.f32.xlu0 %v3716
      %v3747 = vpop.xlane.xlu0 %3746
      %3748 = vadd.xlane.f32.xlu0 %v3717
      %v3749 = vpop.xlane.xlu0 %3748
      %3750 = vst.msk [vmem:[%s386] sm:$0xff] %vm954, %v3719
      %3751 = vst.msk [vmem:[%s386 + $0x8] sm:$0xff] %vm954, %v3721
      %3752 = vst.msk [vmem:[%s386 + $0x10] sm:$0xff] %vm954, %v3723
      %3753 = vst.msk [vmem:[%s386 + $0x18] sm:$0xff] %vm954, %v3725
      %3754 = vst.msk [vmem:[%s386 + $0x20] sm:$0xff] %vm954, %v3727
      %3755 = vst.msk [vmem:[%s386 + $0x28] sm:$0xff] %vm954, %v3729
      %3756 = vst.msk [vmem:[%s386 + $0x30] sm:$0xff] %vm954, %v3731
      %3757 = vst.msk [vmem:[%s386 + $0x38] sm:$0xff] %vm954, %v3733
      %3758 = vst.msk [vmem:[%s386 + $0x40] sm:$0xff] %vm954, %v3735
      %3759 = vst.msk [vmem:[%s386 + $0x48] sm:$0xff] %vm954, %v3737
      %3760 = vst.msk [vmem:[%s386 + $0x50] sm:$0xff] %vm954, %v3739
      %3761 = vst.msk [vmem:[%s386 + $0x58] sm:$0xff] %vm954, %v3741
      %3762 = vst.msk [vmem:[%s386 + $0x60] sm:$0xff] %vm954, %v3743
      %3763 = vst.msk [vmem:[%s386 + $0x68] sm:$0xff] %vm954, %v3745
      %3764 = vst.msk [vmem:[%s386 + $0x70] sm:$0xff] %vm954, %v3747
      %3765 = vst.msk [vmem:[%s386 + $0x78] sm:$0xff] %vm954, %v3749
      %p3766 = scmp.lt.s32.totalorder %s22, 1
      %s3767 = scalar_select %p3766, %s22, 1
      %s3768 = smul.addr %s3767, 16
      %s3769 = smul.addr %s3768, 8
      %s3770 = scalar_lea.vmem %s11, %s3769
      // Predicated region
      $region65: #{my_model_forward.1} parent=63 // pred_check
        %p3771 = pneg %p276
      $region66: #{my_model_forward.1} parent=63 // pred_check_branch
        %3773 = sbr.rel (%p3771) target = $region68
      $region67: #{my_model_forward.1} parent=63 // pred_region
        _
      $region68: #{my_model_forward.1} parent=63 // pred_fallthru
        _
    $region64: #{my_model_forward.1} parent=5 // pred_fallthru
      _
    %p3774 = scmp.le.s32.totalorder 2, %s17
    // Predicated region
    $region69: #{my_model_forward.1} parent=5 // pred_check
      %p3775 = pneg %p3774
    $region70: #{my_model_forward.1} parent=5 // pred_check_branch
      %3777 = sbr.rel (%p3775) target = $region72
    $region71: #{my_model_forward.1} parent=5 // pred_region
      %s3778 = ssub.s32 %s17, 2
      // Predicated region
      $region73: #{my_model_forward.1} parent=71 // pred_check
        %p3779 = pneg %p282
      $region74: #{my_model_forward.1} parent=71 // pred_check_branch
        %3781 = sbr.rel (%p3779) target = $region76
      $region75: #{my_model_forward.1} parent=71 // pred_region
        %p3782 = scmp.lt.s32.totalorder %s23, 1
        %s3783 = scalar_select %p3782, %s23, 1
        %s3784 = smul.addr %s3783, 16
        %s3785 = smul.addr %s3784, 8
        %s3786 = scalar_lea.vmem %s11, %s3785
      $region76: #{my_model_forward.1} parent=71 // pred_fallthru
        _
    $region72: #{my_model_forward.1} parent=5 // pred_fallthru
      _
  $region6: #{my_model_forward.1} parent=0 // loop_footer
    %s21 = sadd.s32 1, %s17
  $region7: #{my_model_forward.1} parent=0 // loop_footer_branch
    %16 = sbr.rel target = $region3
  $region8: #{my_model_forward.1} parent=0 // loop_exit
    _

</llo_original>
